<compile_context>
chip_gen: v5e
topology: v5e:2x2
jax: 0.10.0
libtpu: 0.0.40
codegen_flags: <defaults>
</compile_context>

<pallas_src>
import jax
import jax.numpy as jnp
from jax import lax
from jax.experimental import pallas as pl
from jax.experimental.pallas import tpu as pltpu

NEG_SLOPE = 0.2     # nn.LeakyReLU(negative_slope=0.2)
IN_EPS = 1e-8       # AdaIN instance-norm epsilon
ROW_ALIGN = 8       # f32 sublane tile


def _leaky(x):
    return jnp.where(x >= 0, x, NEG_SLOPE * x)


def _instance_norm(x):
    # per-sample, per-channel normalization over the 16 spatial positions
    # (axis=1).  Centered two-pass variance (matches the reference).
    m = jnp.mean(x, axis=1, keepdims=True)
    d = x - m
    var = jnp.mean(d * d, axis=1, keepdims=True)
    return d * lax.rsqrt(var + IN_EPS)


def synth_level1_kernel(
    base_ref,     # (16, C)       f32   base image, rows ordered h*4+w
    noise_ref,    # (B, 16, 128)  f32   lane 0 = noise1, lane 1 = noise2
    w_ref,        # (2P, w_dim)   f32   rows 0..B-1 = w1, rows P..P+B-1 = w2
    stylew_ref,   # (w_dim, 2C+2Co) bf16 [a1_scale | a1_bias | a2_scale | a2_bias]
    styleb_ref,   # (1, 2C+2Co)   f32   packed style-affine biases (same layout)
    convw_ref,    # (9C, Co)      bf16  3x3 WSConv2d weight, im2col (tap-major)
    rgbw_ref,     # (Co, 128)     bf16  to-RGB 1x1 weight zero-padded to 128 lanes
    smallp_ref,   # (4, Cmax)     f32   rows: ns1, ns2, conv_b, rgb_b (zero-padded)
    out_ref,      # (B*16, 128)   f32   RGB in lanes 0..2, zeros elsewhere
    lhs_ref,      # scratch (B*16, 9C) bf16  im2col LHS
):
    B = noise_ref.shape[0]
    C = base_ref.shape[1]
    Co = convw_ref.shape[1]
    N = B * 16
    P = w_ref.shape[0] // 2     # sublane-aligned row offset of the w2 block

    ns1 = smallp_ref[0:1, 0:C]       # (1, C)
    ns2 = smallp_ref[1:2, 0:Co]
    conv_b = smallp_ref[2:3, 0:Co]
    rgb_b = smallp_ref[3:4, 0:128]

    # ---- one fused MXU pass for all four AdaIN style projections -----------
    styles = jnp.dot(w_ref[...].astype(jnp.bfloat16), stylew_ref[...],
                     preferred_element_type=jnp.float32) + styleb_ref[...]
    scale1 = styles[0:B, 0:C]                       # from w1 (rows 0..B-1)
    bias1 = styles[0:B, C:2 * C]
    scale2 = styles[P:P + B, 2 * C:2 * C + Co]      # from w2 (aligned rows P..)
    bias2 = styles[P:P + B, 2 * C + Co:2 * C + 2 * Co]

    # ---- first half of the block: base + noise1, leaky, AdaIN1 -------------
    noise1 = noise_ref[:, :, 0:1]                   # (B, 16, 1)
    noise2 = noise_ref[:, :, 1:2]
    x = base_ref[...][None, :, :] + noise1 * ns1[None, :, :]   # (B, 16, C)
    x = _leaky(x)
    x = scale1[:, None, :] * _instance_norm(x) + bias1[:, None, :]

    # ---- 3x3 conv (stride 1, pad 1) as ONE im2col matmul -------------------
    # Tap (kh, kw) reads input pixel (h+kh-1, w+kw-1).  On the flattened pixel
    # axis that is a static shift by off = (kh-1)*4 + (kw-1); the hh/ww masks
    # zero every out-of-image position, so neither cross-batch rows nor
    # wrap-around values from the roll are ever observed.  Each masked tap is
    # cast to bf16 and stored into the (N, 9C) bf16 VMEM scratch at a
    # lane-aligned offset; one MXU pass consumes the scratch.
    x_flat = x.reshape(N, C)
    pos = lax.broadcasted_iota(jnp.int32, (N, 1), 0)
    hh = (pos >> 2) & 3          # h = pixel // 4
    ww = pos & 3                 # w = pixel %  4

    for kh in range(3):
        for kw in range(3):
            dh, dw = kh - 1, kw - 1
            off = dh * 4 + dw
            tap_idx = kh * 3 + kw
            if off == 0:
                tap = x_flat
            else:
                # rolled[r] = x_flat[(r + off) mod N]
                tap = pltpu.roll(x_flat, shift=(-off) % N, axis=0)
            conds = []
            if dh > 0:
                conds.append(hh <= 3 - dh)
            if dh < 0:
                conds.append(hh >= -dh)
            if dw > 0:
                conds.append(ww <= 3 - dw)
            if dw < 0:
                conds.append(ww >= -dw)
            if conds:
                valid = conds[0]
                for c in conds[1:]:
                    valid = valid & c
                tap = jnp.where(valid, tap, 0.0)
            lhs_ref[:, tap_idx * C:(tap_idx + 1) * C] = tap.astype(jnp.bfloat16)

    y = jnp.dot(lhs_ref[...], convw_ref[...], preferred_element_type=jnp.float32)
    y = y.reshape(B, 16, Co) + conv_b[None, :, :]

    # ---- second half: noise2, leaky, AdaIN2 ---------------------------------
    y = y + noise2 * ns2[None, :, :]
    y = _leaky(y)
    y = scale2[:, None, :] * _instance_norm(y) + bias2[:, None, :]

    # ---- to-RGB 1x1 conv (gain=1), lane-padded to 128 output columns --------
    rgb = jnp.dot(y.reshape(N, Co).astype(jnp.bfloat16), rgbw_ref[...],
                  preferred_element_type=jnp.float32) + rgb_b
    out_ref[...] = rgb


def pack_params(params):
    """Pre-pack module parameters into the fused / lane-dense forms the kernel uses."""
    f32, bf16 = jnp.float32, jnp.bfloat16
    C = params["base_image"].shape[-1]
    Co = params["conv_b"].shape[-1]
    Cmax = max(C, Co, 128)

    base = params["base_image"].reshape(16, C)       # (1,4,4,C) -> (16,C), rows h*4+w

    # fused AdaIN style projection: [a1_scale | a1_bias | a2_scale | a2_bias]
    style_w = jnp.concatenate(
        [params["a1s_w"], params["a1b_w"], params["a2s_w"], params["a2b_w"]],
        axis=1).astype(bf16)
    style_b = jnp.concatenate(
        [params["a1s_b"], params["a1b_b"], params["a2s_b"], params["a2b_b"]],
        axis=1).astype(f32)

    # 3x3 conv weight in im2col (tap-major) layout: row = tap*C + cin.
    conv_w = params["conv_w"].reshape(9 * C, Co).astype(bf16)

    # to-RGB weight / bias, zero-padded to a lane-dense 128-wide output.
    rgb_w = jnp.zeros((Co, 128), f32).at[:, :3].set(params["rgb_w"]).astype(bf16)

    def row(v):
        return jnp.zeros((1, Cmax), f32).at[:, : v.shape[-1]].set(v)

    smallp = jnp.concatenate(
        [row(params["ns1"]), row(params["ns2"]), row(params["conv_b"]),
         row(params["rgb_b"])], axis=0)              # (4, Cmax)

    return dict(base=base, style_w=style_w, style_b=style_b,
                conv_w=conv_w, rgb_w=rgb_w, smallp=smallp)


def synthesis_forward(w, noise1, noise2, packed):
    """SynthesisModule.forward with level == 1 (the registered buffer default), alpha == 1.

    w:      (B, n_styles, w_dim)  -- styles 0 and 1 are used at level 1.
    noise1: (B, 4, 4, 1) per-forward NoiseLayer noise (NHWC; broadcast over C).
    noise2: (B, 4, 4, 1)
    returns (B, 4, 4, 3) RGB image (NHWC layout).
    """
    B = w.shape[0]
    N = B * 16
    w_dim = w.shape[-1]
    C = packed["base"].shape[1]
    Co = packed["conv_w"].shape[1]

    # w1 at rows 0..B-1, w2 at a sublane-aligned offset P = 8*ceil(B/8).
    P = ((B + ROW_ALIGN - 1) // ROW_ALIGN) * ROW_ALIGN
    w_packed = jnp.zeros((2 * P, w_dim), jnp.float32)
    w_packed = w_packed.at[0:B].set(w[:, 0]).at[P:P + B].set(w[:, 1])

    # lane-dense noise tile: lanes 0/1 hold noise1/noise2, rest zero.
    noisep = jnp.zeros((B, 16, 128), jnp.float32)
    noisep = noisep.at[:, :, 0].set(noise1.reshape(B, 16))
    noisep = noisep.at[:, :, 1].set(noise2.reshape(B, 16))

    args = (packed["base"], noisep, w_packed, packed["style_w"], packed["style_b"],
            packed["conv_w"], packed["rgb_w"], packed["smallp"])

    bytes_accessed = sum(int(a.size) * a.dtype.itemsize for a in args) + N * 128 * 4
    flops = (2 * (2 * P) * w_dim * packed["style_w"].shape[1]   # fused style dots
             + 2 * N * (9 * C) * Co                             # 3x3 conv im2col
             + 2 * N * Co * 128)                                # to-RGB
    cost = pl.CostEstimate(flops=flops, transcendentals=B * (C + Co),
                           bytes_accessed=bytes_accessed)

    vmem = pl.BlockSpec(memory_space=pltpu.MemorySpace.VMEM)
    out = pl.pallas_call(
        synth_level1_kernel,
        out_shape=jax.ShapeDtypeStruct((N, 128), jnp.float32),
        in_specs=[vmem] * len(args),
        out_specs=vmem,
        scratch_shapes=[pltpu.VMEM((N, 9 * C), jnp.bfloat16)],
        cost_estimate=cost,
    )(*args)
    return out[:, :3].reshape(B, 4, 4, 3)


def init_params(key, start_dim=256, output_dim=256, w_dim=256):
    """Deterministic synthetic init mirroring the module's __init__ shapes."""
    ks = jax.random.split(key, 10)
    f32 = jnp.float32

    # base_image: 'one_normal' -> N(1, 1); (1, start_dim, 4, 4) NCHW == (1,4,4,C) NHWC.
    base = 1.0 + jax.random.normal(ks[0], (1, 4, 4, start_dim), f32)

    # WSConv2d 3x3 (equalized lr, gain=2): weight ~ N(0,1) * sqrt(2/(Cin*9)), bias 0.
    # Stored tap-major: conv_w[kh*3+kw, cin, cout].
    conv_scale = jnp.sqrt(2.0 / (start_dim * 9.0))
    conv_w = jax.random.normal(ks[1], (9, start_dim, output_dim), f32) * conv_scale
    conv_b = jnp.zeros((1, output_dim), f32)

    # NoiseLayer per-channel scales (small non-zero so the noise path is exercised).
    ns1 = 0.05 * jax.random.normal(ks[2], (1, start_dim), f32)
    ns2 = 0.05 * jax.random.normal(ks[3], (1, output_dim), f32)

    # AdaIN style transforms: 1x1 WSConv, gain=1 (scale 1/sqrt(w_dim));
    # scale-transform bias init 1, bias-transform bias init 0.
    wsc = 1.0 / jnp.sqrt(jnp.asarray(w_dim, f32))
    a1s_w = jax.random.normal(ks[4], (w_dim, start_dim), f32) * wsc
    a1b_w = jax.random.normal(ks[5], (w_dim, start_dim), f32) * wsc
    a2s_w = jax.random.normal(ks[6], (w_dim, output_dim), f32) * wsc
    a2b_w = jax.random.normal(ks[7], (w_dim, output_dim), f32) * wsc
    a1s_b = jnp.ones((1, start_dim), f32)
    a1b_b = jnp.zeros((1, start_dim), f32)
    a2s_b = jnp.ones((1, output_dim), f32)
    a2b_b = jnp.zeros((1, output_dim), f32)

    # to_rgb: WSConv2d 1x1, gain=1 -> scale 1/sqrt(Cin), bias 0.
    rgb_w = jax.random.normal(ks[8], (output_dim, 3), f32) / jnp.sqrt(
        jnp.asarray(output_dim, f32))
    rgb_b = jnp.zeros((1, 3), f32)

    return dict(
        base_image=base, conv_w=conv_w, conv_b=conv_b, ns1=ns1, ns2=ns2,
        a1s_w=a1s_w, a1s_b=a1s_b, a1b_w=a1b_w, a1b_b=a1b_b,
        a2s_w=a2s_w, a2s_b=a2s_b, a2b_w=a2b_w, a2b_b=a2b_b,
        rgb_w=rgb_w, rgb_b=rgb_b,
    )


def synthesis_reference(w, noise1, noise2, params, quantized=True):
    """Pure-JAX reference of the level-1 forward (weights optionally rounded to
    bf16 exactly as the kernel carries them) for validation.  Note: the kernel
    additionally rounds matmul activations (style LHS, im2col LHS, to-RGB LHS)
    to bf16; that extra rounding is covered by the 0.1 tolerance below."""
    f32 = jnp.float32

    def q(a):
        return a.astype(jnp.bfloat16).astype(f32) if quantized else a

    def instance_norm(x):
        m = jnp.mean(x, axis=(1, 2), keepdims=True)
        v = jnp.mean(jnp.square(x - m), axis=(1, 2), keepdims=True)
        return (x - m) * lax.rsqrt(v + IN_EPS)

    def leaky(x):
        return jnp.where(x >= 0, x, NEG_SLOPE * x)

    B = w.shape[0]
    C = params["base_image"].shape[-1]
    w1, w2 = w[:, 0], w[:, 1]

    x = jnp.broadcast_to(params["base_image"], (B, 4, 4, C))
    x = x + noise1 * params["ns1"][0]
    x = leaky(x)
    s1 = jnp.dot(w1, q(params["a1s_w"]), precision="highest") + params["a1s_b"][0]
    b1 = jnp.dot(w1, q(params["a1b_w"]), precision="highest") + params["a1b_b"][0]
    x = s1[:, None, None, :] * instance_norm(x) + b1[:, None, None, :]

    xpad = jnp.pad(x, ((0, 0), (1, 1), (1, 1), (0, 0)))
    acc = 0.0
    for kh in range(3):
        for kw in range(3):
            win = xpad[:, kh:kh + 4, kw:kw + 4, :]
            acc = acc + jnp.einsum("bhwc,cd->bhwd", win,
                                   q(params["conv_w"][kh * 3 + kw]),
                                   precision="highest")
    y = acc + params["conv_b"][0]

    y = y + noise2 * params["ns2"][0]
    y = leaky(y)
    s2 = jnp.dot(w2, q(params["a2s_w"]), precision="highest") + params["a2s_b"][0]
    b2 = jnp.dot(w2, q(params["a2b_w"]), precision="highest") + params["a2b_b"][0]
    y = s2[:, None, None, :] * instance_norm(y) + b2[:, None, None, :]

    rgb = jnp.einsum("bhwc,cd->bhwd", y, q(params["rgb_w"]),
                     precision="highest") + params["rgb_b"][0]
    return rgb


if __name__ == "__main__":
    key = jax.random.PRNGKey(0)
    kp, kw, kn1, kn2 = jax.random.split(key, 4)

    B, W_DIM = 2, 256
    params = init_params(kp, start_dim=256, output_dim=256, w_dim=W_DIM)
    packed = pack_params(params)

    # w: (B, n_styles, w_dim); level==1 uses styles 0 and 1.
    w = jax.random.normal(kw, (B, 2, W_DIM), jnp.float32)
    # Per-forward NoiseLayer noise (torch.randn(B,1,4,4)), generated in-script, NHWC.
    noise1 = jax.random.normal(kn1, (B, 4, 4, 1), jnp.float32)
    noise2 = jax.random.normal(kn2, (B, 4, 4, 1), jnp.float32)

    run = jax.jit(synthesis_forward)
    out = jax.block_until_ready(run(w, noise1, noise2, packed))

    assert out.shape == (B, 4, 4, 3), out.shape
    assert bool(jnp.all(jnp.isfinite(out)))

    ref = synthesis_reference(w, noise1, noise2, params, quantized=True)
    max_err = float(jnp.max(jnp.abs(out - ref)))
    assert max_err < 0.1, f"max abs error vs reference: {max_err}"

    print("KERNEL_OK")
</pallas_src>

<mosaic_0001>
module attributes {stable_mosaic.version = 11 : i64} {
  func.func @synth_level1_kernel(%arg0: memref<16x256xf32, #tpu.memory_space<vmem>>, %arg1: memref<2x16x128xf32, #tpu.memory_space<vmem>>, %arg2: memref<16x256xf32, #tpu.memory_space<vmem>>, %arg3: memref<256x1024xbf16, #tpu.memory_space<vmem>>, %arg4: memref<1x1024xf32, #tpu.memory_space<vmem>>, %arg5: memref<2304x256xbf16, #tpu.memory_space<vmem>>, %arg6: memref<256x128xbf16, #tpu.memory_space<vmem>>, %arg7: memref<4x256xf32, #tpu.memory_space<vmem>>, %arg8: memref<32x128xf32, #tpu.memory_space<vmem>>, %arg9: memref<32x2304xbf16, #tpu.memory_space<vmem>>) attributes {dimension_semantics = [], scalar_prefetch = 0 : i64, scratch_operands = 1 : i64, tpu.core_type = #tpu.core_type<tc>} {
    %c0 = arith.constant 0 : index
    %c0_0 = arith.constant 0 : index
    %0 = vector.load %arg7[%c0, %c0_0] : memref<4x256xf32, #tpu.memory_space<vmem>>, vector<1x256xf32>
    %c1 = arith.constant 1 : index
    %c0_1 = arith.constant 0 : index
    %1 = vector.load %arg7[%c1, %c0_1] : memref<4x256xf32, #tpu.memory_space<vmem>>, vector<1x256xf32>
    %c2 = arith.constant 2 : index
    %c0_2 = arith.constant 0 : index
    %2 = vector.load %arg7[%c2, %c0_2] : memref<4x256xf32, #tpu.memory_space<vmem>>, vector<1x256xf32>
    %c3 = arith.constant 3 : index
    %c0_3 = arith.constant 0 : index
    %3 = vector.load %arg7[%c3, %c0_3] : memref<4x256xf32, #tpu.memory_space<vmem>>, vector<1x128xf32>
    %c0_4 = arith.constant 0 : index
    %c0_5 = arith.constant 0 : index
    %4 = vector.load %arg2[%c0_4, %c0_5] : memref<16x256xf32, #tpu.memory_space<vmem>>, vector<16x256xf32>
    %5 = arith.truncf %4 : vector<16x256xf32> to vector<16x256xbf16>
    %c0_6 = arith.constant 0 : index
    %c0_7 = arith.constant 0 : index
    %6 = vector.load %arg3[%c0_6, %c0_7] : memref<256x1024xbf16, #tpu.memory_space<vmem>>, vector<256x1024xbf16>
    %cst = arith.constant dense<0.000000e+00> : vector<16x1024xf32>
    %7 = tpu.matmul %5, %6, %cst {dimension_numbers = #tpu.dot_dimension_numbers<[1], [0], [0], [1], [0, 0, 1, 1], [], []>} : vector<16x256xbf16>, vector<256x1024xbf16>, vector<16x1024xf32> -> vector<16x1024xf32>
    %c0_8 = arith.constant 0 : index
    %c0_9 = arith.constant 0 : index
    %8 = vector.load %arg4[%c0_8, %c0_9] : memref<1x1024xf32, #tpu.memory_space<vmem>>, vector<1x1024xf32>
    %9 = vector.broadcast %8 : vector<1x1024xf32> to vector<16x1024xf32>
    %10 = arith.addf %7, %9 : vector<16x1024xf32>
    %11 = vector.extract_strided_slice %10 {offsets = [0, 0], sizes = [2, 256], strides = [1, 1]} : vector<16x1024xf32> to vector<2x256xf32>
    %12 = vector.extract_strided_slice %10 {offsets = [0, 256], sizes = [2, 256], strides = [1, 1]} : vector<16x1024xf32> to vector<2x256xf32>
    %13 = vector.extract_strided_slice %10 {offsets = [8, 512], sizes = [2, 256], strides = [1, 1]} : vector<16x1024xf32> to vector<2x256xf32>
    %14 = vector.extract_strided_slice %10 {offsets = [8, 768], sizes = [2, 256], strides = [1, 1]} : vector<16x1024xf32> to vector<2x256xf32>
    %c0_10 = arith.constant 0 : index
    %c0_11 = arith.constant 0 : index
    %c0_12 = arith.constant 0 : index
    %15 = vector.load %arg1[%c0_10, %c0_11, %c0_12] : memref<2x16x128xf32, #tpu.memory_space<vmem>>, vector<2x16x1xf32>
    %c0_13 = arith.constant 0 : index
    %c0_14 = arith.constant 0 : index
    %c1_15 = arith.constant 1 : index
    %16 = vector.load %arg1[%c0_13, %c0_14, %c1_15] : memref<2x16x128xf32, #tpu.memory_space<vmem>>, vector<2x16x1xf32>
    %c0_16 = arith.constant 0 : index
    %c0_17 = arith.constant 0 : index
    %17 = vector.load %arg0[%c0_16, %c0_17] : memref<16x256xf32, #tpu.memory_space<vmem>>, vector<16x256xf32>
    %18 = vector.shape_cast %17 : vector<16x256xf32> to vector<1x16x256xf32>
    %19 = vector.shape_cast %0 : vector<1x256xf32> to vector<1x1x256xf32>
    %20 = vector.broadcast %15 : vector<2x16x1xf32> to vector<2x16x256xf32>
    %21 = vector.broadcast %19 : vector<1x1x256xf32> to vector<2x16x256xf32>
    %22 = arith.mulf %20, %21 : vector<2x16x256xf32>
    %23 = vector.broadcast %18 : vector<1x16x256xf32> to vector<2x16x256xf32>
    %24 = arith.addf %23, %22 : vector<2x16x256xf32>
    %cst_18 = arith.constant 0.000000e+00 : f32
    %25 = vector.broadcast %cst_18 : f32 to vector<2x16x256xf32>
    %26 = arith.cmpf oge, %24, %25 : vector<2x16x256xf32>
    %cst_19 = arith.constant 2.000000e-01 : f32
    %27 = vector.broadcast %cst_19 : f32 to vector<2x16x256xf32>
    %28 = arith.mulf %27, %24 : vector<2x16x256xf32>
    %29 = arith.select %26, %24, %28 : vector<2x16x256xi1>, vector<2x16x256xf32>
    %30 = vector.shape_cast %11 : vector<2x256xf32> to vector<2x1x256xf32>
    %cst_20 = arith.constant dense<0.000000e+00> : vector<2x256xf32>
    %31 = vector.multi_reduction <add>, %29, %cst_20 [1] : vector<2x16x256xf32> to vector<2x256xf32>
    %32 = vector.shape_cast %31 : vector<2x256xf32> to vector<2x1x256xf32>
    %cst_21 = arith.constant 1.600000e+01 : f32
    %33 = vector.broadcast %cst_21 : f32 to vector<2x1x256xf32>
    %34 = arith.divf %32, %33 : vector<2x1x256xf32>
    %35 = vector.broadcast %34 : vector<2x1x256xf32> to vector<2x16x256xf32>
    %36 = arith.subf %29, %35 : vector<2x16x256xf32>
    %37 = arith.mulf %36, %36 : vector<2x16x256xf32>
    %cst_22 = arith.constant dense<0.000000e+00> : vector<2x256xf32>
    %38 = vector.multi_reduction <add>, %37, %cst_22 [1] : vector<2x16x256xf32> to vector<2x256xf32>
    %39 = vector.shape_cast %38 : vector<2x256xf32> to vector<2x1x256xf32>
    %cst_23 = arith.constant 1.600000e+01 : f32
    %40 = vector.broadcast %cst_23 : f32 to vector<2x1x256xf32>
    %41 = arith.divf %39, %40 : vector<2x1x256xf32>
    %cst_24 = arith.constant 9.99999993E-9 : f32
    %42 = vector.broadcast %cst_24 : f32 to vector<2x1x256xf32>
    %43 = arith.addf %41, %42 : vector<2x1x256xf32>
    %44 = math.rsqrt %43 : vector<2x1x256xf32>
    %45 = vector.broadcast %44 : vector<2x1x256xf32> to vector<2x16x256xf32>
    %46 = arith.mulf %36, %45 : vector<2x16x256xf32>
    %47 = vector.broadcast %30 : vector<2x1x256xf32> to vector<2x16x256xf32>
    %48 = arith.mulf %47, %46 : vector<2x16x256xf32>
    %49 = vector.shape_cast %12 : vector<2x256xf32> to vector<2x1x256xf32>
    %50 = vector.broadcast %49 : vector<2x1x256xf32> to vector<2x16x256xf32>
    %51 = arith.addf %48, %50 : vector<2x16x256xf32>
    %52 = vector.shape_cast %51 : vector<2x16x256xf32> to vector<32x256xf32>
    %53 = tpu.iota {dimensions = array<i32: 0>} : vector<32x1xi32>
    %c2_i32 = arith.constant 2 : i32
    %54 = vector.broadcast %c2_i32 : i32 to vector<32x1xi32>
    %55 = arith.shrsi %53, %54 : vector<32x1xi32>
    %c3_i32 = arith.constant 3 : i32
    %56 = vector.broadcast %c3_i32 : i32 to vector<32x1xi32>
    %57 = arith.andi %55, %56 : vector<32x1xi32>
    %c3_i32_25 = arith.constant 3 : i32
    %58 = vector.broadcast %c3_i32_25 : i32 to vector<32x1xi32>
    %59 = arith.andi %53, %58 : vector<32x1xi32>
    %c5_i32 = arith.constant 5 : i32
    %60 = tpu.dynamic_rotate %52 by %c5_i32 dim 0 : vector<32x256xf32>, i32 -> vector<32x256xf32>
    %c1_i32 = arith.constant 1 : i32
    %61 = vector.broadcast %c1_i32 : i32 to vector<32x1xi32>
    %62 = arith.cmpi sge, %57, %61 : vector<32x1xi32>
    %c1_i32_26 = arith.constant 1 : i32
    %63 = vector.broadcast %c1_i32_26 : i32 to vector<32x1xi32>
    %64 = arith.cmpi sge, %59, %63 : vector<32x1xi32>
    %65 = arith.andi %62, %64 : vector<32x1xi1>
    %cst_27 = arith.constant 0.000000e+00 : f32
    %66 = vector.shape_cast %65 : vector<32x1xi1> to vector<32x1xi1>
    %67 = vector.broadcast %66 : vector<32x1xi1> to vector<32x256xi1>
    %68 = vector.broadcast %cst_27 : f32 to vector<32x256xf32>
    %69 = arith.select %67, %60, %68 : vector<32x256xi1>, vector<32x256xf32>
    %70 = arith.truncf %69 : vector<32x256xf32> to vector<32x256xbf16>
    %c0_28 = arith.constant 0 : index
    %c0_29 = arith.constant 0 : index
    %71 = vector.load %arg9[%c0_28, %c0_29] : memref<32x2304xbf16, #tpu.memory_space<vmem>>, vector<32x256xbf16>
    tpu.vector_store %arg9[%c0_28, %c0_29], %70 {strides = array<i32>} : memref<32x2304xbf16, #tpu.memory_space<vmem>>, vector<32x256xbf16>,
    %c4_i32 = arith.constant 4 : i32
    %72 = tpu.dynamic_rotate %52 by %c4_i32 dim 0 : vector<32x256xf32>, i32 -> vector<32x256xf32>
    %c1_i32_30 = arith.constant 1 : i32
    %73 = vector.broadcast %c1_i32_30 : i32 to vector<32x1xi32>
    %74 = arith.cmpi sge, %57, %73 : vector<32x1xi32>
    %cst_31 = arith.constant 0.000000e+00 : f32
    %75 = vector.shape_cast %74 : vector<32x1xi1> to vector<32x1xi1>
    %76 = vector.broadcast %75 : vector<32x1xi1> to vector<32x256xi1>
    %77 = vector.broadcast %cst_31 : f32 to vector<32x256xf32>
    %78 = arith.select %76, %72, %77 : vector<32x256xi1>, vector<32x256xf32>
    %79 = arith.truncf %78 : vector<32x256xf32> to vector<32x256xbf16>
    %c0_32 = arith.constant 0 : index
    %c256 = arith.constant 256 : index
    %80 = vector.load %arg9[%c0_32, %c256] : memref<32x2304xbf16, #tpu.memory_space<vmem>>, vector<32x256xbf16>
    tpu.vector_store %arg9[%c0_32, %c256], %79 {strides = array<i32>} : memref<32x2304xbf16, #tpu.memory_space<vmem>>, vector<32x256xbf16>,
    %c3_i32_33 = arith.constant 3 : i32
    %81 = tpu.dynamic_rotate %52 by %c3_i32_33 dim 0 : vector<32x256xf32>, i32 -> vector<32x256xf32>
    %c1_i32_34 = arith.constant 1 : i32
    %82 = vector.broadcast %c1_i32_34 : i32 to vector<32x1xi32>
    %83 = arith.cmpi sge, %57, %82 : vector<32x1xi32>
    %c2_i32_35 = arith.constant 2 : i32
    %84 = vector.broadcast %c2_i32_35 : i32 to vector<32x1xi32>
    %85 = arith.cmpi sle, %59, %84 : vector<32x1xi32>
    %86 = arith.andi %83, %85 : vector<32x1xi1>
    %cst_36 = arith.constant 0.000000e+00 : f32
    %87 = vector.shape_cast %86 : vector<32x1xi1> to vector<32x1xi1>
    %88 = vector.broadcast %87 : vector<32x1xi1> to vector<32x256xi1>
    %89 = vector.broadcast %cst_36 : f32 to vector<32x256xf32>
    %90 = arith.select %88, %81, %89 : vector<32x256xi1>, vector<32x256xf32>
    %91 = arith.truncf %90 : vector<32x256xf32> to vector<32x256xbf16>
    %c0_37 = arith.constant 0 : index
    %c512 = arith.constant 512 : index
    %92 = vector.load %arg9[%c0_37, %c512] : memref<32x2304xbf16, #tpu.memory_space<vmem>>, vector<32x256xbf16>
    tpu.vector_store %arg9[%c0_37, %c512], %91 {strides = array<i32>} : memref<32x2304xbf16, #tpu.memory_space<vmem>>, vector<32x256xbf16>,
    %c1_i32_38 = arith.constant 1 : i32
    %93 = tpu.dynamic_rotate %52 by %c1_i32_38 dim 0 : vector<32x256xf32>, i32 -> vector<32x256xf32>
    %c1_i32_39 = arith.constant 1 : i32
    %94 = vector.broadcast %c1_i32_39 : i32 to vector<32x1xi32>
    %95 = arith.cmpi sge, %59, %94 : vector<32x1xi32>
    %cst_40 = arith.constant 0.000000e+00 : f32
    %96 = vector.shape_cast %95 : vector<32x1xi1> to vector<32x1xi1>
    %97 = vector.broadcast %96 : vector<32x1xi1> to vector<32x256xi1>
    %98 = vector.broadcast %cst_40 : f32 to vector<32x256xf32>
    %99 = arith.select %97, %93, %98 : vector<32x256xi1>, vector<32x256xf32>
    %100 = arith.truncf %99 : vector<32x256xf32> to vector<32x256xbf16>
    %c0_41 = arith.constant 0 : index
    %c768 = arith.constant 768 : index
    %101 = vector.load %arg9[%c0_41, %c768] : memref<32x2304xbf16, #tpu.memory_space<vmem>>, vector<32x256xbf16>
    tpu.vector_store %arg9[%c0_41, %c768], %100 {strides = array<i32>} : memref<32x2304xbf16, #tpu.memory_space<vmem>>, vector<32x256xbf16>,
    %102 = arith.truncf %52 : vector<32x256xf32> to vector<32x256xbf16>
    %c0_42 = arith.constant 0 : index
    %c1024 = arith.constant 1024 : index
    %103 = vector.load %arg9[%c0_42, %c1024] : memref<32x2304xbf16, #tpu.memory_space<vmem>>, vector<32x256xbf16>
    tpu.vector_store %arg9[%c0_42, %c1024], %102 {strides = array<i32>} : memref<32x2304xbf16, #tpu.memory_space<vmem>>, vector<32x256xbf16>,
    %c31_i32 = arith.constant 31 : i32
    %104 = tpu.dynamic_rotate %52 by %c31_i32 dim 0 : vector<32x256xf32>, i32 -> vector<32x256xf32>
    %c2_i32_43 = arith.constant 2 : i32
    %105 = vector.broadcast %c2_i32_43 : i32 to vector<32x1xi32>
    %106 = arith.cmpi sle, %59, %105 : vector<32x1xi32>
    %cst_44 = arith.constant 0.000000e+00 : f32
    %107 = vector.shape_cast %106 : vector<32x1xi1> to vector<32x1xi1>
    %108 = vector.broadcast %107 : vector<32x1xi1> to vector<32x256xi1>
    %109 = vector.broadcast %cst_44 : f32 to vector<32x256xf32>
    %110 = arith.select %108, %104, %109 : vector<32x256xi1>, vector<32x256xf32>
    %111 = arith.truncf %110 : vector<32x256xf32> to vector<32x256xbf16>
    %c0_45 = arith.constant 0 : index
    %c1280 = arith.constant 1280 : index
    %112 = vector.load %arg9[%c0_45, %c1280] : memref<32x2304xbf16, #tpu.memory_space<vmem>>, vector<32x256xbf16>
    tpu.vector_store %arg9[%c0_45, %c1280], %111 {strides = array<i32>} : memref<32x2304xbf16, #tpu.memory_space<vmem>>, vector<32x256xbf16>,
    %c29_i32 = arith.constant 29 : i32
    %113 = tpu.dynamic_rotate %52 by %c29_i32 dim 0 : vector<32x256xf32>, i32 -> vector<32x256xf32>
    %c2_i32_46 = arith.constant 2 : i32
    %114 = vector.broadcast %c2_i32_46 : i32 to vector<32x1xi32>
    %115 = arith.cmpi sle, %57, %114 : vector<32x1xi32>
    %c1_i32_47 = arith.constant 1 : i32
    %116 = vector.broadcast %c1_i32_47 : i32 to vector<32x1xi32>
    %117 = arith.cmpi sge, %59, %116 : vector<32x1xi32>
    %118 = arith.andi %115, %117 : vector<32x1xi1>
    %cst_48 = arith.constant 0.000000e+00 : f32
    %119 = vector.shape_cast %118 : vector<32x1xi1> to vector<32x1xi1>
    %120 = vector.broadcast %119 : vector<32x1xi1> to vector<32x256xi1>
    %121 = vector.broadcast %cst_48 : f32 to vector<32x256xf32>
    %122 = arith.select %120, %113, %121 : vector<32x256xi1>, vector<32x256xf32>
    %123 = arith.truncf %122 : vector<32x256xf32> to vector<32x256xbf16>
    %c0_49 = arith.constant 0 : index
    %c1536 = arith.constant 1536 : index
    %124 = vector.load %arg9[%c0_49, %c1536] : memref<32x2304xbf16, #tpu.memory_space<vmem>>, vector<32x256xbf16>
    tpu.vector_store %arg9[%c0_49, %c1536], %123 {strides = array<i32>} : memref<32x2304xbf16, #tpu.memory_space<vmem>>, vector<32x256xbf16>,
    %c28_i32 = arith.constant 28 : i32
    %125 = tpu.dynamic_rotate %52 by %c28_i32 dim 0 : vector<32x256xf32>, i32 -> vector<32x256xf32>
    %c2_i32_50 = arith.constant 2 : i32
    %126 = vector.broadcast %c2_i32_50 : i32 to vector<32x1xi32>
    %127 = arith.cmpi sle, %57, %126 : vector<32x1xi32>
    %cst_51 = arith.constant 0.000000e+00 : f32
    %128 = vector.shape_cast %127 : vector<32x1xi1> to vector<32x1xi1>
    %129 = vector.broadcast %128 : vector<32x1xi1> to vector<32x256xi1>
    %130 = vector.broadcast %cst_51 : f32 to vector<32x256xf32>
    %131 = arith.select %129, %125, %130 : vector<32x256xi1>, vector<32x256xf32>
    %132 = arith.truncf %131 : vector<32x256xf32> to vector<32x256xbf16>
    %c0_52 = arith.constant 0 : index
    %c1792 = arith.constant 1792 : index
    %133 = vector.load %arg9[%c0_52, %c1792] : memref<32x2304xbf16, #tpu.memory_space<vmem>>, vector<32x256xbf16>
    tpu.vector_store %arg9[%c0_52, %c1792], %132 {strides = array<i32>} : memref<32x2304xbf16, #tpu.memory_space<vmem>>, vector<32x256xbf16>,
    %c27_i32 = arith.constant 27 : i32
    %134 = tpu.dynamic_rotate %52 by %c27_i32 dim 0 : vector<32x256xf32>, i32 -> vector<32x256xf32>
    %c2_i32_53 = arith.constant 2 : i32
    %135 = vector.broadcast %c2_i32_53 : i32 to vector<32x1xi32>
    %136 = arith.cmpi sle, %57, %135 : vector<32x1xi32>
    %c2_i32_54 = arith.constant 2 : i32
    %137 = vector.broadcast %c2_i32_54 : i32 to vector<32x1xi32>
    %138 = arith.cmpi sle, %59, %137 : vector<32x1xi32>
    %139 = arith.andi %136, %138 : vector<32x1xi1>
    %cst_55 = arith.constant 0.000000e+00 : f32
    %140 = vector.shape_cast %139 : vector<32x1xi1> to vector<32x1xi1>
    %141 = vector.broadcast %140 : vector<32x1xi1> to vector<32x256xi1>
    %142 = vector.broadcast %cst_55 : f32 to vector<32x256xf32>
    %143 = arith.select %141, %134, %142 : vector<32x256xi1>, vector<32x256xf32>
    %144 = arith.truncf %143 : vector<32x256xf32> to vector<32x256xbf16>
    %c0_56 = arith.constant 0 : index
    %c2048 = arith.constant 2048 : index
    %145 = vector.load %arg9[%c0_56, %c2048] : memref<32x2304xbf16, #tpu.memory_space<vmem>>, vector<32x256xbf16>
    tpu.vector_store %arg9[%c0_56, %c2048], %144 {strides = array<i32>} : memref<32x2304xbf16, #tpu.memory_space<vmem>>, vector<32x256xbf16>,
    %c0_57 = arith.constant 0 : index
    %c0_58 = arith.constant 0 : index
    %146 = vector.load %arg9[%c0_57, %c0_58] : memref<32x2304xbf16, #tpu.memory_space<vmem>>, vector<32x2304xbf16>
    %c0_59 = arith.constant 0 : index
    %c0_60 = arith.constant 0 : index
    %147 = vector.load %arg5[%c0_59, %c0_60] : memref<2304x256xbf16, #tpu.memory_space<vmem>>, vector<2304x256xbf16>
    %cst_61 = arith.constant dense<0.000000e+00> : vector<32x256xf32>
    %148 = tpu.matmul %146, %147, %cst_61 {dimension_numbers = #tpu.dot_dimension_numbers<[1], [0], [0], [1], [0, 0, 1, 1], [], []>} : vector<32x2304xbf16>, vector<2304x256xbf16>, vector<32x256xf32> -> vector<32x256xf32>
    %149 = vector.shape_cast %148 : vector<32x256xf32> to vector<2x16x256xf32>
    %150 = vector.shape_cast %2 : vector<1x256xf32> to vector<1x1x256xf32>
    %151 = vector.broadcast %150 : vector<1x1x256xf32> to vector<2x16x256xf32>
    %152 = arith.addf %149, %151 : vector<2x16x256xf32>
    %153 = vector.shape_cast %1 : vector<1x256xf32> to vector<1x1x256xf32>
    %154 = vector.broadcast %16 : vector<2x16x1xf32> to vector<2x16x256xf32>
    %155 = vector.broadcast %153 : vector<1x1x256xf32> to vector<2x16x256xf32>
    %156 = arith.mulf %154, %155 : vector<2x16x256xf32>
    %157 = arith.addf %152, %156 : vector<2x16x256xf32>
    %cst_62 = arith.constant 0.000000e+00 : f32
    %158 = vector.broadcast %cst_62 : f32 to vector<2x16x256xf32>
    %159 = arith.cmpf oge, %157, %158 : vector<2x16x256xf32>
    %cst_63 = arith.constant 2.000000e-01 : f32
    %160 = vector.broadcast %cst_63 : f32 to vector<2x16x256xf32>
    %161 = arith.mulf %160, %157 : vector<2x16x256xf32>
    %162 = arith.select %159, %157, %161 : vector<2x16x256xi1>, vector<2x16x256xf32>
    %163 = vector.shape_cast %13 : vector<2x256xf32> to vector<2x1x256xf32>
    %cst_64 = arith.constant dense<0.000000e+00> : vector<2x256xf32>
    %164 = vector.multi_reduction <add>, %162, %cst_64 [1] : vector<2x16x256xf32> to vector<2x256xf32>
    %165 = vector.shape_cast %164 : vector<2x256xf32> to vector<2x1x256xf32>
    %cst_65 = arith.constant 1.600000e+01 : f32
    %166 = vector.broadcast %cst_65 : f32 to vector<2x1x256xf32>
    %167 = arith.divf %165, %166 : vector<2x1x256xf32>
    %168 = vector.broadcast %167 : vector<2x1x256xf32> to vector<2x16x256xf32>
    %169 = arith.subf %162, %168 : vector<2x16x256xf32>
    %170 = arith.mulf %169, %169 : vector<2x16x256xf32>
    %cst_66 = arith.constant dense<0.000000e+00> : vector<2x256xf32>
    %171 = vector.multi_reduction <add>, %170, %cst_66 [1] : vector<2x16x256xf32> to vector<2x256xf32>
    %172 = vector.shape_cast %171 : vector<2x256xf32> to vector<2x1x256xf32>
    %cst_67 = arith.constant 1.600000e+01 : f32
    %173 = vector.broadcast %cst_67 : f32 to vector<2x1x256xf32>
    %174 = arith.divf %172, %173 : vector<2x1x256xf32>
    %cst_68 = arith.constant 9.99999993E-9 : f32
    %175 = vector.broadcast %cst_68 : f32 to vector<2x1x256xf32>
    %176 = arith.addf %174, %175 : vector<2x1x256xf32>
    %177 = math.rsqrt %176 : vector<2x1x256xf32>
    %178 = vector.broadcast %177 : vector<2x1x256xf32> to vector<2x16x256xf32>
    %179 = arith.mulf %169, %178 : vector<2x16x256xf32>
    %180 = vector.broadcast %163 : vector<2x1x256xf32> to vector<2x16x256xf32>
    %181 = arith.mulf %180, %179 : vector<2x16x256xf32>
    %182 = vector.shape_cast %14 : vector<2x256xf32> to vector<2x1x256xf32>
    %183 = vector.broadcast %182 : vector<2x1x256xf32> to vector<2x16x256xf32>
    %184 = arith.addf %181, %183 : vector<2x16x256xf32>
    %185 = vector.shape_cast %184 : vector<2x16x256xf32> to vector<32x256xf32>
    %186 = arith.truncf %185 : vector<32x256xf32> to vector<32x256xbf16>
    %c0_69 = arith.constant 0 : index
    %c0_70 = arith.constant 0 : index
    %187 = vector.load %arg6[%c0_69, %c0_70] : memref<256x128xbf16, #tpu.memory_space<vmem>>, vector<256x128xbf16>
    %cst_71 = arith.constant dense<0.000000e+00> : vector<32x128xf32>
    %188 = tpu.matmul %186, %187, %cst_71 {dimension_numbers = #tpu.dot_dimension_numbers<[1], [0], [0], [1], [0, 0, 1, 1], [], []>} : vector<32x256xbf16>, vector<256x128xbf16>, vector<32x128xf32> -> vector<32x128xf32>
    %189 = vector.broadcast %3 : vector<1x128xf32> to vector<32x128xf32>
    %190 = arith.addf %188, %189 : vector<32x128xf32>
    %c0_72 = arith.constant 0 : index
    %c0_73 = arith.constant 0 : index
    %191 = vector.load %arg8[%c0_72, %c0_73] : memref<32x128xf32, #tpu.memory_space<vmem>>, vector<32x128xf32>
    tpu.vector_store %arg8[%c0_72, %c0_73], %190 {strides = array<i32>} : memref<32x128xf32, #tpu.memory_space<vmem>>, vector<32x128xf32>,
    return
  }
}

</mosaic_0001>

<llo_original>
// kernel: synthesis_forward.1
$region0: #{synthesis_forward.1}
  #allocation0 [shape = 'u32[]', space=smem, size = 0x4, offset = 0x4, fixed_abs, tag = 'smem constant byte address 0x4 - core index']
  #allocation1 [shape = 'u32[72,128]{1,0:T(1,128)}', space=vmem, size = 0x9000, scoped, tag = 'internal scratch']
  #allocation2 [shape = 'bf16[32,2304]{1,0:T(8,128)(2,1)}', space=vmem, size = 0x24000, scoped, tag = 'scratch operand']
  %s0 = inlined_call_operand.hbm [shape: f32[16,256], index: 0, kind: input, shape index: {}]
  %s1 = inlined_call_operand.vmem [shape: f32[2,16,128], index: 1, kind: input, shape index: {}]
  %s2 = inlined_call_operand.vmem [shape: f32[16,256], index: 2, kind: input, shape index: {}]
  %s3 = inlined_call_operand.hbm [shape: bf16[256,1024], index: 3, kind: input, shape index: {}]
  %s4 = inlined_call_operand.hbm [shape: f32[1,1024], index: 4, kind: input, shape index: {}]
  %s5 = inlined_call_operand.hbm [shape: bf16[2304,256], index: 5, kind: input, shape index: {}]
  %s6 = inlined_call_operand.hbm [shape: bf16[256,128], index: 6, kind: input, shape index: {}]
  %s7 = inlined_call_operand.hbm [shape: f32[4,256], index: 7, kind: input, shape index: {}]
  %s8 = inlined_call_operand.vmem [shape: f32[32,128], index: 8, kind: output, shape index: {}]
  %s9 = sld [smem:[#allocation0]]
  $region66: #{synthesis_forward.1} parent=0
    _
  %s11 = ssub.s32 1, %s9
  %s12 = scalar_select 0, %s11, %s9
  $region1: #{synthesis_forward.1} parent=0
    #allocation3 [shape = 'u8[16384]{0}', space=vmem, size = 0x4000, scoped, tag = 'input window, operand 0, single buffered']
    #allocation4 [shape = 's32[1]{0}', space=sflag, size = 0x4, scoped, tag = 'scoped memory for synthesis_forward.1']
    #allocation5 [shape = 'u8[524288]{0}', space=vmem, size = 0x80000, scoped, tag = 'input window, operand 3, single buffered']
    #allocation6 [shape = 's32[1]{0}', space=sflag, size = 0x4, scoped, tag = 'scoped memory for synthesis_forward.1']
    #allocation7 [shape = 'u8[4096]{0}', space=vmem, size = 0x1000, scoped, tag = 'input window, operand 4, single buffered']
    #allocation8 [shape = 'u8[1179648]{0}', space=vmem, size = 0x120000, scoped, tag = 'input window, operand 5, single buffered']
    #allocation9 [shape = 's32[1]{0}', space=sflag, size = 0x4, scoped, tag = 'scoped memory for synthesis_forward.1']
    #allocation10 [shape = 'u8[65536]{0}', space=vmem, size = 0x10000, scoped, tag = 'input window, operand 6, single buffered']
    #allocation11 [shape = 'u8[4096]{0}', space=vmem, size = 0x1000, scoped, tag = 'input window, operand 7, single buffered']
    #allocation12 [shape = 's32[1]{0}', space=sflag, size = 0x4, scoped, tag = 'scoped memory for synthesis_forward.1']
    %13 = vsyncpa [#allocation4], 0
    %14 = vsyncpa [#allocation6], 0
    %15 = vsyncpa [#allocation9], 0
    %16 = vsyncpa [#allocation12], 0
    // Predicated region
    $region2: #{synthesis_forward.1} parent=1 // pred_check
      _
    $region3: #{synthesis_forward.1} parent=1 // pred_check_branch
      %18 = sbr.rel (0) target = $region5
    $region4: #{synthesis_forward.1} parent=1 // pred_region
      %20 = vsyncadd [#allocation4], 0
      %s21 = sshll.u32 %s0, 4
      %s22 = int_to_ptr.hbm [resolvable:$true] %s21
      %s23 = sshll.u32 [#allocation3], 4
      %s24 = int_to_ptr.vmem [resolvable:$true] %s23
      %29 = dma.hbm_to_vmem [thread:$0]  %s22, 512, %s24, [#allocation4], 256, 256, 16
    $region5: #{synthesis_forward.1} parent=1 // pred_fallthru
      _
    // Predicated region
    $region6: #{synthesis_forward.1} parent=1 // pred_check
      _
    $region7: #{synthesis_forward.1} parent=1 // pred_check_branch
      %31 = sbr.rel (0) target = $region9
    $region8: #{synthesis_forward.1} parent=1 // pred_region
      _
    $region9: #{synthesis_forward.1} parent=1 // pred_fallthru
      _
    // Predicated region
    $region10: #{synthesis_forward.1} parent=1 // pred_check
      _
    $region11: #{synthesis_forward.1} parent=1 // pred_check_branch
      %33 = sbr.rel (0) target = $region13
    $region12: #{synthesis_forward.1} parent=1 // pred_region
      _
    $region13: #{synthesis_forward.1} parent=1 // pred_fallthru
      _
    // Predicated region
    $region14: #{synthesis_forward.1} parent=1 // pred_check
      _
    $region15: #{synthesis_forward.1} parent=1 // pred_check_branch
      %35 = sbr.rel (0) target = $region17
    $region16: #{synthesis_forward.1} parent=1 // pred_region
      %37 = vsyncadd [#allocation6], 0
      %s38 = sshll.u32 %s3, 4
      %s39 = int_to_ptr.hbm [resolvable:$true] %s38
      %s40 = sshll.u32 [#allocation5], 4
      %s41 = int_to_ptr.vmem [resolvable:$true] %s40
      %46 = dma.hbm_to_vmem [thread:$0]  %s39, 16384, %s41, [#allocation6], 512, 512, 32
    $region17: #{synthesis_forward.1} parent=1 // pred_fallthru
      _
    // Predicated region
    $region18: #{synthesis_forward.1} parent=1 // pred_check
      _
    $region19: #{synthesis_forward.1} parent=1 // pred_check_branch
      %48 = sbr.rel (0) target = $region21
    $region20: #{synthesis_forward.1} parent=1 // pred_region
      %50 = vsyncadd [#allocation6], 0
      %s52 = sshll.u32 %s4, 4
      %s53 = int_to_ptr.hbm [resolvable:$true] %s52
      %s54 = sshll.u32 [#allocation7], 4
      %s55 = int_to_ptr.vmem [resolvable:$true] %s54
      %57 = dma.hbm_to_vmem [thread:$0]  %s53, 128, %s55, [#allocation6]
    $region21: #{synthesis_forward.1} parent=1 // pred_fallthru
      _
    // Predicated region
    $region22: #{synthesis_forward.1} parent=1 // pred_check
      _
    $region23: #{synthesis_forward.1} parent=1 // pred_check_branch
      %59 = sbr.rel (0) target = $region25
    $region24: #{synthesis_forward.1} parent=1 // pred_region
      %61 = vsyncadd [#allocation9], 0
      %s62 = sshll.u32 %s5, 4
      %s63 = int_to_ptr.hbm [resolvable:$true] %s62
      %s64 = sshll.u32 [#allocation8], 4
      %s65 = int_to_ptr.vmem [resolvable:$true] %s64
      %70 = dma.hbm_to_vmem [thread:$0]  %s63, 36864, %s65, [#allocation9], 128, 128, 8
    $region25: #{synthesis_forward.1} parent=1 // pred_fallthru
      _
    // Predicated region
    $region26: #{synthesis_forward.1} parent=1 // pred_check
      _
    $region27: #{synthesis_forward.1} parent=1 // pred_check_branch
      %72 = sbr.rel (0) target = $region29
    $region28: #{synthesis_forward.1} parent=1 // pred_region
      %74 = vsyncadd [#allocation9], 0
      %s75 = sshll.u32 %s6, 4
      %s76 = int_to_ptr.hbm [resolvable:$true] %s75
      %s77 = sshll.u32 [#allocation10], 4
      %s78 = int_to_ptr.vmem [resolvable:$true] %s77
      %83 = dma.hbm_to_vmem [thread:$0]  %s76, 2048, %s78, [#allocation9], 64, 64, 4
    $region29: #{synthesis_forward.1} parent=1 // pred_fallthru
      _
    // Predicated region
    $region30: #{synthesis_forward.1} parent=1 // pred_check
      _
    $region31: #{synthesis_forward.1} parent=1 // pred_check_branch
      %85 = sbr.rel (0) target = $region33
    $region32: #{synthesis_forward.1} parent=1 // pred_region
      %87 = vsyncadd [#allocation12], 0
      %s89 = sshll.u32 %s7, 4
      %s90 = int_to_ptr.hbm [resolvable:$true] %s89
      %s91 = sshll.u32 [#allocation11], 4
      %s92 = int_to_ptr.vmem [resolvable:$true] %s91
      %94 = dma.hbm_to_vmem [thread:$0]  %s90, 128, %s92, [#allocation12]
    $region33: #{synthesis_forward.1} parent=1 // pred_fallthru
      _
    // Predicated region
    $region34: #{synthesis_forward.1} parent=1 // pred_check
      _
    $region35: #{synthesis_forward.1} parent=1 // pred_check_branch
      %96 = sbr.rel (0) target = $region37
    $region36: #{synthesis_forward.1} parent=1 // pred_region
      %98 = dma.done [#allocation4], 512
    $region37: #{synthesis_forward.1} parent=1 // pred_fallthru
      _
    // Predicated region
    $region38: #{synthesis_forward.1} parent=1 // pred_check
      _
    $region39: #{synthesis_forward.1} parent=1 // pred_check_branch
      %100 = sbr.rel (0) target = $region41
    $region40: #{synthesis_forward.1} parent=1 // pred_region
      %102 = dma.done [#allocation6], 16384
    $region41: #{synthesis_forward.1} parent=1 // pred_fallthru
      _
    // Predicated region
    $region42: #{synthesis_forward.1} parent=1 // pred_check
      _
    $region43: #{synthesis_forward.1} parent=1 // pred_check_branch
      %104 = sbr.rel (0) target = $region45
    $region44: #{synthesis_forward.1} parent=1 // pred_region
      %106 = dma.done [#allocation6], 128
    $region45: #{synthesis_forward.1} parent=1 // pred_fallthru
      _
    // Predicated region
    $region46: #{synthesis_forward.1} parent=1 // pred_check
      _
    $region47: #{synthesis_forward.1} parent=1 // pred_check_branch
      %108 = sbr.rel (0) target = $region49
    $region48: #{synthesis_forward.1} parent=1 // pred_region
      %110 = dma.done [#allocation9], 36864
    $region49: #{synthesis_forward.1} parent=1 // pred_fallthru
      _
    // Predicated region
    $region50: #{synthesis_forward.1} parent=1 // pred_check
      _
    $region51: #{synthesis_forward.1} parent=1 // pred_check_branch
      %112 = sbr.rel (0) target = $region53
    $region52: #{synthesis_forward.1} parent=1 // pred_region
      %114 = dma.done [#allocation9], 2048
    $region53: #{synthesis_forward.1} parent=1 // pred_fallthru
      _
    // Predicated region
    $region54: #{synthesis_forward.1} parent=1 // pred_check
      _
    $region55: #{synthesis_forward.1} parent=1 // pred_check_branch
      %116 = sbr.rel (0) target = $region57
    $region56: #{synthesis_forward.1} parent=1 // pred_region
      %118 = dma.done [#allocation12], 128
    $region57: #{synthesis_forward.1} parent=1 // pred_fallthru
      _
    %v119 = vld [vmem:[#allocation11] ss:$4 sm:$0x3]
    %s120 = scalar_lea.vmem [#allocation11], 1
    %v121 = vld [vmem:[%s120] ss:$4 sm:$0x3]
    %s122 = scalar_lea.vmem [#allocation11], 2
    %v123 = vld [vmem:[%s122] ss:$4 sm:$0x3]
    %v124 = vld [vmem:[#allocation11 + $0x3] sm:$0x1]
    %v125 = vld [vmem:[%s2] sm:$0xff]
    %v126 = vld [vmem:[%s2 + $0x8] sm:$0xff]
    %v127 = vld [vmem:[%s2 + $0x10] sm:$0xff]
    %v128 = vld [vmem:[%s2 + $0x18] sm:$0xff]
    %v129 = vpack.c.bf16 %v127, %v125
    %v130 = vpack.c.bf16 %v128, %v126
    %v131 = vld [vmem:[#allocation5] sm:$0xff]
    %v132 = vld [vmem:[#allocation5 + $0x8] sm:$0xff]
    %v133 = vld [vmem:[#allocation5 + $0x10] sm:$0xff]
    %v134 = vld [vmem:[#allocation5 + $0x18] sm:$0xff]
    %v135 = vld [vmem:[#allocation5 + $0x20] sm:$0xff]
    %v136 = vld [vmem:[#allocation5 + $0x28] sm:$0xff]
    %v137 = vld [vmem:[#allocation5 + $0x30] sm:$0xff]
    %v138 = vld [vmem:[#allocation5 + $0x38] sm:$0xff]
    %v139 = vld [vmem:[#allocation5 + $0x40] sm:$0xff]
    %v140 = vld [vmem:[#allocation5 + $0x48] sm:$0xff]
    %v141 = vld [vmem:[#allocation5 + $0x50] sm:$0xff]
    %v142 = vld [vmem:[#allocation5 + $0x58] sm:$0xff]
    %v143 = vld [vmem:[#allocation5 + $0x60] sm:$0xff]
    %v144 = vld [vmem:[#allocation5 + $0x68] sm:$0xff]
    %v145 = vld [vmem:[#allocation5 + $0x70] sm:$0xff]
    %v146 = vld [vmem:[#allocation5 + $0x78] sm:$0xff]
    %v147 = vld [vmem:[#allocation5 + $0x80] sm:$0xff]
    %v148 = vld [vmem:[#allocation5 + $0x88] sm:$0xff]
    %v149 = vld [vmem:[#allocation5 + $0x90] sm:$0xff]
    %v150 = vld [vmem:[#allocation5 + $0x98] sm:$0xff]
    %v151 = vld [vmem:[#allocation5 + $0xa0] sm:$0xff]
    %v152 = vld [vmem:[#allocation5 + $0xa8] sm:$0xff]
    %v153 = vld [vmem:[#allocation5 + $0xb0] sm:$0xff]
    %v154 = vld [vmem:[#allocation5 + $0xb8] sm:$0xff]
    %v155 = vld [vmem:[#allocation5 + $0xc0] sm:$0xff]
    %v156 = vld [vmem:[#allocation5 + $0xc8] sm:$0xff]
    %v157 = vld [vmem:[#allocation5 + $0xd0] sm:$0xff]
    %v158 = vld [vmem:[#allocation5 + $0xd8] sm:$0xff]
    %v159 = vld [vmem:[#allocation5 + $0xe0] sm:$0xff]
    %v160 = vld [vmem:[#allocation5 + $0xe8] sm:$0xff]
    %v161 = vld [vmem:[#allocation5 + $0xf0] sm:$0xff]
    %v162 = vld [vmem:[#allocation5 + $0xf8] sm:$0xff]
    %v163 = vld [vmem:[#allocation5 + $0x100] sm:$0xff]
    %v164 = vld [vmem:[#allocation5 + $0x108] sm:$0xff]
    %v165 = vld [vmem:[#allocation5 + $0x110] sm:$0xff]
    %v166 = vld [vmem:[#allocation5 + $0x118] sm:$0xff]
    %v167 = vld [vmem:[#allocation5 + $0x120] sm:$0xff]
    %v168 = vld [vmem:[#allocation5 + $0x128] sm:$0xff]
    %v169 = vld [vmem:[#allocation5 + $0x130] sm:$0xff]
    %v170 = vld [vmem:[#allocation5 + $0x138] sm:$0xff]
    %v171 = vld [vmem:[#allocation5 + $0x140] sm:$0xff]
    %v172 = vld [vmem:[#allocation5 + $0x148] sm:$0xff]
    %v173 = vld [vmem:[#allocation5 + $0x150] sm:$0xff]
    %v174 = vld [vmem:[#allocation5 + $0x158] sm:$0xff]
    %v175 = vld [vmem:[#allocation5 + $0x160] sm:$0xff]
    %v176 = vld [vmem:[#allocation5 + $0x168] sm:$0xff]
    %v177 = vld [vmem:[#allocation5 + $0x170] sm:$0xff]
    %v178 = vld [vmem:[#allocation5 + $0x178] sm:$0xff]
    %v179 = vld [vmem:[#allocation5 + $0x180] sm:$0xff]
    %v180 = vld [vmem:[#allocation5 + $0x188] sm:$0xff]
    %v181 = vld [vmem:[#allocation5 + $0x190] sm:$0xff]
    %v182 = vld [vmem:[#allocation5 + $0x198] sm:$0xff]
    %v183 = vld [vmem:[#allocation5 + $0x1a0] sm:$0xff]
    %v184 = vld [vmem:[#allocation5 + $0x1a8] sm:$0xff]
    %v185 = vld [vmem:[#allocation5 + $0x1b0] sm:$0xff]
    %v186 = vld [vmem:[#allocation5 + $0x1b8] sm:$0xff]
    %v187 = vld [vmem:[#allocation5 + $0x1c0] sm:$0xff]
    %v188 = vld [vmem:[#allocation5 + $0x1c8] sm:$0xff]
    %v189 = vld [vmem:[#allocation5 + $0x1d0] sm:$0xff]
    %v190 = vld [vmem:[#allocation5 + $0x1d8] sm:$0xff]
    %v191 = vld [vmem:[#allocation5 + $0x1e0] sm:$0xff]
    %v192 = vld [vmem:[#allocation5 + $0x1e8] sm:$0xff]
    %v193 = vld [vmem:[#allocation5 + $0x1f0] sm:$0xff]
    %v194 = vld [vmem:[#allocation5 + $0x1f8] sm:$0xff]
    %v195 = vld [vmem:[#allocation5 + $0x200] sm:$0xff]
    %v196 = vld [vmem:[#allocation5 + $0x208] sm:$0xff]
    %v197 = vld [vmem:[#allocation5 + $0x210] sm:$0xff]
    %v198 = vld [vmem:[#allocation5 + $0x218] sm:$0xff]
    %v199 = vld [vmem:[#allocation5 + $0x220] sm:$0xff]
    %v200 = vld [vmem:[#allocation5 + $0x228] sm:$0xff]
    %v201 = vld [vmem:[#allocation5 + $0x230] sm:$0xff]
    %v202 = vld [vmem:[#allocation5 + $0x238] sm:$0xff]
    %v203 = vld [vmem:[#allocation5 + $0x240] sm:$0xff]
    %v204 = vld [vmem:[#allocation5 + $0x248] sm:$0xff]
    %v205 = vld [vmem:[#allocation5 + $0x250] sm:$0xff]
    %v206 = vld [vmem:[#allocation5 + $0x258] sm:$0xff]
    %v207 = vld [vmem:[#allocation5 + $0x260] sm:$0xff]
    %v208 = vld [vmem:[#allocation5 + $0x268] sm:$0xff]
    %v209 = vld [vmem:[#allocation5 + $0x270] sm:$0xff]
    %v210 = vld [vmem:[#allocation5 + $0x278] sm:$0xff]
    %v211 = vld [vmem:[#allocation5 + $0x280] sm:$0xff]
    %v212 = vld [vmem:[#allocation5 + $0x288] sm:$0xff]
    %v213 = vld [vmem:[#allocation5 + $0x290] sm:$0xff]
    %v214 = vld [vmem:[#allocation5 + $0x298] sm:$0xff]
    %v215 = vld [vmem:[#allocation5 + $0x2a0] sm:$0xff]
    %v216 = vld [vmem:[#allocation5 + $0x2a8] sm:$0xff]
    %v217 = vld [vmem:[#allocation5 + $0x2b0] sm:$0xff]
    %v218 = vld [vmem:[#allocation5 + $0x2b8] sm:$0xff]
    %v219 = vld [vmem:[#allocation5 + $0x2c0] sm:$0xff]
    %v220 = vld [vmem:[#allocation5 + $0x2c8] sm:$0xff]
    %v221 = vld [vmem:[#allocation5 + $0x2d0] sm:$0xff]
    %v222 = vld [vmem:[#allocation5 + $0x2d8] sm:$0xff]
    %v223 = vld [vmem:[#allocation5 + $0x2e0] sm:$0xff]
    %v224 = vld [vmem:[#allocation5 + $0x2e8] sm:$0xff]
    %v225 = vld [vmem:[#allocation5 + $0x2f0] sm:$0xff]
    %v226 = vld [vmem:[#allocation5 + $0x2f8] sm:$0xff]
    %v227 = vld [vmem:[#allocation5 + $0x300] sm:$0xff]
    %v228 = vld [vmem:[#allocation5 + $0x308] sm:$0xff]
    %v229 = vld [vmem:[#allocation5 + $0x310] sm:$0xff]
    %v230 = vld [vmem:[#allocation5 + $0x318] sm:$0xff]
    %v231 = vld [vmem:[#allocation5 + $0x320] sm:$0xff]
    %v232 = vld [vmem:[#allocation5 + $0x328] sm:$0xff]
    %v233 = vld [vmem:[#allocation5 + $0x330] sm:$0xff]
    %v234 = vld [vmem:[#allocation5 + $0x338] sm:$0xff]
    %v235 = vld [vmem:[#allocation5 + $0x340] sm:$0xff]
    %v236 = vld [vmem:[#allocation5 + $0x348] sm:$0xff]
    %v237 = vld [vmem:[#allocation5 + $0x350] sm:$0xff]
    %v238 = vld [vmem:[#allocation5 + $0x358] sm:$0xff]
    %v239 = vld [vmem:[#allocation5 + $0x360] sm:$0xff]
    %v240 = vld [vmem:[#allocation5 + $0x368] sm:$0xff]
    %v241 = vld [vmem:[#allocation5 + $0x370] sm:$0xff]
    %v242 = vld [vmem:[#allocation5 + $0x378] sm:$0xff]
    %v243 = vld [vmem:[#allocation5 + $0x380] sm:$0xff]
    %v244 = vld [vmem:[#allocation5 + $0x388] sm:$0xff]
    %v245 = vld [vmem:[#allocation5 + $0x390] sm:$0xff]
    %v246 = vld [vmem:[#allocation5 + $0x398] sm:$0xff]
    %v247 = vld [vmem:[#allocation5 + $0x3a0] sm:$0xff]
    %v248 = vld [vmem:[#allocation5 + $0x3a8] sm:$0xff]
    %v249 = vld [vmem:[#allocation5 + $0x3b0] sm:$0xff]
    %v250 = vld [vmem:[#allocation5 + $0x3b8] sm:$0xff]
    %v251 = vld [vmem:[#allocation5 + $0x3c0] sm:$0xff]
    %v252 = vld [vmem:[#allocation5 + $0x3c8] sm:$0xff]
    %v253 = vld [vmem:[#allocation5 + $0x3d0] sm:$0xff]
    %v254 = vld [vmem:[#allocation5 + $0x3d8] sm:$0xff]
    %v255 = vld [vmem:[#allocation5 + $0x3e0] sm:$0xff]
    %v256 = vld [vmem:[#allocation5 + $0x3e8] sm:$0xff]
    %v257 = vld [vmem:[#allocation5 + $0x3f0] sm:$0xff]
    %v258 = vld [vmem:[#allocation5 + $0x3f8] sm:$0xff]
    %v259 = vld [vmem:[#allocation7] sm:$0xff]
    %v261 = vperm.slane %v259, 0
    %v262 = vperm.slane %v259, 1
    %v263 = vperm.slane %v259, 2
    %v264 = vperm.slane %v259, 3
    %v265 = vperm.slane %v259, 4
    %v266 = vperm.slane %v259, 5
    %v267 = vperm.slane %v259, 6
    %v268 = vperm.slane %v259, 7
    %v405 = vunpack.c.l.b16 %v131
    %v406 = vunpack.c.h.b16 %v131
    %v407 = vunpack.c.l.b16 %v132
    %v408 = vunpack.c.h.b16 %v132
    %v409 = vunpack.c.l.b16 %v133
    %v410 = vunpack.c.h.b16 %v133
    %v411 = vunpack.c.l.b16 %v134
    %v412 = vunpack.c.h.b16 %v134
    %v413 = vunpack.c.l.b16 %v135
    %v414 = vunpack.c.h.b16 %v135
    %v415 = vunpack.c.l.b16 %v136
    %v416 = vunpack.c.h.b16 %v136
    %v417 = vunpack.c.l.b16 %v137
    %v418 = vunpack.c.h.b16 %v137
    %v419 = vunpack.c.l.b16 %v138
    %v420 = vunpack.c.h.b16 %v138
    %v421 = vunpack.c.l.b16 %v139
    %v422 = vunpack.c.h.b16 %v139
    %v423 = vunpack.c.l.b16 %v140
    %v424 = vunpack.c.h.b16 %v140
    %v425 = vunpack.c.l.b16 %v141
    %v426 = vunpack.c.h.b16 %v141
    %v427 = vunpack.c.l.b16 %v142
    %v428 = vunpack.c.h.b16 %v142
    %v429 = vunpack.c.l.b16 %v143
    %v430 = vunpack.c.h.b16 %v143
    %v431 = vunpack.c.l.b16 %v144
    %v432 = vunpack.c.h.b16 %v144
    %v433 = vunpack.c.l.b16 %v145
    %v434 = vunpack.c.h.b16 %v145
    %v435 = vunpack.c.l.b16 %v146
    %v436 = vunpack.c.h.b16 %v146
    %v437 = vunpack.c.l.b16 %v147
    %v438 = vunpack.c.h.b16 %v147
    %v439 = vunpack.c.l.b16 %v148
    %v440 = vunpack.c.h.b16 %v148
    %v441 = vunpack.c.l.b16 %v149
    %v442 = vunpack.c.h.b16 %v149
    %v443 = vunpack.c.l.b16 %v150
    %v444 = vunpack.c.h.b16 %v150
    %v445 = vunpack.c.l.b16 %v151
    %v446 = vunpack.c.h.b16 %v151
    %v447 = vunpack.c.l.b16 %v152
    %v448 = vunpack.c.h.b16 %v152
    %v449 = vunpack.c.l.b16 %v153
    %v450 = vunpack.c.h.b16 %v153
    %v451 = vunpack.c.l.b16 %v154
    %v452 = vunpack.c.h.b16 %v154
    %v453 = vunpack.c.l.b16 %v155
    %v454 = vunpack.c.h.b16 %v155
    %v455 = vunpack.c.l.b16 %v156
    %v456 = vunpack.c.h.b16 %v156
    %v457 = vunpack.c.l.b16 %v157
    %v458 = vunpack.c.h.b16 %v157
    %v459 = vunpack.c.l.b16 %v158
    %v460 = vunpack.c.h.b16 %v158
    %v461 = vunpack.c.l.b16 %v159
    %v462 = vunpack.c.h.b16 %v159
    %v463 = vunpack.c.l.b16 %v160
    %v464 = vunpack.c.h.b16 %v160
    %v465 = vunpack.c.l.b16 %v161
    %v466 = vunpack.c.h.b16 %v161
    %v467 = vunpack.c.l.b16 %v162
    %v468 = vunpack.c.h.b16 %v162
    %v469 = vunpack.c.l.b16 %v163
    %v470 = vunpack.c.h.b16 %v163
    %v471 = vunpack.c.l.b16 %v164
    %v472 = vunpack.c.h.b16 %v164
    %v473 = vunpack.c.l.b16 %v165
    %v474 = vunpack.c.h.b16 %v165
    %v475 = vunpack.c.l.b16 %v166
    %v476 = vunpack.c.h.b16 %v166
    %v477 = vunpack.c.l.b16 %v167
    %v478 = vunpack.c.h.b16 %v167
    %v479 = vunpack.c.l.b16 %v168
    %v480 = vunpack.c.h.b16 %v168
    %v481 = vunpack.c.l.b16 %v169
    %v482 = vunpack.c.h.b16 %v169
    %v483 = vunpack.c.l.b16 %v170
    %v484 = vunpack.c.h.b16 %v170
    %v485 = vunpack.c.l.b16 %v171
    %v486 = vunpack.c.h.b16 %v171
    %v487 = vunpack.c.l.b16 %v172
    %v488 = vunpack.c.h.b16 %v172
    %v489 = vunpack.c.l.b16 %v173
    %v490 = vunpack.c.h.b16 %v173
    %v491 = vunpack.c.l.b16 %v174
    %v492 = vunpack.c.h.b16 %v174
    %v493 = vunpack.c.l.b16 %v175
    %v494 = vunpack.c.h.b16 %v175
    %v495 = vunpack.c.l.b16 %v176
    %v496 = vunpack.c.h.b16 %v176
    %v497 = vunpack.c.l.b16 %v177
    %v498 = vunpack.c.h.b16 %v177
    %v499 = vunpack.c.l.b16 %v178
    %v500 = vunpack.c.h.b16 %v178
    %v501 = vunpack.c.l.b16 %v179
    %v502 = vunpack.c.h.b16 %v179
    %v503 = vunpack.c.l.b16 %v180
    %v504 = vunpack.c.h.b16 %v180
    %v505 = vunpack.c.l.b16 %v181
    %v506 = vunpack.c.h.b16 %v181
    %v507 = vunpack.c.l.b16 %v182
    %v508 = vunpack.c.h.b16 %v182
    %v509 = vunpack.c.l.b16 %v183
    %v510 = vunpack.c.h.b16 %v183
    %v511 = vunpack.c.l.b16 %v184
    %v512 = vunpack.c.h.b16 %v184
    %v513 = vunpack.c.l.b16 %v185
    %v514 = vunpack.c.h.b16 %v185
    %v515 = vunpack.c.l.b16 %v186
    %v516 = vunpack.c.h.b16 %v186
    %v517 = vunpack.c.l.b16 %v187
    %v518 = vunpack.c.h.b16 %v187
    %v519 = vunpack.c.l.b16 %v188
    %v520 = vunpack.c.h.b16 %v188
    %v521 = vunpack.c.l.b16 %v189
    %v522 = vunpack.c.h.b16 %v189
    %v523 = vunpack.c.l.b16 %v190
    %v524 = vunpack.c.h.b16 %v190
    %v525 = vunpack.c.l.b16 %v191
    %v526 = vunpack.c.h.b16 %v191
    %v527 = vunpack.c.l.b16 %v192
    %v528 = vunpack.c.h.b16 %v192
    %v529 = vunpack.c.l.b16 %v193
    %v530 = vunpack.c.h.b16 %v193
    %v531 = vunpack.c.l.b16 %v194
    %v532 = vunpack.c.h.b16 %v194
    %v533 = vunpack.c.l.b16 %v195
    %v534 = vunpack.c.h.b16 %v195
    %v535 = vunpack.c.l.b16 %v196
    %v536 = vunpack.c.h.b16 %v196
    %v537 = vunpack.c.l.b16 %v197
    %v538 = vunpack.c.h.b16 %v197
    %v539 = vunpack.c.l.b16 %v198
    %v540 = vunpack.c.h.b16 %v198
    %v541 = vunpack.c.l.b16 %v199
    %v542 = vunpack.c.h.b16 %v199
    %v543 = vunpack.c.l.b16 %v200
    %v544 = vunpack.c.h.b16 %v200
    %v545 = vunpack.c.l.b16 %v201
    %v546 = vunpack.c.h.b16 %v201
    %v547 = vunpack.c.l.b16 %v202
    %v548 = vunpack.c.h.b16 %v202
    %v549 = vunpack.c.l.b16 %v203
    %v550 = vunpack.c.h.b16 %v203
    %v551 = vunpack.c.l.b16 %v204
    %v552 = vunpack.c.h.b16 %v204
    %v553 = vunpack.c.l.b16 %v205
    %v554 = vunpack.c.h.b16 %v205
    %v555 = vunpack.c.l.b16 %v206
    %v556 = vunpack.c.h.b16 %v206
    %v557 = vunpack.c.l.b16 %v207
    %v558 = vunpack.c.h.b16 %v207
    %v559 = vunpack.c.l.b16 %v208
    %v560 = vunpack.c.h.b16 %v208
    %v561 = vunpack.c.l.b16 %v209
    %v562 = vunpack.c.h.b16 %v209
    %v563 = vunpack.c.l.b16 %v210
    %v564 = vunpack.c.h.b16 %v210
    %v565 = vunpack.c.l.b16 %v211
    %v566 = vunpack.c.h.b16 %v211
    %v567 = vunpack.c.l.b16 %v212
    %v568 = vunpack.c.h.b16 %v212
    %v569 = vunpack.c.l.b16 %v213
    %v570 = vunpack.c.h.b16 %v213
    %v571 = vunpack.c.l.b16 %v214
    %v572 = vunpack.c.h.b16 %v214
    %v573 = vunpack.c.l.b16 %v215
    %v574 = vunpack.c.h.b16 %v215
    %v575 = vunpack.c.l.b16 %v216
    %v576 = vunpack.c.h.b16 %v216
    %v577 = vunpack.c.l.b16 %v217
    %v578 = vunpack.c.h.b16 %v217
    %v579 = vunpack.c.l.b16 %v218
    %v580 = vunpack.c.h.b16 %v218
    %v581 = vunpack.c.l.b16 %v219
    %v582 = vunpack.c.h.b16 %v219
    %v583 = vunpack.c.l.b16 %v220
    %v584 = vunpack.c.h.b16 %v220
    %v585 = vunpack.c.l.b16 %v221
    %v586 = vunpack.c.h.b16 %v221
    %v587 = vunpack.c.l.b16 %v222
    %v588 = vunpack.c.h.b16 %v222
    %v589 = vunpack.c.l.b16 %v223
    %v590 = vunpack.c.h.b16 %v223
    %v591 = vunpack.c.l.b16 %v224
    %v592 = vunpack.c.h.b16 %v224
    %v593 = vunpack.c.l.b16 %v225
    %v594 = vunpack.c.h.b16 %v225
    %v595 = vunpack.c.l.b16 %v226
    %v596 = vunpack.c.h.b16 %v226
    %v597 = vunpack.c.l.b16 %v227
    %v598 = vunpack.c.h.b16 %v227
    %v599 = vunpack.c.l.b16 %v228
    %v600 = vunpack.c.h.b16 %v228
    %v601 = vunpack.c.l.b16 %v229
    %v602 = vunpack.c.h.b16 %v229
    %v603 = vunpack.c.l.b16 %v230
    %v604 = vunpack.c.h.b16 %v230
    %v605 = vunpack.c.l.b16 %v231
    %v606 = vunpack.c.h.b16 %v231
    %v607 = vunpack.c.l.b16 %v232
    %v608 = vunpack.c.h.b16 %v232
    %v609 = vunpack.c.l.b16 %v233
    %v610 = vunpack.c.h.b16 %v233
    %v611 = vunpack.c.l.b16 %v234
    %v612 = vunpack.c.h.b16 %v234
    %v613 = vunpack.c.l.b16 %v235
    %v614 = vunpack.c.h.b16 %v235
    %v615 = vunpack.c.l.b16 %v236
    %v616 = vunpack.c.h.b16 %v236
    %v617 = vunpack.c.l.b16 %v237
    %v618 = vunpack.c.h.b16 %v237
    %v619 = vunpack.c.l.b16 %v238
    %v620 = vunpack.c.h.b16 %v238
    %v621 = vunpack.c.l.b16 %v239
    %v622 = vunpack.c.h.b16 %v239
    %v623 = vunpack.c.l.b16 %v240
    %v624 = vunpack.c.h.b16 %v240
    %v625 = vunpack.c.l.b16 %v241
    %v626 = vunpack.c.h.b16 %v241
    %v627 = vunpack.c.l.b16 %v242
    %v628 = vunpack.c.h.b16 %v242
    %v629 = vunpack.c.l.b16 %v243
    %v630 = vunpack.c.h.b16 %v243
    %v631 = vunpack.c.l.b16 %v244
    %v632 = vunpack.c.h.b16 %v244
    %v633 = vunpack.c.l.b16 %v245
    %v634 = vunpack.c.h.b16 %v245
    %v635 = vunpack.c.l.b16 %v246
    %v636 = vunpack.c.h.b16 %v246
    %v637 = vunpack.c.l.b16 %v247
    %v638 = vunpack.c.h.b16 %v247
    %v639 = vunpack.c.l.b16 %v248
    %v640 = vunpack.c.h.b16 %v248
    %v641 = vunpack.c.l.b16 %v249
    %v642 = vunpack.c.h.b16 %v249
    %v643 = vunpack.c.l.b16 %v250
    %v644 = vunpack.c.h.b16 %v250
    %v645 = vunpack.c.l.b16 %v251
    %v646 = vunpack.c.h.b16 %v251
    %v647 = vunpack.c.l.b16 %v252
    %v648 = vunpack.c.h.b16 %v252
    %v649 = vunpack.c.l.b16 %v253
    %v650 = vunpack.c.h.b16 %v253
    %v651 = vunpack.c.l.b16 %v254
    %v652 = vunpack.c.h.b16 %v254
    %v653 = vunpack.c.l.b16 %v255
    %v654 = vunpack.c.h.b16 %v255
    %v655 = vunpack.c.l.b16 %v256
    %v656 = vunpack.c.h.b16 %v256
    %v657 = vunpack.c.l.b16 %v257
    %v658 = vunpack.c.h.b16 %v257
    %v659 = vunpack.c.l.b16 %v258
    %v660 = vunpack.c.h.b16 %v258
    %v661 = vpack.c.b16 %v413, %v405
    %v662 = vpack.c.b16 %v414, %v406
    %v663 = vpack.c.b16 %v415, %v407
    %v664 = vpack.c.b16 %v416, %v408
    %v665 = vpack.c.b16 %v417, %v409
    %v666 = vpack.c.b16 %v418, %v410
    %v667 = vpack.c.b16 %v419, %v411
    %v668 = vpack.c.b16 %v420, %v412
    %v669 = vpack.c.b16 %v429, %v421
    %v670 = vpack.c.b16 %v430, %v422
    %v671 = vpack.c.b16 %v431, %v423
    %v672 = vpack.c.b16 %v432, %v424
    %v673 = vpack.c.b16 %v433, %v425
    %v674 = vpack.c.b16 %v434, %v426
    %v675 = vpack.c.b16 %v435, %v427
    %v676 = vpack.c.b16 %v436, %v428
    %v677 = vpack.c.b16 %v445, %v437
    %v678 = vpack.c.b16 %v446, %v438
    %v679 = vpack.c.b16 %v447, %v439
    %v680 = vpack.c.b16 %v448, %v440
    %v681 = vpack.c.b16 %v449, %v441
    %v682 = vpack.c.b16 %v450, %v442
    %v683 = vpack.c.b16 %v451, %v443
    %v684 = vpack.c.b16 %v452, %v444
    %v685 = vpack.c.b16 %v461, %v453
    %v686 = vpack.c.b16 %v462, %v454
    %v687 = vpack.c.b16 %v463, %v455
    %v688 = vpack.c.b16 %v464, %v456
    %v689 = vpack.c.b16 %v465, %v457
    %v690 = vpack.c.b16 %v466, %v458
    %v691 = vpack.c.b16 %v467, %v459
    %v692 = vpack.c.b16 %v468, %v460
    %v693 = vpack.c.b16 %v477, %v469
    %v694 = vpack.c.b16 %v478, %v470
    %v695 = vpack.c.b16 %v479, %v471
    %v696 = vpack.c.b16 %v480, %v472
    %v697 = vpack.c.b16 %v481, %v473
    %v698 = vpack.c.b16 %v482, %v474
    %v699 = vpack.c.b16 %v483, %v475
    %v700 = vpack.c.b16 %v484, %v476
    %v701 = vpack.c.b16 %v493, %v485
    %v702 = vpack.c.b16 %v494, %v486
    %v703 = vpack.c.b16 %v495, %v487
    %v704 = vpack.c.b16 %v496, %v488
    %v705 = vpack.c.b16 %v497, %v489
    %v706 = vpack.c.b16 %v498, %v490
    %v707 = vpack.c.b16 %v499, %v491
    %v708 = vpack.c.b16 %v500, %v492
    %v709 = vpack.c.b16 %v509, %v501
    %v710 = vpack.c.b16 %v510, %v502
    %v711 = vpack.c.b16 %v511, %v503
    %v712 = vpack.c.b16 %v512, %v504
    %v713 = vpack.c.b16 %v513, %v505
    %v714 = vpack.c.b16 %v514, %v506
    %v715 = vpack.c.b16 %v515, %v507
    %v716 = vpack.c.b16 %v516, %v508
    %v717 = vpack.c.b16 %v525, %v517
    %v718 = vpack.c.b16 %v526, %v518
    %v719 = vpack.c.b16 %v527, %v519
    %v720 = vpack.c.b16 %v528, %v520
    %v721 = vpack.c.b16 %v529, %v521
    %v722 = vpack.c.b16 %v530, %v522
    %v723 = vpack.c.b16 %v531, %v523
    %v724 = vpack.c.b16 %v532, %v524
    %v725 = vpack.c.b16 %v541, %v533
    %v726 = vpack.c.b16 %v542, %v534
    %v727 = vpack.c.b16 %v543, %v535
    %v728 = vpack.c.b16 %v544, %v536
    %v729 = vpack.c.b16 %v545, %v537
    %v730 = vpack.c.b16 %v546, %v538
    %v731 = vpack.c.b16 %v547, %v539
    %v732 = vpack.c.b16 %v548, %v540
    %v733 = vpack.c.b16 %v557, %v549
    %v734 = vpack.c.b16 %v558, %v550
    %v735 = vpack.c.b16 %v559, %v551
    %v736 = vpack.c.b16 %v560, %v552
    %v737 = vpack.c.b16 %v561, %v553
    %v738 = vpack.c.b16 %v562, %v554
    %v739 = vpack.c.b16 %v563, %v555
    %v740 = vpack.c.b16 %v564, %v556
    %v741 = vpack.c.b16 %v573, %v565
    %v742 = vpack.c.b16 %v574, %v566
    %v743 = vpack.c.b16 %v575, %v567
    %v744 = vpack.c.b16 %v576, %v568
    %v745 = vpack.c.b16 %v577, %v569
    %v746 = vpack.c.b16 %v578, %v570
    %v747 = vpack.c.b16 %v579, %v571
    %v748 = vpack.c.b16 %v580, %v572
    %v749 = vpack.c.b16 %v589, %v581
    %v750 = vpack.c.b16 %v590, %v582
    %v751 = vpack.c.b16 %v591, %v583
    %v752 = vpack.c.b16 %v592, %v584
    %v753 = vpack.c.b16 %v593, %v585
    %v754 = vpack.c.b16 %v594, %v586
    %v755 = vpack.c.b16 %v595, %v587
    %v756 = vpack.c.b16 %v596, %v588
    %v757 = vpack.c.b16 %v605, %v597
    %v758 = vpack.c.b16 %v606, %v598
    %v759 = vpack.c.b16 %v607, %v599
    %v760 = vpack.c.b16 %v608, %v600
    %v761 = vpack.c.b16 %v609, %v601
    %v762 = vpack.c.b16 %v610, %v602
    %v763 = vpack.c.b16 %v611, %v603
    %v764 = vpack.c.b16 %v612, %v604
    %v765 = vpack.c.b16 %v621, %v613
    %v766 = vpack.c.b16 %v622, %v614
    %v767 = vpack.c.b16 %v623, %v615
    %v768 = vpack.c.b16 %v624, %v616
    %v769 = vpack.c.b16 %v625, %v617
    %v770 = vpack.c.b16 %v626, %v618
    %v771 = vpack.c.b16 %v627, %v619
    %v772 = vpack.c.b16 %v628, %v620
    %v773 = vpack.c.b16 %v637, %v629
    %v774 = vpack.c.b16 %v638, %v630
    %v775 = vpack.c.b16 %v639, %v631
    %v776 = vpack.c.b16 %v640, %v632
    %v777 = vpack.c.b16 %v641, %v633
    %v778 = vpack.c.b16 %v642, %v634
    %v779 = vpack.c.b16 %v643, %v635
    %v780 = vpack.c.b16 %v644, %v636
    %v781 = vpack.c.b16 %v653, %v645
    %v782 = vpack.c.b16 %v654, %v646
    %v783 = vpack.c.b16 %v655, %v647
    %v784 = vpack.c.b16 %v656, %v648
    %v785 = vpack.c.b16 %v657, %v649
    %v786 = vpack.c.b16 %v658, %v650
    %v787 = vpack.c.b16 %v659, %v651
    %v788 = vpack.c.b16 %v660, %v652
    %917 = vmatpush.bf16.msra.mxu0 %v717
    %918 = vmatpush.bf16.msra.mxu0 %v709
    %919 = vmatpush.bf16.msra.mxu0 %v701
    %920 = vmatpush.bf16.msra.mxu0 %v693
    %921 = vmatpush.bf16.msra.mxu0 %v685
    %922 = vmatpush.bf16.msra.mxu0 %v677
    %923 = vmatpush.bf16.msra.mxu0 %v669
    %924 = vmatpush.bf16.msra.mxu0 %v661
    %925 = vmatmul.bf16.gmra.mxu0 %v129
    %v926 = vpop.f32.mrf.mxu0
    %v927 = vadd.f32 %v261, %v926
    %v928 = vpop.f32.mrf.mxu0
    %929 = vdwg.mxu0
    %930 = vmatpush.bf16.msra.mxu0 %v781
    %931 = vmatpush.bf16.msra.mxu0 %v773
    %932 = vmatpush.bf16.msra.mxu0 %v765
    %933 = vmatpush.bf16.msra.mxu0 %v757
    %934 = vmatpush.bf16.msra.mxu0 %v749
    %935 = vmatpush.bf16.msra.mxu0 %v741
    %936 = vmatpush.bf16.msra.mxu0 %v733
    %937 = vmatpush.bf16.msra.mxu0 %v725
    %938 = vmatmul.bf16.gmra.mxu0 %v130
    %v939 = vpop.f32.mrf.mxu0
    %v940 = vadd.f32 %v927, %v939
    %v941 = vpop.f32.mrf.mxu0
    %942 = vdwg.mxu0
    %943 = vmatpush.bf16.msra.mxu0 %v718
    %944 = vmatpush.bf16.msra.mxu0 %v710
    %945 = vmatpush.bf16.msra.mxu0 %v702
    %946 = vmatpush.bf16.msra.mxu0 %v694
    %947 = vmatpush.bf16.msra.mxu0 %v686
    %948 = vmatpush.bf16.msra.mxu0 %v678
    %949 = vmatpush.bf16.msra.mxu0 %v670
    %950 = vmatpush.bf16.msra.mxu0 %v662
    %951 = vmatmul.bf16.gmra.mxu0 %v129
    %v952 = vpop.f32.mrf.mxu0
    %v953 = vadd.f32 %v262, %v952
    %v954 = vpop.f32.mrf.mxu0
    %955 = vdwg.mxu0
    %956 = vmatpush.bf16.msra.mxu0 %v782
    %957 = vmatpush.bf16.msra.mxu0 %v774
    %958 = vmatpush.bf16.msra.mxu0 %v766
    %959 = vmatpush.bf16.msra.mxu0 %v758
    %960 = vmatpush.bf16.msra.mxu0 %v750
    %961 = vmatpush.bf16.msra.mxu0 %v742
    %962 = vmatpush.bf16.msra.mxu0 %v734
    %963 = vmatpush.bf16.msra.mxu0 %v726
    %964 = vmatmul.bf16.gmra.mxu0 %v130
    %v965 = vpop.f32.mrf.mxu0
    %v966 = vadd.f32 %v953, %v965
    %v967 = vpop.f32.mrf.mxu0
    %968 = vdwg.mxu0
    %969 = vmatpush.bf16.msra.mxu0 %v719
    %970 = vmatpush.bf16.msra.mxu0 %v711
    %971 = vmatpush.bf16.msra.mxu0 %v703
    %972 = vmatpush.bf16.msra.mxu0 %v695
    %973 = vmatpush.bf16.msra.mxu0 %v687
    %974 = vmatpush.bf16.msra.mxu0 %v679
    %975 = vmatpush.bf16.msra.mxu0 %v671
    %976 = vmatpush.bf16.msra.mxu0 %v663
    %977 = vmatmul.bf16.gmra.mxu0 %v129
    %v978 = vpop.f32.mrf.mxu0
    %v979 = vadd.f32 %v263, %v978
    %v980 = vpop.f32.mrf.mxu0
    %981 = vdwg.mxu0
    %982 = vmatpush.bf16.msra.mxu0 %v783
    %983 = vmatpush.bf16.msra.mxu0 %v775
    %984 = vmatpush.bf16.msra.mxu0 %v767
    %985 = vmatpush.bf16.msra.mxu0 %v759
    %986 = vmatpush.bf16.msra.mxu0 %v751
    %987 = vmatpush.bf16.msra.mxu0 %v743
    %988 = vmatpush.bf16.msra.mxu0 %v735
    %989 = vmatpush.bf16.msra.mxu0 %v727
    %990 = vmatmul.bf16.gmra.mxu0 %v130
    %v991 = vpop.f32.mrf.mxu0
    %v992 = vadd.f32 %v979, %v991
    %v993 = vpop.f32.mrf.mxu0
    %994 = vdwg.mxu0
    %995 = vmatpush.bf16.msra.mxu0 %v720
    %996 = vmatpush.bf16.msra.mxu0 %v712
    %997 = vmatpush.bf16.msra.mxu0 %v704
    %998 = vmatpush.bf16.msra.mxu0 %v696
    %999 = vmatpush.bf16.msra.mxu0 %v688
    %1000 = vmatpush.bf16.msra.mxu0 %v680
    %1001 = vmatpush.bf16.msra.mxu0 %v672
    %1002 = vmatpush.bf16.msra.mxu0 %v664
    %1003 = vmatmul.bf16.gmra.mxu0 %v129
    %v1004 = vpop.f32.mrf.mxu0
    %v1005 = vadd.f32 %v264, %v1004
    %v1006 = vpop.f32.mrf.mxu0
    %1007 = vdwg.mxu0
    %1008 = vmatpush.bf16.msra.mxu0 %v784
    %1009 = vmatpush.bf16.msra.mxu0 %v776
    %1010 = vmatpush.bf16.msra.mxu0 %v768
    %1011 = vmatpush.bf16.msra.mxu0 %v760
    %1012 = vmatpush.bf16.msra.mxu0 %v752
    %1013 = vmatpush.bf16.msra.mxu0 %v744
    %1014 = vmatpush.bf16.msra.mxu0 %v736
    %1015 = vmatpush.bf16.msra.mxu0 %v728
    %1016 = vmatmul.bf16.gmra.mxu0 %v130
    %v1017 = vpop.f32.mrf.mxu0
    %v1018 = vadd.f32 %v1005, %v1017
    %v1019 = vpop.f32.mrf.mxu0
    %1020 = vdwg.mxu0
    %1021 = vmatpush.bf16.msra.mxu0 %v721
    %1022 = vmatpush.bf16.msra.mxu0 %v713
    %1023 = vmatpush.bf16.msra.mxu0 %v705
    %1024 = vmatpush.bf16.msra.mxu0 %v697
    %1025 = vmatpush.bf16.msra.mxu0 %v689
    %1026 = vmatpush.bf16.msra.mxu0 %v681
    %1027 = vmatpush.bf16.msra.mxu0 %v673
    %1028 = vmatpush.bf16.msra.mxu0 %v665
    %1029 = vmatmul.bf16.gmra.mxu0 %v129
    %v1030 = vpop.f32.mrf.mxu0
    %v1031 = vpop.f32.mrf.mxu0
    %v1032 = vadd.f32 %v265, %v1031
    %1033 = vdwg.mxu0
    %1034 = vmatpush.bf16.msra.mxu0 %v785
    %1035 = vmatpush.bf16.msra.mxu0 %v777
    %1036 = vmatpush.bf16.msra.mxu0 %v769
    %1037 = vmatpush.bf16.msra.mxu0 %v761
    %1038 = vmatpush.bf16.msra.mxu0 %v753
    %1039 = vmatpush.bf16.msra.mxu0 %v745
    %1040 = vmatpush.bf16.msra.mxu0 %v737
    %1041 = vmatpush.bf16.msra.mxu0 %v729
    %1042 = vmatmul.bf16.gmra.mxu0 %v130
    %v1043 = vpop.f32.mrf.mxu0
    %v1044 = vpop.f32.mrf.mxu0
    %v1045 = vadd.f32 %v1032, %v1044
    %1046 = vdwg.mxu0
    %1047 = vmatpush.bf16.msra.mxu0 %v722
    %1048 = vmatpush.bf16.msra.mxu0 %v714
    %1049 = vmatpush.bf16.msra.mxu0 %v706
    %1050 = vmatpush.bf16.msra.mxu0 %v698
    %1051 = vmatpush.bf16.msra.mxu0 %v690
    %1052 = vmatpush.bf16.msra.mxu0 %v682
    %1053 = vmatpush.bf16.msra.mxu0 %v674
    %1054 = vmatpush.bf16.msra.mxu0 %v666
    %1055 = vmatmul.bf16.gmra.mxu0 %v129
    %v1056 = vpop.f32.mrf.mxu0
    %v1057 = vpop.f32.mrf.mxu0
    %v1058 = vadd.f32 %v266, %v1057
    %1059 = vdwg.mxu0
    %1060 = vmatpush.bf16.msra.mxu0 %v786
    %1061 = vmatpush.bf16.msra.mxu0 %v778
    %1062 = vmatpush.bf16.msra.mxu0 %v770
    %1063 = vmatpush.bf16.msra.mxu0 %v762
    %1064 = vmatpush.bf16.msra.mxu0 %v754
    %1065 = vmatpush.bf16.msra.mxu0 %v746
    %1066 = vmatpush.bf16.msra.mxu0 %v738
    %1067 = vmatpush.bf16.msra.mxu0 %v730
    %1068 = vmatmul.bf16.gmra.mxu0 %v130
    %v1069 = vpop.f32.mrf.mxu0
    %v1070 = vpop.f32.mrf.mxu0
    %v1071 = vadd.f32 %v1058, %v1070
    %1072 = vdwg.mxu0
    %1073 = vmatpush.bf16.msra.mxu0 %v723
    %1074 = vmatpush.bf16.msra.mxu0 %v715
    %1075 = vmatpush.bf16.msra.mxu0 %v707
    %1076 = vmatpush.bf16.msra.mxu0 %v699
    %1077 = vmatpush.bf16.msra.mxu0 %v691
    %1078 = vmatpush.bf16.msra.mxu0 %v683
    %1079 = vmatpush.bf16.msra.mxu0 %v675
    %1080 = vmatpush.bf16.msra.mxu0 %v667
    %1081 = vmatmul.bf16.gmra.mxu0 %v129
    %v1082 = vpop.f32.mrf.mxu0
    %v1083 = vpop.f32.mrf.mxu0
    %v1084 = vadd.f32 %v267, %v1083
    %1085 = vdwg.mxu0
    %1086 = vmatpush.bf16.msra.mxu0 %v787
    %1087 = vmatpush.bf16.msra.mxu0 %v779
    %1088 = vmatpush.bf16.msra.mxu0 %v771
    %1089 = vmatpush.bf16.msra.mxu0 %v763
    %1090 = vmatpush.bf16.msra.mxu0 %v755
    %1091 = vmatpush.bf16.msra.mxu0 %v747
    %1092 = vmatpush.bf16.msra.mxu0 %v739
    %1093 = vmatpush.bf16.msra.mxu0 %v731
    %1094 = vmatmul.bf16.gmra.mxu0 %v130
    %v1095 = vpop.f32.mrf.mxu0
    %v1096 = vpop.f32.mrf.mxu0
    %v1097 = vadd.f32 %v1084, %v1096
    %1098 = vdwg.mxu0
    %1099 = vmatpush.bf16.msra.mxu0 %v724
    %1100 = vmatpush.bf16.msra.mxu0 %v716
    %1101 = vmatpush.bf16.msra.mxu0 %v708
    %1102 = vmatpush.bf16.msra.mxu0 %v700
    %1103 = vmatpush.bf16.msra.mxu0 %v692
    %1104 = vmatpush.bf16.msra.mxu0 %v684
    %1105 = vmatpush.bf16.msra.mxu0 %v676
    %1106 = vmatpush.bf16.msra.mxu0 %v668
    %1107 = vmatmul.bf16.gmra.mxu0 %v129
    %v1108 = vpop.f32.mrf.mxu0
    %v1109 = vpop.f32.mrf.mxu0
    %v1110 = vadd.f32 %v268, %v1109
    %1111 = vdwg.mxu0
    %1112 = vmatpush.bf16.msra.mxu0 %v788
    %1113 = vmatpush.bf16.msra.mxu0 %v780
    %1114 = vmatpush.bf16.msra.mxu0 %v772
    %1115 = vmatpush.bf16.msra.mxu0 %v764
    %1116 = vmatpush.bf16.msra.mxu0 %v756
    %1117 = vmatpush.bf16.msra.mxu0 %v748
    %1118 = vmatpush.bf16.msra.mxu0 %v740
    %1119 = vmatpush.bf16.msra.mxu0 %v732
    %1120 = vmatmul.bf16.gmra.mxu0 %v130
    %v1121 = vpop.f32.mrf.mxu0
    %v1122 = vpop.f32.mrf.mxu0
    %v1123 = vadd.f32 %v1110, %v1122
    %1124 = vdwg.mxu0
    %v1125 = vld [vmem:[%s1] sm:$0xff]
    %v1126 = vld [vmem:[%s1 + $0x8] sm:$0xff]
    %v1127 = vld [vmem:[%s1 + $0x10] sm:$0xff]
    %v1128 = vld [vmem:[%s1 + $0x18] sm:$0xff]
    %v1129 = vld [vmem:[#allocation3] sm:$0xff]
    %v1130 = vld [vmem:[#allocation3 + $0x8] sm:$0xff]
    %v1131 = vld [vmem:[#allocation3 + $0x10] sm:$0xff]
    %v1132 = vld [vmem:[#allocation3 + $0x18] sm:$0xff]
    %1134 = vset.pattern.permute.xlu0 0
    %1135 = vperm.xlu0 %1134, %v1125
    %v1136 = vpop.permute.xlu0 %1135
    %1139 = vset.pattern.permute.xlu0 0
    %1140 = vperm.xlu0 %1139, %v1126
    %v1141 = vpop.permute.xlu0 %1140
    %1144 = vset.pattern.permute.xlu0 0
    %1145 = vperm.xlu0 %1144, %v1127
    %v1146 = vpop.permute.xlu0 %1145
    %1149 = vset.pattern.permute.xlu0 0
    %1150 = vperm.xlu0 %1149, %v1128
    %v1151 = vpop.permute.xlu0 %1150
    %v1154 = vperm.slane %v119, 0
    %v1155 = vperm.slane %v119, 1
    %v1158 = vmul.f32 %v1136, %v1154
    %v1159 = vmul.f32 %v1136, %v1155
    %v1160 = vmul.f32 %v1141, %v1154
    %v1161 = vmul.f32 %v1141, %v1155
    %v1162 = vmul.f32 %v1146, %v1154
    %v1163 = vmul.f32 %v1146, %v1155
    %v1164 = vmul.f32 %v1151, %v1154
    %v1165 = vmul.f32 %v1151, %v1155
    %v1166 = vadd.f32 %v1129, %v1158
    %v1167 = vadd.f32 %v1130, %v1159
    %v1168 = vadd.f32 %v1131, %v1160
    %v1169 = vadd.f32 %v1132, %v1161
    %v1170 = vadd.f32 %v1129, %v1162
    %v1171 = vadd.f32 %v1130, %v1163
    %v1172 = vadd.f32 %v1131, %v1164
    %v1173 = vadd.f32 %v1132, %v1165
    %vm1174 = vcmp.ge.f32.partialorder %v1166, 0.0
    %vm1175 = vcmp.ge.f32.partialorder %v1167, 0.0
    %vm1176 = vcmp.ge.f32.partialorder %v1168, 0.0
    %vm1177 = vcmp.ge.f32.partialorder %v1169, 0.0
    %vm1178 = vcmp.ge.f32.partialorder %v1170, 0.0
    %vm1179 = vcmp.ge.f32.partialorder %v1171, 0.0
    %vm1180 = vcmp.ge.f32.partialorder %v1172, 0.0
    %vm1181 = vcmp.ge.f32.partialorder %v1173, 0.0
    %v1182 = vmul.f32 %v1166, 0.2
    %v1183 = vmul.f32 %v1167, 0.2
    %v1184 = vmul.f32 %v1168, 0.2
    %v1185 = vmul.f32 %v1169, 0.2
    %v1186 = vmul.f32 %v1170, 0.2
    %v1187 = vmul.f32 %v1171, 0.2
    %v1188 = vmul.f32 %v1172, 0.2
    %v1189 = vmul.f32 %v1173, 0.2
    %v1190 = vsel %vm1174, %v1166, %v1182
    %v1191 = vsel %vm1175, %v1167, %v1183
    %v1192 = vsel %vm1176, %v1168, %v1184
    %v1193 = vsel %vm1177, %v1169, %v1185
    %v1194 = vsel %vm1178, %v1170, %v1186
    %v1195 = vsel %vm1179, %v1171, %v1187
    %v1196 = vsel %vm1180, %v1172, %v1188
    %v1197 = vsel %vm1181, %v1173, %v1189
    %v1200 = vrot.slane %v966, 7
    %vm1201 = vcmask 1040384
    %v1202 = vsel %vm1201, %v940, %v1200
    %vm1203 = vcmask 1041409
    %v1204 = vsel %vm1203, %v940, %v1200
    %v1205 = vrot.slane %v1204, 1
    %v1206 = vadd.f32 %v1190, %v1192
    %v1207 = vrot.slane %v1206, 4
    %v1208 = vadd.f32 %v1206, %v1207
    %v1209 = vrot.slane %v1208, 2
    %v1210 = vadd.f32 %v1208, %v1209
    %v1211 = vrot.slane %v1210, 1
    %v1212 = vadd.f32 %v1210, %v1211
    %v1213 = vadd.f32 %v1191, %v1193
    %v1214 = vrot.slane %v1213, 4
    %v1215 = vadd.f32 %v1213, %v1214
    %v1216 = vrot.slane %v1215, 2
    %v1217 = vadd.f32 %v1215, %v1216
    %v1218 = vrot.slane %v1217, 1
    %v1219 = vadd.f32 %v1217, %v1218
    %v1220 = vadd.f32 %v1194, %v1196
    %v1221 = vrot.slane %v1220, 4
    %v1222 = vadd.f32 %v1220, %v1221
    %v1223 = vrot.slane %v1222, 2
    %v1224 = vadd.f32 %v1222, %v1223
    %v1225 = vrot.slane %v1224, 1
    %v1226 = vadd.f32 %v1224, %v1225
    %v1227 = vadd.f32 %v1195, %v1197
    %v1228 = vrot.slane %v1227, 4
    %v1229 = vadd.f32 %v1227, %v1228
    %v1230 = vrot.slane %v1229, 2
    %v1231 = vadd.f32 %v1229, %v1230
    %v1232 = vrot.slane %v1231, 1
    %v1233 = vadd.f32 %v1231, %v1232
    %v1234 = vrcp.pop 16.0
    %v1235 = vmul.f32 16.0, %v1234
    %v1236 = vsub.f32 1.0, %v1235
    %v1237 = vmul.f32 %v1234, %v1236
    %v1238 = vadd.f32 %v1234, %v1237
    %vm1239 = vweird.f32 %v1234
    %v1240 = vsel %vm1239, %v1234, %v1238
    %v1241 = vmul.f32 %v1212, %v1240
    %v1242 = vmul.f32 %v1219, %v1240
    %v1243 = vmul.f32 %v1226, %v1240
    %v1244 = vmul.f32 %v1233, %v1240
    %v1245 = vsub.f32 %v1190, %v1241
    %v1246 = vsub.f32 %v1191, %v1242
    %v1247 = vsub.f32 %v1192, %v1241
    %v1248 = vsub.f32 %v1193, %v1242
    %v1249 = vsub.f32 %v1194, %v1243
    %v1250 = vsub.f32 %v1195, %v1244
    %v1251 = vsub.f32 %v1196, %v1243
    %v1252 = vsub.f32 %v1197, %v1244
    %v1253 = vmul.f32 %v1245, %v1245
    %v1254 = vmul.f32 %v1246, %v1246
    %v1255 = vmul.f32 %v1247, %v1247
    %v1256 = vmul.f32 %v1248, %v1248
    %v1257 = vmul.f32 %v1249, %v1249
    %v1258 = vmul.f32 %v1250, %v1250
    %v1259 = vmul.f32 %v1251, %v1251
    %v1260 = vmul.f32 %v1252, %v1252
    %v1261 = vadd.f32 %v1253, %v1255
    %v1262 = vrot.slane %v1261, 4
    %v1263 = vadd.f32 %v1261, %v1262
    %v1264 = vrot.slane %v1263, 2
    %v1265 = vadd.f32 %v1263, %v1264
    %v1266 = vrot.slane %v1265, 1
    %v1267 = vadd.f32 %v1265, %v1266
    %v1268 = vadd.f32 %v1254, %v1256
    %v1269 = vrot.slane %v1268, 4
    %v1270 = vadd.f32 %v1268, %v1269
    %v1271 = vrot.slane %v1270, 2
    %v1272 = vadd.f32 %v1270, %v1271
    %v1273 = vrot.slane %v1272, 1
    %v1274 = vadd.f32 %v1272, %v1273
    %v1275 = vadd.f32 %v1257, %v1259
    %v1276 = vrot.slane %v1275, 4
    %v1277 = vadd.f32 %v1275, %v1276
    %v1278 = vrot.slane %v1277, 2
    %v1279 = vadd.f32 %v1277, %v1278
    %v1280 = vrot.slane %v1279, 1
    %v1281 = vadd.f32 %v1279, %v1280
    %v1282 = vadd.f32 %v1258, %v1260
    %v1283 = vrot.slane %v1282, 4
    %v1284 = vadd.f32 %v1282, %v1283
    %v1285 = vrot.slane %v1284, 2
    %v1286 = vadd.f32 %v1284, %v1285
    %v1287 = vrot.slane %v1286, 1
    %v1288 = vadd.f32 %v1286, %v1287
    %v1289 = vmul.f32 %v1267, %v1240
    %v1290 = vmul.f32 %v1274, %v1240
    %v1291 = vmul.f32 %v1281, %v1240
    %v1292 = vmul.f32 %v1288, %v1240
    %v1293 = vadd.f32 %v1289, 1e-08
    %v1294 = vadd.f32 %v1290, 1e-08
    %v1295 = vadd.f32 %v1291, 1e-08
    %v1296 = vadd.f32 %v1292, 1e-08
    %v1297 = vrsqrt.pop %v1293
    %v1298 = vmul.f32 %v1297, %v1293
    %v1299 = vmul.f32 %v1298, %v1297
    %v1300 = vmul.f32 0.5, %v1299
    %v1301 = vsub.f32 1.5, %v1300
    %v1302 = vmul.f32 %v1297, %v1301
    %vm1303 = vweird.f32 %v1293
    %vm1304 = vweird.f32 %v1297
    %vm1305 = vmor %vm1303, %vm1304
    %v1306 = vsel %vm1305, %v1297, %v1302
    %v1307 = vrsqrt.pop %v1294
    %v1308 = vmul.f32 %v1307, %v1294
    %v1309 = vmul.f32 %v1308, %v1307
    %v1310 = vmul.f32 0.5, %v1309
    %v1311 = vsub.f32 1.5, %v1310
    %v1312 = vmul.f32 %v1307, %v1311
    %vm1313 = vweird.f32 %v1294
    %vm1314 = vweird.f32 %v1307
    %vm1315 = vmor %vm1313, %vm1314
    %v1316 = vsel %vm1315, %v1307, %v1312
    %v1317 = vrsqrt.pop %v1295
    %v1318 = vmul.f32 %v1317, %v1295
    %v1319 = vmul.f32 %v1318, %v1317
    %v1320 = vmul.f32 0.5, %v1319
    %v1321 = vsub.f32 1.5, %v1320
    %v1322 = vmul.f32 %v1317, %v1321
    %vm1323 = vweird.f32 %v1295
    %vm1324 = vweird.f32 %v1317
    %vm1325 = vmor %vm1323, %vm1324
    %v1326 = vsel %vm1325, %v1317, %v1322
    %v1327 = vrsqrt.pop %v1296
    %v1328 = vmul.f32 %v1327, %v1296
    %v1329 = vmul.f32 %v1328, %v1327
    %v1330 = vmul.f32 0.5, %v1329
    %v1331 = vsub.f32 1.5, %v1330
    %v1332 = vmul.f32 %v1327, %v1331
    %vm1333 = vweird.f32 %v1296
    %vm1334 = vweird.f32 %v1327
    %vm1335 = vmor %vm1333, %vm1334
    %v1336 = vsel %vm1335, %v1327, %v1332
    %v1337 = vmul.f32 %v1245, %v1306
    %v1338 = vmul.f32 %v1246, %v1316
    %v1339 = vmul.f32 %v1247, %v1306
    %v1340 = vmul.f32 %v1248, %v1316
    %v1341 = vmul.f32 %v1249, %v1326
    %v1342 = vmul.f32 %v1250, %v1336
    %v1343 = vmul.f32 %v1251, %v1326
    %v1344 = vmul.f32 %v1252, %v1336
    %v1345 = vperm.slane %v1202, 0
    %v1346 = vperm.slane %v1202, 1
    %v1347 = vperm.slane %v1205, 0
    %v1348 = vperm.slane %v1205, 1
    %v1353 = vmul.f32 %v1345, %v1337
    %v1354 = vmul.f32 %v1346, %v1338
    %v1355 = vmul.f32 %v1345, %v1339
    %v1356 = vmul.f32 %v1346, %v1340
    %v1357 = vmul.f32 %v1347, %v1341
    %v1358 = vmul.f32 %v1348, %v1342
    %v1359 = vmul.f32 %v1347, %v1343
    %v1360 = vmul.f32 %v1348, %v1344
    %v1363 = vrot.slane %v1018, 7
    %v1364 = vsel %vm1201, %v992, %v1363
    %v1365 = vsel %vm1203, %v992, %v1363
    %v1366 = vrot.slane %v1365, 1
    %v1367 = vperm.slane %v1364, 0
    %v1368 = vperm.slane %v1364, 1
    %v1369 = vperm.slane %v1366, 0
    %v1370 = vperm.slane %v1366, 1
    %v1375 = vadd.f32 %v1353, %v1367
    %v1376 = vadd.f32 %v1354, %v1368
    %v1377 = vadd.f32 %v1355, %v1367
    %v1378 = vadd.f32 %v1356, %v1368
    %v1379 = vadd.f32 %v1357, %v1369
    %v1380 = vadd.f32 %v1358, %v1370
    %v1381 = vadd.f32 %v1359, %v1369
    %v1382 = vadd.f32 %v1360, %v1370
    %v1383 = vlaneseq
    %v1384 = vshrl.u32 %v1383, 7
    %v1385 = vadd.s32 %v1384, 8
    %v1386 = vadd.s32 %v1384, 16
    %v1387 = vadd.s32 %v1384, 24
    %v1388 = vshra.s32 %v1384, 2
    %v1389 = vshra.s32 %v1385, 2
    %v1390 = vshra.s32 %v1386, 2
    %v1391 = vshra.s32 %v1387, 2
    %v1392 = vand.u32 %v1388, 3
    %v1393 = vand.u32 %v1389, 3
    %v1394 = vand.u32 %v1390, 3
    %v1395 = vand.u32 %v1391, 3
    %v1396 = vand.u32 %v1384, 3
    %v1397 = vand.u32 %v1385, 3
    %v1398 = vand.u32 %v1386, 3
    %v1399 = vand.u32 %v1387, 3
    %v1400 = vrot.slane %v1375, 3
    %v1401 = vrot.slane %v1376, 3
    %v1402 = vrot.slane %v1377, 3
    %v1403 = vrot.slane %v1378, 3
    %v1404 = vrot.slane %v1379, 3
    %v1405 = vrot.slane %v1380, 3
    %v1406 = vrot.slane %v1381, 3
    %v1407 = vrot.slane %v1382, 3
    %vm1408 = vcmp.lt.s32.totalorder %v1384, 5
    %v1409 = vsel %vm1408, %v1404, %v1406
    %v1410 = vsel %vm1408, %v1405, %v1407
    %v1411 = vsel %vm1408, %v1402, %v1404
    %v1412 = vsel %vm1408, %v1403, %v1405
    %v1413 = vsel %vm1408, %v1400, %v1402
    %v1414 = vsel %vm1408, %v1401, %v1403
    %v1415 = vsel %vm1408, %v1406, %v1400
    %v1416 = vsel %vm1408, %v1407, %v1401
    %vm1417 = vcmp.ge.s32.totalorder %v1392, 1
    %vm1418 = vcmp.ge.s32.totalorder %v1393, 1
    %vm1419 = vcmp.ge.s32.totalorder %v1394, 1
    %vm1420 = vcmp.ge.s32.totalorder %v1395, 1
    %vm1421 = vcmp.ge.s32.totalorder %v1396, 1
    %vm1422 = vcmp.ge.s32.totalorder %v1397, 1
    %vm1423 = vcmp.ge.s32.totalorder %v1398, 1
    %vm1424 = vcmp.ge.s32.totalorder %v1399, 1
    %vm1425 = vmand %vm1417, %vm1421
    %vm1426 = vmand %vm1418, %vm1422
    %vm1427 = vmand %vm1419, %vm1423
    %vm1428 = vmand %vm1420, %vm1424
    %v1429 = vsel %vm1425, 1, 0
    %v1430 = vsel %vm1426, 1, 0
    %v1431 = vsel %vm1427, 1, 0
    %v1432 = vsel %vm1428, 1, 0
    %vm1433 = vcmp.eq.s32.totalorder %v1429, 1
    %vm1434 = vcmp.eq.s32.totalorder %v1430, 1
    %vm1435 = vcmp.eq.s32.totalorder %v1431, 1
    %vm1436 = vcmp.eq.s32.totalorder %v1432, 1
    %v1437 = vsel %vm1433, %v1415, 0.0
    %v1438 = vsel %vm1433, %v1416, 0.0
    %v1439 = vsel %vm1434, %v1413, 0.0
    %v1440 = vsel %vm1434, %v1414, 0.0
    %v1441 = vsel %vm1435, %v1411, 0.0
    %v1442 = vsel %vm1435, %v1412, 0.0
    %v1443 = vsel %vm1436, %v1409, 0.0
    %v1444 = vsel %vm1436, %v1410, 0.0
    %v1445 = vpack.c.bf16 %v1438, %v1437
    %v1446 = vpack.c.bf16 %v1440, %v1439
    %v1447 = vpack.c.bf16 %v1442, %v1441
    %v1448 = vpack.c.bf16 %v1444, %v1443
    %1449 = vst [vmem:[#allocation2] sm:$0xff] %v1445
    %1450 = vst [vmem:[#allocation2 + $0x48] sm:$0xff] %v1446
    %1451 = vst [vmem:[#allocation2 + $0x90] sm:$0xff] %v1447
    %1452 = vst [vmem:[#allocation2 + $0xd8] sm:$0xff] %v1448
    %v1453 = vrot.slane %v1375, 4
    %v1454 = vrot.slane %v1376, 4
    %v1455 = vrot.slane %v1377, 4
    %v1456 = vrot.slane %v1378, 4
    %v1457 = vrot.slane %v1379, 4
    %v1458 = vrot.slane %v1380, 4
    %v1459 = vrot.slane %v1381, 4
    %v1460 = vrot.slane %v1382, 4
    %vm1461 = vcmp.lt.s32.totalorder %v1384, 4
    %v1462 = vsel %vm1461, %v1457, %v1459
    %v1463 = vsel %vm1461, %v1458, %v1460
    %v1464 = vsel %vm1461, %v1455, %v1457
    %v1465 = vsel %vm1461, %v1456, %v1458
    %v1466 = vsel %vm1461, %v1453, %v1455
    %v1467 = vsel %vm1461, %v1454, %v1456
    %v1468 = vsel %vm1461, %v1459, %v1453
    %v1469 = vsel %vm1461, %v1460, %v1454
    %v1470 = vsel %vm1417, 1, 0
    %v1471 = vsel %vm1418, 1, 0
    %v1472 = vsel %vm1419, 1, 0
    %v1473 = vsel %vm1420, 1, 0
    %vm1474 = vcmp.eq.s32.totalorder %v1470, 1
    %vm1475 = vcmp.eq.s32.totalorder %v1471, 1
    %vm1476 = vcmp.eq.s32.totalorder %v1472, 1
    %vm1477 = vcmp.eq.s32.totalorder %v1473, 1
    %v1478 = vsel %vm1474, %v1468, 0.0
    %v1479 = vsel %vm1474, %v1469, 0.0
    %v1480 = vsel %vm1475, %v1466, 0.0
    %v1481 = vsel %vm1475, %v1467, 0.0
    %v1482 = vsel %vm1476, %v1464, 0.0
    %v1483 = vsel %vm1476, %v1465, 0.0
    %v1484 = vsel %vm1477, %v1462, 0.0
    %v1485 = vsel %vm1477, %v1463, 0.0
    %v1486 = vpack.c.bf16 %v1479, %v1478
    %v1487 = vpack.c.bf16 %v1481, %v1480
    %v1488 = vpack.c.bf16 %v1483, %v1482
    %v1489 = vpack.c.bf16 %v1485, %v1484
    %1490 = vst [vmem:[#allocation2 + $0x8] sm:$0xff] %v1486
    %1491 = vst [vmem:[#allocation2 + $0x50] sm:$0xff] %v1487
    %1492 = vst [vmem:[#allocation2 + $0x98] sm:$0xff] %v1488
    %1493 = vst [vmem:[#allocation2 + $0xe0] sm:$0xff] %v1489
    %v1494 = vrot.slane %v1375, 5
    %v1495 = vrot.slane %v1376, 5
    %v1496 = vrot.slane %v1377, 5
    %v1497 = vrot.slane %v1378, 5
    %v1498 = vrot.slane %v1379, 5
    %v1499 = vrot.slane %v1380, 5
    %v1500 = vrot.slane %v1381, 5
    %v1501 = vrot.slane %v1382, 5
    %vm1502 = vcmp.lt.s32.totalorder %v1384, 3
    %v1503 = vsel %vm1502, %v1498, %v1500
    %v1504 = vsel %vm1502, %v1499, %v1501
    %v1505 = vsel %vm1502, %v1496, %v1498
    %v1506 = vsel %vm1502, %v1497, %v1499
    %v1507 = vsel %vm1502, %v1494, %v1496
    %v1508 = vsel %vm1502, %v1495, %v1497
    %v1509 = vsel %vm1502, %v1500, %v1494
    %v1510 = vsel %vm1502, %v1501, %v1495
    %vm1511 = vcmp.le.s32.totalorder %v1396, 2
    %vm1512 = vcmp.le.s32.totalorder %v1397, 2
    %vm1513 = vcmp.le.s32.totalorder %v1398, 2
    %vm1514 = vcmp.le.s32.totalorder %v1399, 2
    %vm1515 = vmand %vm1417, %vm1511
    %vm1516 = vmand %vm1418, %vm1512
    %vm1517 = vmand %vm1419, %vm1513
    %vm1518 = vmand %vm1420, %vm1514
    %v1519 = vsel %vm1515, 1, 0
    %v1520 = vsel %vm1516, 1, 0
    %v1521 = vsel %vm1517, 1, 0
    %v1522 = vsel %vm1518, 1, 0
    %vm1523 = vcmp.eq.s32.totalorder %v1519, 1
    %vm1524 = vcmp.eq.s32.totalorder %v1520, 1
    %vm1525 = vcmp.eq.s32.totalorder %v1521, 1
    %vm1526 = vcmp.eq.s32.totalorder %v1522, 1
    %v1527 = vsel %vm1523, %v1509, 0.0
    %v1528 = vsel %vm1523, %v1510, 0.0
    %v1529 = vsel %vm1524, %v1507, 0.0
    %v1530 = vsel %vm1524, %v1508, 0.0
    %v1531 = vsel %vm1525, %v1505, 0.0
    %v1532 = vsel %vm1525, %v1506, 0.0
    %v1533 = vsel %vm1526, %v1503, 0.0
    %v1534 = vsel %vm1526, %v1504, 0.0
    %v1535 = vpack.c.bf16 %v1528, %v1527
    %v1536 = vpack.c.bf16 %v1530, %v1529
    %v1537 = vpack.c.bf16 %v1532, %v1531
    %v1538 = vpack.c.bf16 %v1534, %v1533
    %1539 = vst [vmem:[#allocation2 + $0x10] sm:$0xff] %v1535
    %1540 = vst [vmem:[#allocation2 + $0x58] sm:$0xff] %v1536
    %1541 = vst [vmem:[#allocation2 + $0xa0] sm:$0xff] %v1537
    %1542 = vst [vmem:[#allocation2 + $0xe8] sm:$0xff] %v1538
    %v1543 = vrot.slane %v1375, 7
    %v1544 = vrot.slane %v1376, 7
    %v1545 = vrot.slane %v1377, 7
    %v1546 = vrot.slane %v1378, 7
    %v1547 = vrot.slane %v1379, 7
    %v1548 = vrot.slane %v1380, 7
    %v1549 = vrot.slane %v1381, 7
    %v1550 = vrot.slane %v1382, 7
    %vm1551 = vcmp.lt.s32.totalorder %v1384, 1
    %v1552 = vsel %vm1551, %v1547, %v1549
    %v1553 = vsel %vm1551, %v1548, %v1550
    %v1554 = vsel %vm1551, %v1545, %v1547
    %v1555 = vsel %vm1551, %v1546, %v1548
    %v1556 = vsel %vm1551, %v1543, %v1545
    %v1557 = vsel %vm1551, %v1544, %v1546
    %v1558 = vsel %vm1551, %v1549, %v1543
    %v1559 = vsel %vm1551, %v1550, %v1544
    %v1560 = vsel %vm1421, 1, 0
    %v1561 = vsel %vm1422, 1, 0
    %v1562 = vsel %vm1423, 1, 0
    %v1563 = vsel %vm1424, 1, 0
    %vm1564 = vcmp.eq.s32.totalorder %v1560, 1
    %vm1565 = vcmp.eq.s32.totalorder %v1561, 1
    %vm1566 = vcmp.eq.s32.totalorder %v1562, 1
    %vm1567 = vcmp.eq.s32.totalorder %v1563, 1
    %v1568 = vsel %vm1564, %v1558, 0.0
    %v1569 = vsel %vm1564, %v1559, 0.0
    %v1570 = vsel %vm1565, %v1556, 0.0
    %v1571 = vsel %vm1565, %v1557, 0.0
    %v1572 = vsel %vm1566, %v1554, 0.0
    %v1573 = vsel %vm1566, %v1555, 0.0
    %v1574 = vsel %vm1567, %v1552, 0.0
    %v1575 = vsel %vm1567, %v1553, 0.0
    %v1576 = vpack.c.bf16 %v1569, %v1568
    %v1577 = vpack.c.bf16 %v1571, %v1570
    %v1578 = vpack.c.bf16 %v1573, %v1572
    %v1579 = vpack.c.bf16 %v1575, %v1574
    %1580 = vst [vmem:[#allocation2 + $0x18] sm:$0xff] %v1576
    %1581 = vst [vmem:[#allocation2 + $0x60] sm:$0xff] %v1577
    %1582 = vst [vmem:[#allocation2 + $0xa8] sm:$0xff] %v1578
    %1583 = vst [vmem:[#allocation2 + $0xf0] sm:$0xff] %v1579
    %v1584 = vpack.c.bf16 %v1376, %v1375
    %v1585 = vpack.c.bf16 %v1378, %v1377
    %v1586 = vpack.c.bf16 %v1380, %v1379
    %v1587 = vpack.c.bf16 %v1382, %v1381
    %1588 = vst [vmem:[#allocation2 + $0x20] sm:$0xff] %v1584
    %1589 = vst [vmem:[#allocation2 + $0x68] sm:$0xff] %v1585
    %1590 = vst [vmem:[#allocation2 + $0xb0] sm:$0xff] %v1586
    %1591 = vst [vmem:[#allocation2 + $0xf8] sm:$0xff] %v1587
    %v1592 = vrot.slane %v1375, 1
    %v1593 = vrot.slane %v1376, 1
    %v1594 = vrot.slane %v1377, 1
    %v1595 = vrot.slane %v1378, 1
    %v1596 = vrot.slane %v1379, 1
    %v1597 = vrot.slane %v1380, 1
    %v1598 = vrot.slane %v1381, 1
    %v1599 = vrot.slane %v1382, 1
    %vm1600 = vcmp.lt.s32.totalorder %v1384, 7
    %v1601 = vsel %vm1600, %v1596, %v1598
    %v1602 = vsel %vm1600, %v1597, %v1599
    %v1603 = vsel %vm1600, %v1594, %v1596
    %v1604 = vsel %vm1600, %v1595, %v1597
    %v1605 = vsel %vm1600, %v1592, %v1594
    %v1606 = vsel %vm1600, %v1593, %v1595
    %v1607 = vsel %vm1600, %v1598, %v1592
    %v1608 = vsel %vm1600, %v1599, %v1593
    %v1609 = vsel %vm1511, 1, 0
    %v1610 = vsel %vm1512, 1, 0
    %v1611 = vsel %vm1513, 1, 0
    %v1612 = vsel %vm1514, 1, 0
    %vm1613 = vcmp.eq.s32.totalorder %v1609, 1
    %vm1614 = vcmp.eq.s32.totalorder %v1610, 1
    %vm1615 = vcmp.eq.s32.totalorder %v1611, 1
    %vm1616 = vcmp.eq.s32.totalorder %v1612, 1
    %v1617 = vsel %vm1613, %v1605, 0.0
    %v1618 = vsel %vm1613, %v1606, 0.0
    %v1619 = vsel %vm1614, %v1603, 0.0
    %v1620 = vsel %vm1614, %v1604, 0.0
    %v1621 = vsel %vm1615, %v1601, 0.0
    %v1622 = vsel %vm1615, %v1602, 0.0
    %v1623 = vsel %vm1616, %v1607, 0.0
    %v1624 = vsel %vm1616, %v1608, 0.0
    %v1625 = vpack.c.bf16 %v1618, %v1617
    %v1626 = vpack.c.bf16 %v1620, %v1619
    %v1627 = vpack.c.bf16 %v1622, %v1621
    %v1628 = vpack.c.bf16 %v1624, %v1623
    %1629 = vst [vmem:[#allocation2 + $0x28] sm:$0xff] %v1625
    %1630 = vst [vmem:[#allocation2 + $0x70] sm:$0xff] %v1626
    %1631 = vst [vmem:[#allocation2 + $0xb8] sm:$0xff] %v1627
    %1632 = vst [vmem:[#allocation2 + $0x100] sm:$0xff] %v1628
    %vm1633 = vcmp.le.s32.totalorder %v1392, 2
    %vm1634 = vcmp.le.s32.totalorder %v1393, 2
    %vm1635 = vcmp.le.s32.totalorder %v1394, 2
    %vm1636 = vcmp.le.s32.totalorder %v1395, 2
    %vm1637 = vmand %vm1633, %vm1421
    %vm1638 = vmand %vm1634, %vm1422
    %vm1639 = vmand %vm1635, %vm1423
    %vm1640 = vmand %vm1636, %vm1424
    %v1641 = vsel %vm1637, 1, 0
    %v1642 = vsel %vm1638, 1, 0
    %v1643 = vsel %vm1639, 1, 0
    %v1644 = vsel %vm1640, 1, 0
    %vm1645 = vcmp.eq.s32.totalorder %v1641, 1
    %vm1646 = vcmp.eq.s32.totalorder %v1642, 1
    %vm1647 = vcmp.eq.s32.totalorder %v1643, 1
    %vm1648 = vcmp.eq.s32.totalorder %v1644, 1
    %v1649 = vsel %vm1645, %v1413, 0.0
    %v1650 = vsel %vm1645, %v1414, 0.0
    %v1651 = vsel %vm1646, %v1411, 0.0
    %v1652 = vsel %vm1646, %v1412, 0.0
    %v1653 = vsel %vm1647, %v1409, 0.0
    %v1654 = vsel %vm1647, %v1410, 0.0
    %v1655 = vsel %vm1648, %v1415, 0.0
    %v1656 = vsel %vm1648, %v1416, 0.0
    %v1657 = vpack.c.bf16 %v1650, %v1649
    %v1658 = vpack.c.bf16 %v1652, %v1651
    %v1659 = vpack.c.bf16 %v1654, %v1653
    %v1660 = vpack.c.bf16 %v1656, %v1655
    %1661 = vst [vmem:[#allocation2 + $0x30] sm:$0xff] %v1657
    %1662 = vst [vmem:[#allocation2 + $0x78] sm:$0xff] %v1658
    %1663 = vst [vmem:[#allocation2 + $0xc0] sm:$0xff] %v1659
    %1664 = vst [vmem:[#allocation2 + $0x108] sm:$0xff] %v1660
    %v1665 = vsel %vm1633, 1, 0
    %v1666 = vsel %vm1634, 1, 0
    %v1667 = vsel %vm1635, 1, 0
    %v1668 = vsel %vm1636, 1, 0
    %vm1669 = vcmp.eq.s32.totalorder %v1665, 1
    %vm1670 = vcmp.eq.s32.totalorder %v1666, 1
    %vm1671 = vcmp.eq.s32.totalorder %v1667, 1
    %vm1672 = vcmp.eq.s32.totalorder %v1668, 1
    %v1673 = vsel %vm1669, %v1466, 0.0
    %v1674 = vsel %vm1669, %v1467, 0.0
    %v1675 = vsel %vm1670, %v1464, 0.0
    %v1676 = vsel %vm1670, %v1465, 0.0
    %v1677 = vsel %vm1671, %v1462, 0.0
    %v1678 = vsel %vm1671, %v1463, 0.0
    %v1679 = vsel %vm1672, %v1468, 0.0
    %v1680 = vsel %vm1672, %v1469, 0.0
    %v1681 = vpack.c.bf16 %v1674, %v1673
    %v1682 = vpack.c.bf16 %v1676, %v1675
    %v1683 = vpack.c.bf16 %v1678, %v1677
    %v1684 = vpack.c.bf16 %v1680, %v1679
    %1685 = vst [vmem:[#allocation2 + $0x38] sm:$0xff] %v1681
    %1686 = vst [vmem:[#allocation2 + $0x80] sm:$0xff] %v1682
    %1687 = vst [vmem:[#allocation2 + $0xc8] sm:$0xff] %v1683
    %1688 = vst [vmem:[#allocation2 + $0x110] sm:$0xff] %v1684
    %vm1689 = vmand %vm1633, %vm1511
    %vm1690 = vmand %vm1634, %vm1512
    %vm1691 = vmand %vm1635, %vm1513
    %vm1692 = vmand %vm1636, %vm1514
    %v1693 = vsel %vm1689, 1, 0
    %v1694 = vsel %vm1690, 1, 0
    %v1695 = vsel %vm1691, 1, 0
    %v1696 = vsel %vm1692, 1, 0
    %vm1697 = vcmp.eq.s32.totalorder %v1693, 1
    %vm1698 = vcmp.eq.s32.totalorder %v1694, 1
    %vm1699 = vcmp.eq.s32.totalorder %v1695, 1
    %vm1700 = vcmp.eq.s32.totalorder %v1696, 1
    %v1701 = vsel %vm1697, %v1507, 0.0
    %v1702 = vsel %vm1697, %v1508, 0.0
    %v1703 = vsel %vm1698, %v1505, 0.0
    %v1704 = vsel %vm1698, %v1506, 0.0
    %v1705 = vsel %vm1699, %v1503, 0.0
    %v1706 = vsel %vm1699, %v1504, 0.0
    %v1707 = vsel %vm1700, %v1509, 0.0
    %v1708 = vsel %vm1700, %v1510, 0.0
    %v1709 = vpack.c.bf16 %v1702, %v1701
    %v1710 = vpack.c.bf16 %v1704, %v1703
    %v1711 = vpack.c.bf16 %v1706, %v1705
    %v1712 = vpack.c.bf16 %v1708, %v1707
    %1713 = vst [vmem:[#allocation2 + $0x40] sm:$0xff] %v1709
    %1714 = vst [vmem:[#allocation2 + $0x88] sm:$0xff] %v1710
    %1715 = vst [vmem:[#allocation2 + $0xd0] sm:$0xff] %v1711
    %1716 = vst [vmem:[#allocation2 + $0x118] sm:$0xff] %v1712
    %v1717 = vld [vmem:[#allocation2] sm:$0xff]
    %v1718 = vld [vmem:[#allocation2 + $0x8] sm:$0xff]
    %v1719 = vld [vmem:[#allocation2 + $0x10] sm:$0xff]
    %v1720 = vld [vmem:[#allocation2 + $0x18] sm:$0xff]
    %v1721 = vld [vmem:[#allocation2 + $0x20] sm:$0xff]
    %v1722 = vld [vmem:[#allocation2 + $0x28] sm:$0xff]
    %v1723 = vld [vmem:[#allocation2 + $0x30] sm:$0xff]
    %v1724 = vld [vmem:[#allocation2 + $0x38] sm:$0xff]
    %v1725 = vld [vmem:[#allocation2 + $0x40] sm:$0xff]
    %v1726 = vld [vmem:[#allocation2 + $0x48] sm:$0xff]
    %v1727 = vld [vmem:[#allocation2 + $0x50] sm:$0xff]
    %v1728 = vld [vmem:[#allocation2 + $0x58] sm:$0xff]
    %v1729 = vld [vmem:[#allocation2 + $0x60] sm:$0xff]
    %v1730 = vld [vmem:[#allocation2 + $0x68] sm:$0xff]
    %v1731 = vld [vmem:[#allocation2 + $0x70] sm:$0xff]
    %v1732 = vld [vmem:[#allocation2 + $0x78] sm:$0xff]
    %v1733 = vld [vmem:[#allocation2 + $0x80] sm:$0xff]
    %v1734 = vld [vmem:[#allocation2 + $0x88] sm:$0xff]
    %v1735 = vld [vmem:[#allocation2 + $0x90] sm:$0xff]
    %v1736 = vld [vmem:[#allocation2 + $0x98] sm:$0xff]
    %v1737 = vld [vmem:[#allocation2 + $0xa0] sm:$0xff]
    %v1738 = vld [vmem:[#allocation2 + $0xa8] sm:$0xff]
    %v1739 = vld [vmem:[#allocation2 + $0xb0] sm:$0xff]
    %v1740 = vld [vmem:[#allocation2 + $0xb8] sm:$0xff]
    %v1741 = vld [vmem:[#allocation2 + $0xc0] sm:$0xff]
    %v1742 = vld [vmem:[#allocation2 + $0xc8] sm:$0xff]
    %v1743 = vld [vmem:[#allocation2 + $0xd0] sm:$0xff]
    %v1744 = vld [vmem:[#allocation2 + $0xd8] sm:$0xff]
    %v1745 = vld [vmem:[#allocation2 + $0xe0] sm:$0xff]
    %v1746 = vld [vmem:[#allocation2 + $0xe8] sm:$0xff]
    %v1747 = vld [vmem:[#allocation2 + $0xf0] sm:$0xff]
    %v1748 = vld [vmem:[#allocation2 + $0xf8] sm:$0xff]
    %v1749 = vld [vmem:[#allocation2 + $0x100] sm:$0xff]
    %v1750 = vld [vmem:[#allocation2 + $0x108] sm:$0xff]
    %v1751 = vld [vmem:[#allocation2 + $0x110] sm:$0xff]
    %v1752 = vld [vmem:[#allocation2 + $0x118] sm:$0xff]
    %v1753 = vld [vmem:[#allocation8] sm:$0xff]
    %v1754 = vld [vmem:[#allocation8 + $0x8] sm:$0xff]
    %v1755 = vld [vmem:[#allocation8 + $0x10] sm:$0xff]
    %v1756 = vld [vmem:[#allocation8 + $0x18] sm:$0xff]
    %v1757 = vld [vmem:[#allocation8 + $0x20] sm:$0xff]
    %v1758 = vld [vmem:[#allocation8 + $0x28] sm:$0xff]
    %v1759 = vld [vmem:[#allocation8 + $0x30] sm:$0xff]
    %v1760 = vld [vmem:[#allocation8 + $0x38] sm:$0xff]
    %v1761 = vld [vmem:[#allocation8 + $0x40] sm:$0xff]
    %v1762 = vld [vmem:[#allocation8 + $0x48] sm:$0xff]
    %v1763 = vld [vmem:[#allocation8 + $0x50] sm:$0xff]
    %v1764 = vld [vmem:[#allocation8 + $0x58] sm:$0xff]
    %v1765 = vld [vmem:[#allocation8 + $0x60] sm:$0xff]
    %v1766 = vld [vmem:[#allocation8 + $0x68] sm:$0xff]
    %v1767 = vld [vmem:[#allocation8 + $0x70] sm:$0xff]
    %v1768 = vld [vmem:[#allocation8 + $0x78] sm:$0xff]
    %v1769 = vld [vmem:[#allocation8 + $0x80] sm:$0xff]
    %v1770 = vld [vmem:[#allocation8 + $0x88] sm:$0xff]
    %v1771 = vld [vmem:[#allocation8 + $0x90] sm:$0xff]
    %v1772 = vld [vmem:[#allocation8 + $0x98] sm:$0xff]
    %v1773 = vld [vmem:[#allocation8 + $0xa0] sm:$0xff]
    %v1774 = vld [vmem:[#allocation8 + $0xa8] sm:$0xff]
    %v1775 = vld [vmem:[#allocation8 + $0xb0] sm:$0xff]
    %v1776 = vld [vmem:[#allocation8 + $0xb8] sm:$0xff]
    %v1777 = vld [vmem:[#allocation8 + $0xc0] sm:$0xff]
    %v1778 = vld [vmem:[#allocation8 + $0xc8] sm:$0xff]
    %v1779 = vld [vmem:[#allocation8 + $0xd0] sm:$0xff]
    %v1780 = vld [vmem:[#allocation8 + $0xd8] sm:$0xff]
    %v1781 = vld [vmem:[#allocation8 + $0xe0] sm:$0xff]
    %v1782 = vld [vmem:[#allocation8 + $0xe8] sm:$0xff]
    %v1783 = vld [vmem:[#allocation8 + $0xf0] sm:$0xff]
    %v1784 = vld [vmem:[#allocation8 + $0xf8] sm:$0xff]
    %v1785 = vld [vmem:[#allocation8 + $0x100] sm:$0xff]
    %v1786 = vld [vmem:[#allocation8 + $0x108] sm:$0xff]
    %v1787 = vld [vmem:[#allocation8 + $0x110] sm:$0xff]
    %v1788 = vld [vmem:[#allocation8 + $0x118] sm:$0xff]
    %v1789 = vld [vmem:[#allocation8 + $0x120] sm:$0xff]
    %v1790 = vld [vmem:[#allocation8 + $0x128] sm:$0xff]
    %v1791 = vld [vmem:[#allocation8 + $0x130] sm:$0xff]
    %v1792 = vld [vmem:[#allocation8 + $0x138] sm:$0xff]
    %v1793 = vld [vmem:[#allocation8 + $0x140] sm:$0xff]
    %v1794 = vld [vmem:[#allocation8 + $0x148] sm:$0xff]
    %v1795 = vld [vmem:[#allocation8 + $0x150] sm:$0xff]
    %v1796 = vld [vmem:[#allocation8 + $0x158] sm:$0xff]
    %v1797 = vld [vmem:[#allocation8 + $0x160] sm:$0xff]
    %v1798 = vld [vmem:[#allocation8 + $0x168] sm:$0xff]
    %v1799 = vld [vmem:[#allocation8 + $0x170] sm:$0xff]
    %v1800 = vld [vmem:[#allocation8 + $0x178] sm:$0xff]
    %v1801 = vld [vmem:[#allocation8 + $0x180] sm:$0xff]
    %v1802 = vld [vmem:[#allocation8 + $0x188] sm:$0xff]
    %v1803 = vld [vmem:[#allocation8 + $0x190] sm:$0xff]
    %v1804 = vld [vmem:[#allocation8 + $0x198] sm:$0xff]
    %v1805 = vld [vmem:[#allocation8 + $0x1a0] sm:$0xff]
    %v1806 = vld [vmem:[#allocation8 + $0x1a8] sm:$0xff]
    %v1807 = vld [vmem:[#allocation8 + $0x1b0] sm:$0xff]
    %v1808 = vld [vmem:[#allocation8 + $0x1b8] sm:$0xff]
    %v1809 = vld [vmem:[#allocation8 + $0x1c0] sm:$0xff]
    %v1810 = vld [vmem:[#allocation8 + $0x1c8] sm:$0xff]
    %v1811 = vld [vmem:[#allocation8 + $0x1d0] sm:$0xff]
    %v1812 = vld [vmem:[#allocation8 + $0x1d8] sm:$0xff]
    %v1813 = vld [vmem:[#allocation8 + $0x1e0] sm:$0xff]
    %v1814 = vld [vmem:[#allocation8 + $0x1e8] sm:$0xff]
    %v1815 = vld [vmem:[#allocation8 + $0x1f0] sm:$0xff]
    %v1816 = vld [vmem:[#allocation8 + $0x1f8] sm:$0xff]
    %v1817 = vld [vmem:[#allocation8 + $0x200] sm:$0xff]
    %v1818 = vld [vmem:[#allocation8 + $0x208] sm:$0xff]
    %v1819 = vld [vmem:[#allocation8 + $0x210] sm:$0xff]
    %v1820 = vld [vmem:[#allocation8 + $0x218] sm:$0xff]
    %v1821 = vld [vmem:[#allocation8 + $0x220] sm:$0xff]
    %v1822 = vld [vmem:[#allocation8 + $0x228] sm:$0xff]
    %v1823 = vld [vmem:[#allocation8 + $0x230] sm:$0xff]
    %v1824 = vld [vmem:[#allocation8 + $0x238] sm:$0xff]
    %v1825 = vld [vmem:[#allocation8 + $0x240] sm:$0xff]
    %v1826 = vld [vmem:[#allocation8 + $0x248] sm:$0xff]
    %v1827 = vld [vmem:[#allocation8 + $0x250] sm:$0xff]
    %v1828 = vld [vmem:[#allocation8 + $0x258] sm:$0xff]
    %v1829 = vld [vmem:[#allocation8 + $0x260] sm:$0xff]
    %v1830 = vld [vmem:[#allocation8 + $0x268] sm:$0xff]
    %v1831 = vld [vmem:[#allocation8 + $0x270] sm:$0xff]
    %v1832 = vld [vmem:[#allocation8 + $0x278] sm:$0xff]
    %v1833 = vld [vmem:[#allocation8 + $0x280] sm:$0xff]
    %v1834 = vld [vmem:[#allocation8 + $0x288] sm:$0xff]
    %v1835 = vld [vmem:[#allocation8 + $0x290] sm:$0xff]
    %v1836 = vld [vmem:[#allocation8 + $0x298] sm:$0xff]
    %v1837 = vld [vmem:[#allocation8 + $0x2a0] sm:$0xff]
    %v1838 = vld [vmem:[#allocation8 + $0x2a8] sm:$0xff]
    %v1839 = vld [vmem:[#allocation8 + $0x2b0] sm:$0xff]
    %v1840 = vld [vmem:[#allocation8 + $0x2b8] sm:$0xff]
    %v1841 = vld [vmem:[#allocation8 + $0x2c0] sm:$0xff]
    %v1842 = vld [vmem:[#allocation8 + $0x2c8] sm:$0xff]
    %v1843 = vld [vmem:[#allocation8 + $0x2d0] sm:$0xff]
    %v1844 = vld [vmem:[#allocation8 + $0x2d8] sm:$0xff]
    %v1845 = vld [vmem:[#allocation8 + $0x2e0] sm:$0xff]
    %v1846 = vld [vmem:[#allocation8 + $0x2e8] sm:$0xff]
    %v1847 = vld [vmem:[#allocation8 + $0x2f0] sm:$0xff]
    %v1848 = vld [vmem:[#allocation8 + $0x2f8] sm:$0xff]
    %v1849 = vld [vmem:[#allocation8 + $0x300] sm:$0xff]
    %v1850 = vld [vmem:[#allocation8 + $0x308] sm:$0xff]
    %v1851 = vld [vmem:[#allocation8 + $0x310] sm:$0xff]
    %v1852 = vld [vmem:[#allocation8 + $0x318] sm:$0xff]
    %v1853 = vld [vmem:[#allocation8 + $0x320] sm:$0xff]
    %v1854 = vld [vmem:[#allocation8 + $0x328] sm:$0xff]
    %v1855 = vld [vmem:[#allocation8 + $0x330] sm:$0xff]
    %v1856 = vld [vmem:[#allocation8 + $0x338] sm:$0xff]
    %v1857 = vld [vmem:[#allocation8 + $0x340] sm:$0xff]
    %v1858 = vld [vmem:[#allocation8 + $0x348] sm:$0xff]
    %v1859 = vld [vmem:[#allocation8 + $0x350] sm:$0xff]
    %v1860 = vld [vmem:[#allocation8 + $0x358] sm:$0xff]
    %v1861 = vld [vmem:[#allocation8 + $0x360] sm:$0xff]
    %v1862 = vld [vmem:[#allocation8 + $0x368] sm:$0xff]
    %v1863 = vld [vmem:[#allocation8 + $0x370] sm:$0xff]
    %v1864 = vld [vmem:[#allocation8 + $0x378] sm:$0xff]
    %v1865 = vld [vmem:[#allocation8 + $0x380] sm:$0xff]
    %v1866 = vld [vmem:[#allocation8 + $0x388] sm:$0xff]
    %v1867 = vld [vmem:[#allocation8 + $0x390] sm:$0xff]
    %v1868 = vld [vmem:[#allocation8 + $0x398] sm:$0xff]
    %v1869 = vld [vmem:[#allocation8 + $0x3a0] sm:$0xff]
    %v1870 = vld [vmem:[#allocation8 + $0x3a8] sm:$0xff]
    %v1871 = vld [vmem:[#allocation8 + $0x3b0] sm:$0xff]
    %v1872 = vld [vmem:[#allocation8 + $0x3b8] sm:$0xff]
    %v1873 = vld [vmem:[#allocation8 + $0x3c0] sm:$0xff]
    %v1874 = vld [vmem:[#allocation8 + $0x3c8] sm:$0xff]
    %v1875 = vld [vmem:[#allocation8 + $0x3d0] sm:$0xff]
    %v1876 = vld [vmem:[#allocation8 + $0x3d8] sm:$0xff]
    %v1877 = vld [vmem:[#allocation8 + $0x3e0] sm:$0xff]
    %v1878 = vld [vmem:[#allocation8 + $0x3e8] sm:$0xff]
    %v1879 = vld [vmem:[#allocation8 + $0x3f0] sm:$0xff]
    %v1880 = vld [vmem:[#allocation8 + $0x3f8] sm:$0xff]
    %v1881 = vld [vmem:[#allocation8 + $0x400] sm:$0xff]
    %v1882 = vld [vmem:[#allocation8 + $0x408] sm:$0xff]
    %v1883 = vld [vmem:[#allocation8 + $0x410] sm:$0xff]
    %v1884 = vld [vmem:[#allocation8 + $0x418] sm:$0xff]
    %v1885 = vld [vmem:[#allocation8 + $0x420] sm:$0xff]
    %v1886 = vld [vmem:[#allocation8 + $0x428] sm:$0xff]
    %v1887 = vld [vmem:[#allocation8 + $0x430] sm:$0xff]
    %v1888 = vld [vmem:[#allocation8 + $0x438] sm:$0xff]
    %v1889 = vld [vmem:[#allocation8 + $0x440] sm:$0xff]
    %v1890 = vld [vmem:[#allocation8 + $0x448] sm:$0xff]
    %v1891 = vld [vmem:[#allocation8 + $0x450] sm:$0xff]
    %v1892 = vld [vmem:[#allocation8 + $0x458] sm:$0xff]
    %v1893 = vld [vmem:[#allocation8 + $0x460] sm:$0xff]
    %v1894 = vld [vmem:[#allocation8 + $0x468] sm:$0xff]
    %v1895 = vld [vmem:[#allocation8 + $0x470] sm:$0xff]
    %v1896 = vld [vmem:[#allocation8 + $0x478] sm:$0xff]
    %v1897 = vld [vmem:[#allocation8 + $0x480] sm:$0xff]
    %v1898 = vld [vmem:[#allocation8 + $0x488] sm:$0xff]
    %v1899 = vld [vmem:[#allocation8 + $0x490] sm:$0xff]
    %v1900 = vld [vmem:[#allocation8 + $0x498] sm:$0xff]
    %v1901 = vld [vmem:[#allocation8 + $0x4a0] sm:$0xff]
    %v1902 = vld [vmem:[#allocation8 + $0x4a8] sm:$0xff]
    %v1903 = vld [vmem:[#allocation8 + $0x4b0] sm:$0xff]
    %v1904 = vld [vmem:[#allocation8 + $0x4b8] sm:$0xff]
    %v1905 = vld [vmem:[#allocation8 + $0x4c0] sm:$0xff]
    %v1906 = vld [vmem:[#allocation8 + $0x4c8] sm:$0xff]
    %v1907 = vld [vmem:[#allocation8 + $0x4d0] sm:$0xff]
    %v1908 = vld [vmem:[#allocation8 + $0x4d8] sm:$0xff]
    %v1909 = vld [vmem:[#allocation8 + $0x4e0] sm:$0xff]
    %v1910 = vld [vmem:[#allocation8 + $0x4e8] sm:$0xff]
    %v1911 = vld [vmem:[#allocation8 + $0x4f0] sm:$0xff]
    %v1912 = vld [vmem:[#allocation8 + $0x4f8] sm:$0xff]
    %v1913 = vld [vmem:[#allocation8 + $0x500] sm:$0xff]
    %v1914 = vld [vmem:[#allocation8 + $0x508] sm:$0xff]
    %v1915 = vld [vmem:[#allocation8 + $0x510] sm:$0xff]
    %v1916 = vld [vmem:[#allocation8 + $0x518] sm:$0xff]
    %v1917 = vld [vmem:[#allocation8 + $0x520] sm:$0xff]
    %v1918 = vld [vmem:[#allocation8 + $0x528] sm:$0xff]
    %v1919 = vld [vmem:[#allocation8 + $0x530] sm:$0xff]
    %v1920 = vld [vmem:[#allocation8 + $0x538] sm:$0xff]
    %v1921 = vld [vmem:[#allocation8 + $0x540] sm:$0xff]
    %v1922 = vld [vmem:[#allocation8 + $0x548] sm:$0xff]
    %v1923 = vld [vmem:[#allocation8 + $0x550] sm:$0xff]
    %v1924 = vld [vmem:[#allocation8 + $0x558] sm:$0xff]
    %v1925 = vld [vmem:[#allocation8 + $0x560] sm:$0xff]
    %v1926 = vld [vmem:[#allocation8 + $0x568] sm:$0xff]
    %v1927 = vld [vmem:[#allocation8 + $0x570] sm:$0xff]
    %v1928 = vld [vmem:[#allocation8 + $0x578] sm:$0xff]
    %v1929 = vld [vmem:[#allocation8 + $0x580] sm:$0xff]
    %v1930 = vld [vmem:[#allocation8 + $0x588] sm:$0xff]
    %v1931 = vld [vmem:[#allocation8 + $0x590] sm:$0xff]
    %v1932 = vld [vmem:[#allocation8 + $0x598] sm:$0xff]
    %v1933 = vld [vmem:[#allocation8 + $0x5a0] sm:$0xff]
    %v1934 = vld [vmem:[#allocation8 + $0x5a8] sm:$0xff]
    %v1935 = vld [vmem:[#allocation8 + $0x5b0] sm:$0xff]
    %v1936 = vld [vmem:[#allocation8 + $0x5b8] sm:$0xff]
    %v1937 = vld [vmem:[#allocation8 + $0x5c0] sm:$0xff]
    %v1938 = vld [vmem:[#allocation8 + $0x5c8] sm:$0xff]
    %v1939 = vld [vmem:[#allocation8 + $0x5d0] sm:$0xff]
    %v1940 = vld [vmem:[#allocation8 + $0x5d8] sm:$0xff]
    %v1941 = vld [vmem:[#allocation8 + $0x5e0] sm:$0xff]
    %v1942 = vld [vmem:[#allocation8 + $0x5e8] sm:$0xff]
    %v1943 = vld [vmem:[#allocation8 + $0x5f0] sm:$0xff]
    %v1944 = vld [vmem:[#allocation8 + $0x5f8] sm:$0xff]
    %v1945 = vld [vmem:[#allocation8 + $0x600] sm:$0xff]
    %v1946 = vld [vmem:[#allocation8 + $0x608] sm:$0xff]
    %v1947 = vld [vmem:[#allocation8 + $0x610] sm:$0xff]
    %v1948 = vld [vmem:[#allocation8 + $0x618] sm:$0xff]
    %v1949 = vld [vmem:[#allocation8 + $0x620] sm:$0xff]
    %v1950 = vld [vmem:[#allocation8 + $0x628] sm:$0xff]
    %v1951 = vld [vmem:[#allocation8 + $0x630] sm:$0xff]
    %v1952 = vld [vmem:[#allocation8 + $0x638] sm:$0xff]
    %v1953 = vld [vmem:[#allocation8 + $0x640] sm:$0xff]
    %v1954 = vld [vmem:[#allocation8 + $0x648] sm:$0xff]
    %v1955 = vld [vmem:[#allocation8 + $0x650] sm:$0xff]
    %v1956 = vld [vmem:[#allocation8 + $0x658] sm:$0xff]
    %v1957 = vld [vmem:[#allocation8 + $0x660] sm:$0xff]
    %v1958 = vld [vmem:[#allocation8 + $0x668] sm:$0xff]
    %v1959 = vld [vmem:[#allocation8 + $0x670] sm:$0xff]
    %v1960 = vld [vmem:[#allocation8 + $0x678] sm:$0xff]
    %v1961 = vld [vmem:[#allocation8 + $0x680] sm:$0xff]
    %v1962 = vld [vmem:[#allocation8 + $0x688] sm:$0xff]
    %v1963 = vld [vmem:[#allocation8 + $0x690] sm:$0xff]
    %v1964 = vld [vmem:[#allocation8 + $0x698] sm:$0xff]
    %v1965 = vld [vmem:[#allocation8 + $0x6a0] sm:$0xff]
    %v1966 = vld [vmem:[#allocation8 + $0x6a8] sm:$0xff]
    %v1967 = vld [vmem:[#allocation8 + $0x6b0] sm:$0xff]
    %v1968 = vld [vmem:[#allocation8 + $0x6b8] sm:$0xff]
    %v1969 = vld [vmem:[#allocation8 + $0x6c0] sm:$0xff]
    %v1970 = vld [vmem:[#allocation8 + $0x6c8] sm:$0xff]
    %v1971 = vld [vmem:[#allocation8 + $0x6d0] sm:$0xff]
    %v1972 = vld [vmem:[#allocation8 + $0x6d8] sm:$0xff]
    %v1973 = vld [vmem:[#allocation8 + $0x6e0] sm:$0xff]
    %v1974 = vld [vmem:[#allocation8 + $0x6e8] sm:$0xff]
    %v1975 = vld [vmem:[#allocation8 + $0x6f0] sm:$0xff]
    %v1976 = vld [vmem:[#allocation8 + $0x6f8] sm:$0xff]
    %v1977 = vld [vmem:[#allocation8 + $0x700] sm:$0xff]
    %v1978 = vld [vmem:[#allocation8 + $0x708] sm:$0xff]
    %v1979 = vld [vmem:[#allocation8 + $0x710] sm:$0xff]
    %v1980 = vld [vmem:[#allocation8 + $0x718] sm:$0xff]
    %v1981 = vld [vmem:[#allocation8 + $0x720] sm:$0xff]
    %v1982 = vld [vmem:[#allocation8 + $0x728] sm:$0xff]
    %v1983 = vld [vmem:[#allocation8 + $0x730] sm:$0xff]
    %v1984 = vld [vmem:[#allocation8 + $0x738] sm:$0xff]
    %v1985 = vld [vmem:[#allocation8 + $0x740] sm:$0xff]
    %v1986 = vld [vmem:[#allocation8 + $0x748] sm:$0xff]
    %v1987 = vld [vmem:[#allocation8 + $0x750] sm:$0xff]
    %v1988 = vld [vmem:[#allocation8 + $0x758] sm:$0xff]
    %v1989 = vld [vmem:[#allocation8 + $0x760] sm:$0xff]
    %v1990 = vld [vmem:[#allocation8 + $0x768] sm:$0xff]
    %v1991 = vld [vmem:[#allocation8 + $0x770] sm:$0xff]
    %v1992 = vld [vmem:[#allocation8 + $0x778] sm:$0xff]
    %v1993 = vld [vmem:[#allocation8 + $0x780] sm:$0xff]
    %v1994 = vld [vmem:[#allocation8 + $0x788] sm:$0xff]
    %v1995 = vld [vmem:[#allocation8 + $0x790] sm:$0xff]
    %v1996 = vld [vmem:[#allocation8 + $0x798] sm:$0xff]
    %v1997 = vld [vmem:[#allocation8 + $0x7a0] sm:$0xff]
    %v1998 = vld [vmem:[#allocation8 + $0x7a8] sm:$0xff]
    %v1999 = vld [vmem:[#allocation8 + $0x7b0] sm:$0xff]
    %v2000 = vld [vmem:[#allocation8 + $0x7b8] sm:$0xff]
    %v2001 = vld [vmem:[#allocation8 + $0x7c0] sm:$0xff]
    %v2002 = vld [vmem:[#allocation8 + $0x7c8] sm:$0xff]
    %v2003 = vld [vmem:[#allocation8 + $0x7d0] sm:$0xff]
    %v2004 = vld [vmem:[#allocation8 + $0x7d8] sm:$0xff]
    %v2005 = vld [vmem:[#allocation8 + $0x7e0] sm:$0xff]
    %v2006 = vld [vmem:[#allocation8 + $0x7e8] sm:$0xff]
    %v2007 = vld [vmem:[#allocation8 + $0x7f0] sm:$0xff]
    %v2008 = vld [vmem:[#allocation8 + $0x7f8] sm:$0xff]
    %v2009 = vld [vmem:[#allocation8 + $0x800] sm:$0xff]
    %v2010 = vld [vmem:[#allocation8 + $0x808] sm:$0xff]
    %v2011 = vld [vmem:[#allocation8 + $0x810] sm:$0xff]
    %v2012 = vld [vmem:[#allocation8 + $0x818] sm:$0xff]
    %v2013 = vld [vmem:[#allocation8 + $0x820] sm:$0xff]
    %v2014 = vld [vmem:[#allocation8 + $0x828] sm:$0xff]
    %v2015 = vld [vmem:[#allocation8 + $0x830] sm:$0xff]
    %v2016 = vld [vmem:[#allocation8 + $0x838] sm:$0xff]
    %v2017 = vld [vmem:[#allocation8 + $0x840] sm:$0xff]
    %v2018 = vld [vmem:[#allocation8 + $0x848] sm:$0xff]
    %v2019 = vld [vmem:[#allocation8 + $0x850] sm:$0xff]
    %v2020 = vld [vmem:[#allocation8 + $0x858] sm:$0xff]
    %v2021 = vld [vmem:[#allocation8 + $0x860] sm:$0xff]
    %v2022 = vld [vmem:[#allocation8 + $0x868] sm:$0xff]
    %v2023 = vld [vmem:[#allocation8 + $0x870] sm:$0xff]
    %v2024 = vld [vmem:[#allocation8 + $0x878] sm:$0xff]
    %v2025 = vld [vmem:[#allocation8 + $0x880] sm:$0xff]
    %v2026 = vld [vmem:[#allocation8 + $0x888] sm:$0xff]
    %v2027 = vld [vmem:[#allocation8 + $0x890] sm:$0xff]
    %v2028 = vld [vmem:[#allocation8 + $0x898] sm:$0xff]
    %v2029 = vld [vmem:[#allocation8 + $0x8a0] sm:$0xff]
    %v2030 = vld [vmem:[#allocation8 + $0x8a8] sm:$0xff]
    %v2031 = vld [vmem:[#allocation8 + $0x8b0] sm:$0xff]
    %v2032 = vld [vmem:[#allocation8 + $0x8b8] sm:$0xff]
    %v2033 = vld [vmem:[#allocation8 + $0x8c0] sm:$0xff]
    %v2034 = vld [vmem:[#allocation8 + $0x8c8] sm:$0xff]
    %v2035 = vld [vmem:[#allocation8 + $0x8d0] sm:$0xff]
    %v2036 = vld [vmem:[#allocation8 + $0x8d8] sm:$0xff]
    %v2037 = vld [vmem:[#allocation8 + $0x8e0] sm:$0xff]
    %v2038 = vld [vmem:[#allocation8 + $0x8e8] sm:$0xff]
    %v2039 = vld [vmem:[#allocation8 + $0x8f0] sm:$0xff]
    %v2040 = vld [vmem:[#allocation8 + $0x8f8] sm:$0xff]
    %v2077 = vunpack.c.l.b16 %v1717
    %v2078 = vunpack.c.h.b16 %v1717
    %v2079 = vunpack.c.l.b16 %v1718
    %v2080 = vunpack.c.h.b16 %v1718
    %v2081 = vunpack.c.l.b16 %v1719
    %v2082 = vunpack.c.h.b16 %v1719
    %v2083 = vunpack.c.l.b16 %v1720
    %v2084 = vunpack.c.h.b16 %v1720
    %v2085 = vunpack.c.l.b16 %v1721
    %v2086 = vunpack.c.h.b16 %v1721
    %v2087 = vunpack.c.l.b16 %v1722
    %v2088 = vunpack.c.h.b16 %v1722
    %v2089 = vunpack.c.l.b16 %v1723
    %v2090 = vunpack.c.h.b16 %v1723
    %v2091 = vunpack.c.l.b16 %v1724
    %v2092 = vunpack.c.h.b16 %v1724
    %v2093 = vunpack.c.l.b16 %v1725
    %v2094 = vunpack.c.h.b16 %v1725
    %v2095 = vunpack.c.l.b16 %v1726
    %v2096 = vunpack.c.h.b16 %v1726
    %v2097 = vunpack.c.l.b16 %v1727
    %v2098 = vunpack.c.h.b16 %v1727
    %v2099 = vunpack.c.l.b16 %v1728
    %v2100 = vunpack.c.h.b16 %v1728
    %v2101 = vunpack.c.l.b16 %v1729
    %v2102 = vunpack.c.h.b16 %v1729
    %v2103 = vunpack.c.l.b16 %v1730
    %v2104 = vunpack.c.h.b16 %v1730
    %v2105 = vunpack.c.l.b16 %v1731
    %v2106 = vunpack.c.h.b16 %v1731
    %v2107 = vunpack.c.l.b16 %v1732
    %v2108 = vunpack.c.h.b16 %v1732
    %v2109 = vunpack.c.l.b16 %v1733
    %v2110 = vunpack.c.h.b16 %v1733
    %v2111 = vunpack.c.l.b16 %v1734
    %v2112 = vunpack.c.h.b16 %v1734
    %v2113 = vunpack.c.l.b16 %v1735
    %v2114 = vunpack.c.h.b16 %v1735
    %v2115 = vunpack.c.l.b16 %v1736
    %v2116 = vunpack.c.h.b16 %v1736
    %v2117 = vunpack.c.l.b16 %v1737
    %v2118 = vunpack.c.h.b16 %v1737
    %v2119 = vunpack.c.l.b16 %v1738
    %v2120 = vunpack.c.h.b16 %v1738
    %v2121 = vunpack.c.l.b16 %v1739
    %v2122 = vunpack.c.h.b16 %v1739
    %v2123 = vunpack.c.l.b16 %v1740
    %v2124 = vunpack.c.h.b16 %v1740
    %v2125 = vunpack.c.l.b16 %v1741
    %v2126 = vunpack.c.h.b16 %v1741
    %v2127 = vunpack.c.l.b16 %v1742
    %v2128 = vunpack.c.h.b16 %v1742
    %v2129 = vunpack.c.l.b16 %v1743
    %v2130 = vunpack.c.h.b16 %v1743
    %v2131 = vunpack.c.l.b16 %v1744
    %v2132 = vunpack.c.h.b16 %v1744
    %v2133 = vunpack.c.l.b16 %v1745
    %v2134 = vunpack.c.h.b16 %v1745
    %v2135 = vunpack.c.l.b16 %v1746
    %v2136 = vunpack.c.h.b16 %v1746
    %v2137 = vunpack.c.l.b16 %v1747
    %v2138 = vunpack.c.h.b16 %v1747
    %v2139 = vunpack.c.l.b16 %v1748
    %v2140 = vunpack.c.h.b16 %v1748
    %v2141 = vunpack.c.l.b16 %v1749
    %v2142 = vunpack.c.h.b16 %v1749
    %v2143 = vunpack.c.l.b16 %v1750
    %v2144 = vunpack.c.h.b16 %v1750
    %v2145 = vunpack.c.l.b16 %v1751
    %v2146 = vunpack.c.h.b16 %v1751
    %v2147 = vunpack.c.l.b16 %v1752
    %v2148 = vunpack.c.h.b16 %v1752
    %v2149 = vpack.c.b16 %v2095, %v2077
    %v2150 = vpack.c.b16 %v2096, %v2078
    %v2151 = vpack.c.b16 %v2097, %v2079
    %v2152 = vpack.c.b16 %v2098, %v2080
    %v2153 = vpack.c.b16 %v2099, %v2081
    %v2154 = vpack.c.b16 %v2100, %v2082
    %v2155 = vpack.c.b16 %v2101, %v2083
    %v2156 = vpack.c.b16 %v2102, %v2084
    %v2157 = vpack.c.b16 %v2103, %v2085
    %v2158 = vpack.c.b16 %v2104, %v2086
    %v2159 = vpack.c.b16 %v2105, %v2087
    %v2160 = vpack.c.b16 %v2106, %v2088
    %v2161 = vpack.c.b16 %v2107, %v2089
    %v2162 = vpack.c.b16 %v2108, %v2090
    %v2163 = vpack.c.b16 %v2109, %v2091
    %v2164 = vpack.c.b16 %v2110, %v2092
    %v2165 = vpack.c.b16 %v2111, %v2093
    %v2166 = vpack.c.b16 %v2112, %v2094
    %v2167 = vpack.c.b16 %v2131, %v2113
    %v2168 = vpack.c.b16 %v2132, %v2114
    %v2169 = vpack.c.b16 %v2133, %v2115
    %v2170 = vpack.c.b16 %v2134, %v2116
    %v2171 = vpack.c.b16 %v2135, %v2117
    %v2172 = vpack.c.b16 %v2136, %v2118
    %v2173 = vpack.c.b16 %v2137, %v2119
    %v2174 = vpack.c.b16 %v2138, %v2120
    %v2175 = vpack.c.b16 %v2139, %v2121
    %v2176 = vpack.c.b16 %v2140, %v2122
    %v2177 = vpack.c.b16 %v2141, %v2123
    %v2178 = vpack.c.b16 %v2142, %v2124
    %v2179 = vpack.c.b16 %v2143, %v2125
    %v2180 = vpack.c.b16 %v2144, %v2126
    %v2181 = vpack.c.b16 %v2145, %v2127
    %v2182 = vpack.c.b16 %v2146, %v2128
    %v2183 = vpack.c.b16 %v2147, %v2129
    %v2184 = vpack.c.b16 %v2148, %v2130
    %v2509 = vunpack.c.l.b16 %v1753
    %v2510 = vunpack.c.h.b16 %v1753
    %v2511 = vunpack.c.l.b16 %v1754
    %v2512 = vunpack.c.h.b16 %v1754
    %v2513 = vunpack.c.l.b16 %v1755
    %v2514 = vunpack.c.h.b16 %v1755
    %v2515 = vunpack.c.l.b16 %v1756
    %v2516 = vunpack.c.h.b16 %v1756
    %v2517 = vunpack.c.l.b16 %v1757
    %v2518 = vunpack.c.h.b16 %v1757
    %v2519 = vunpack.c.l.b16 %v1758
    %v2520 = vunpack.c.h.b16 %v1758
    %v2521 = vunpack.c.l.b16 %v1759
    %v2522 = vunpack.c.h.b16 %v1759
    %v2523 = vunpack.c.l.b16 %v1760
    %v2524 = vunpack.c.h.b16 %v1760
    %v2525 = vunpack.c.l.b16 %v1761
    %v2526 = vunpack.c.h.b16 %v1761
    %v2527 = vunpack.c.l.b16 %v1762
    %v2528 = vunpack.c.h.b16 %v1762
    %v2529 = vunpack.c.l.b16 %v1763
    %v2530 = vunpack.c.h.b16 %v1763
    %v2531 = vunpack.c.l.b16 %v1764
    %v2532 = vunpack.c.h.b16 %v1764
    %v2533 = vunpack.c.l.b16 %v1765
    %v2534 = vunpack.c.h.b16 %v1765
    %v2535 = vunpack.c.l.b16 %v1766
    %v2536 = vunpack.c.h.b16 %v1766
    %v2537 = vunpack.c.l.b16 %v1767
    %v2538 = vunpack.c.h.b16 %v1767
    %v2539 = vunpack.c.l.b16 %v1768
    %v2540 = vunpack.c.h.b16 %v1768
    %v2541 = vunpack.c.l.b16 %v1769
    %v2542 = vunpack.c.h.b16 %v1769
    %v2543 = vunpack.c.l.b16 %v1770
    %v2544 = vunpack.c.h.b16 %v1770
    %v2545 = vunpack.c.l.b16 %v1771
    %v2546 = vunpack.c.h.b16 %v1771
    %v2547 = vunpack.c.l.b16 %v1772
    %v2548 = vunpack.c.h.b16 %v1772
    %v2549 = vunpack.c.l.b16 %v1773
    %v2550 = vunpack.c.h.b16 %v1773
    %v2551 = vunpack.c.l.b16 %v1774
    %v2552 = vunpack.c.h.b16 %v1774
    %v2553 = vunpack.c.l.b16 %v1775
    %v2554 = vunpack.c.h.b16 %v1775
    %v2555 = vunpack.c.l.b16 %v1776
    %v2556 = vunpack.c.h.b16 %v1776
    %v2557 = vunpack.c.l.b16 %v1777
    %v2558 = vunpack.c.h.b16 %v1777
    %v2559 = vunpack.c.l.b16 %v1778
    %v2560 = vunpack.c.h.b16 %v1778
    %v2561 = vunpack.c.l.b16 %v1779
    %v2562 = vunpack.c.h.b16 %v1779
    %v2563 = vunpack.c.l.b16 %v1780
    %v2564 = vunpack.c.h.b16 %v1780
    %v2565 = vunpack.c.l.b16 %v1781
    %v2566 = vunpack.c.h.b16 %v1781
    %v2567 = vunpack.c.l.b16 %v1782
    %v2568 = vunpack.c.h.b16 %v1782
    %v2569 = vunpack.c.l.b16 %v1783
    %v2570 = vunpack.c.h.b16 %v1783
    %v2571 = vunpack.c.l.b16 %v1784
    %v2572 = vunpack.c.h.b16 %v1784
    %v2573 = vunpack.c.l.b16 %v1785
    %v2574 = vunpack.c.h.b16 %v1785
    %v2575 = vunpack.c.l.b16 %v1786
    %v2576 = vunpack.c.h.b16 %v1786
    %v2577 = vunpack.c.l.b16 %v1787
    %v2578 = vunpack.c.h.b16 %v1787
    %v2579 = vunpack.c.l.b16 %v1788
    %v2580 = vunpack.c.h.b16 %v1788
    %v2581 = vunpack.c.l.b16 %v1789
    %v2582 = vunpack.c.h.b16 %v1789
    %v2583 = vunpack.c.l.b16 %v1790
    %v2584 = vunpack.c.h.b16 %v1790
    %v2585 = vunpack.c.l.b16 %v1791
    %v2586 = vunpack.c.h.b16 %v1791
    %v2587 = vunpack.c.l.b16 %v1792
    %v2588 = vunpack.c.h.b16 %v1792
    %v2589 = vunpack.c.l.b16 %v1793
    %v2590 = vunpack.c.h.b16 %v1793
    %v2591 = vunpack.c.l.b16 %v1794
    %v2592 = vunpack.c.h.b16 %v1794
    %v2593 = vunpack.c.l.b16 %v1795
    %v2594 = vunpack.c.h.b16 %v1795
    %v2595 = vunpack.c.l.b16 %v1796
    %v2596 = vunpack.c.h.b16 %v1796
    %v2597 = vunpack.c.l.b16 %v1797
    %v2598 = vunpack.c.h.b16 %v1797
    %v2599 = vunpack.c.l.b16 %v1798
    %v2600 = vunpack.c.h.b16 %v1798
    %v2601 = vunpack.c.l.b16 %v1799
    %v2602 = vunpack.c.h.b16 %v1799
    %v2603 = vunpack.c.l.b16 %v1800
    %v2604 = vunpack.c.h.b16 %v1800
    %v2605 = vunpack.c.l.b16 %v1801
    %v2606 = vunpack.c.h.b16 %v1801
    %v2607 = vunpack.c.l.b16 %v1802
    %v2608 = vunpack.c.h.b16 %v1802
    %v2609 = vunpack.c.l.b16 %v1803
    %v2610 = vunpack.c.h.b16 %v1803
    %v2611 = vunpack.c.l.b16 %v1804
    %v2612 = vunpack.c.h.b16 %v1804
    %v2613 = vunpack.c.l.b16 %v1805
    %v2614 = vunpack.c.h.b16 %v1805
    %v2615 = vunpack.c.l.b16 %v1806
    %v2616 = vunpack.c.h.b16 %v1806
    %v2617 = vunpack.c.l.b16 %v1807
    %v2618 = vunpack.c.h.b16 %v1807
    %v2619 = vunpack.c.l.b16 %v1808
    %v2620 = vunpack.c.h.b16 %v1808
    %v2621 = vunpack.c.l.b16 %v1809
    %v2622 = vunpack.c.h.b16 %v1809
    %v2623 = vunpack.c.l.b16 %v1810
    %v2624 = vunpack.c.h.b16 %v1810
    %v2625 = vunpack.c.l.b16 %v1811
    %v2626 = vunpack.c.h.b16 %v1811
    %v2627 = vunpack.c.l.b16 %v1812
    %v2628 = vunpack.c.h.b16 %v1812
    %v2629 = vunpack.c.l.b16 %v1813
    %v2630 = vunpack.c.h.b16 %v1813
    %v2631 = vunpack.c.l.b16 %v1814
    %v2632 = vunpack.c.h.b16 %v1814
    %v2633 = vunpack.c.l.b16 %v1815
    %v2634 = vunpack.c.h.b16 %v1815
    %v2635 = vunpack.c.l.b16 %v1816
    %v2636 = vunpack.c.h.b16 %v1816
    %v2637 = vunpack.c.l.b16 %v1817
    %v2638 = vunpack.c.h.b16 %v1817
    %v2639 = vunpack.c.l.b16 %v1818
    %v2640 = vunpack.c.h.b16 %v1818
    %v2641 = vunpack.c.l.b16 %v1819
    %v2642 = vunpack.c.h.b16 %v1819
    %v2643 = vunpack.c.l.b16 %v1820
    %v2644 = vunpack.c.h.b16 %v1820
    %v2645 = vunpack.c.l.b16 %v1821
    %v2646 = vunpack.c.h.b16 %v1821
    %v2647 = vunpack.c.l.b16 %v1822
    %v2648 = vunpack.c.h.b16 %v1822
    %v2649 = vunpack.c.l.b16 %v1823
    %v2650 = vunpack.c.h.b16 %v1823
    %v2651 = vunpack.c.l.b16 %v1824
    %v2652 = vunpack.c.h.b16 %v1824
    %v2653 = vunpack.c.l.b16 %v1825
    %v2654 = vunpack.c.h.b16 %v1825
    %v2655 = vunpack.c.l.b16 %v1826
    %v2656 = vunpack.c.h.b16 %v1826
    %v2657 = vunpack.c.l.b16 %v1827
    %v2658 = vunpack.c.h.b16 %v1827
    %v2659 = vunpack.c.l.b16 %v1828
    %v2660 = vunpack.c.h.b16 %v1828
    %v2661 = vunpack.c.l.b16 %v1829
    %v2662 = vunpack.c.h.b16 %v1829
    %v2663 = vunpack.c.l.b16 %v1830
    %v2664 = vunpack.c.h.b16 %v1830
    %v2665 = vunpack.c.l.b16 %v1831
    %v2666 = vunpack.c.h.b16 %v1831
    %v2667 = vunpack.c.l.b16 %v1832
    %v2668 = vunpack.c.h.b16 %v1832
    %v2669 = vunpack.c.l.b16 %v1833
    %v2670 = vunpack.c.h.b16 %v1833
    %v2671 = vunpack.c.l.b16 %v1834
    %v2672 = vunpack.c.h.b16 %v1834
    %v2673 = vunpack.c.l.b16 %v1835
    %v2674 = vunpack.c.h.b16 %v1835
    %v2675 = vunpack.c.l.b16 %v1836
    %v2676 = vunpack.c.h.b16 %v1836
    %v2677 = vunpack.c.l.b16 %v1837
    %v2678 = vunpack.c.h.b16 %v1837
    %v2679 = vunpack.c.l.b16 %v1838
    %v2680 = vunpack.c.h.b16 %v1838
    %v2681 = vunpack.c.l.b16 %v1839
    %v2682 = vunpack.c.h.b16 %v1839
    %v2683 = vunpack.c.l.b16 %v1840
    %v2684 = vunpack.c.h.b16 %v1840
    %v2685 = vunpack.c.l.b16 %v1841
    %v2686 = vunpack.c.h.b16 %v1841
    %v2687 = vunpack.c.l.b16 %v1842
    %v2688 = vunpack.c.h.b16 %v1842
    %v2689 = vunpack.c.l.b16 %v1843
    %v2690 = vunpack.c.h.b16 %v1843
    %v2691 = vunpack.c.l.b16 %v1844
    %v2692 = vunpack.c.h.b16 %v1844
    %v2693 = vunpack.c.l.b16 %v1845
    %v2694 = vunpack.c.h.b16 %v1845
    %v2695 = vunpack.c.l.b16 %v1846
    %v2696 = vunpack.c.h.b16 %v1846
    %v2697 = vunpack.c.l.b16 %v1847
    %v2698 = vunpack.c.h.b16 %v1847
    %v2699 = vunpack.c.l.b16 %v1848
    %v2700 = vunpack.c.h.b16 %v1848
    %v2701 = vunpack.c.l.b16 %v1849
    %v2702 = vunpack.c.h.b16 %v1849
    %v2703 = vunpack.c.l.b16 %v1850
    %v2704 = vunpack.c.h.b16 %v1850
    %v2705 = vunpack.c.l.b16 %v1851
    %v2706 = vunpack.c.h.b16 %v1851
    %v2707 = vunpack.c.l.b16 %v1852
    %v2708 = vunpack.c.h.b16 %v1852
    %v2709 = vunpack.c.l.b16 %v1853
    %v2710 = vunpack.c.h.b16 %v1853
    %v2711 = vunpack.c.l.b16 %v1854
    %v2712 = vunpack.c.h.b16 %v1854
    %v2713 = vunpack.c.l.b16 %v1855
    %v2714 = vunpack.c.h.b16 %v1855
    %v2715 = vunpack.c.l.b16 %v1856
    %v2716 = vunpack.c.h.b16 %v1856
    %v2717 = vunpack.c.l.b16 %v1857
    %v2718 = vunpack.c.h.b16 %v1857
    %v2719 = vunpack.c.l.b16 %v1858
    %v2720 = vunpack.c.h.b16 %v1858
    %v2721 = vunpack.c.l.b16 %v1859
    %v2722 = vunpack.c.h.b16 %v1859
    %v2723 = vunpack.c.l.b16 %v1860
    %v2724 = vunpack.c.h.b16 %v1860
    %v2725 = vunpack.c.l.b16 %v1861
    %v2726 = vunpack.c.h.b16 %v1861
    %v2727 = vunpack.c.l.b16 %v1862
    %v2728 = vunpack.c.h.b16 %v1862
    %v2729 = vunpack.c.l.b16 %v1863
    %v2730 = vunpack.c.h.b16 %v1863
    %v2731 = vunpack.c.l.b16 %v1864
    %v2732 = vunpack.c.h.b16 %v1864
    %v2733 = vunpack.c.l.b16 %v1865
    %v2734 = vunpack.c.h.b16 %v1865
    %v2735 = vunpack.c.l.b16 %v1866
    %v2736 = vunpack.c.h.b16 %v1866
    %v2737 = vunpack.c.l.b16 %v1867
    %v2738 = vunpack.c.h.b16 %v1867
    %v2739 = vunpack.c.l.b16 %v1868
    %v2740 = vunpack.c.h.b16 %v1868
    %v2741 = vunpack.c.l.b16 %v1869
    %v2742 = vunpack.c.h.b16 %v1869
    %v2743 = vunpack.c.l.b16 %v1870
    %v2744 = vunpack.c.h.b16 %v1870
    %v2745 = vunpack.c.l.b16 %v1871
    %v2746 = vunpack.c.h.b16 %v1871
    %v2747 = vunpack.c.l.b16 %v1872
    %v2748 = vunpack.c.h.b16 %v1872
    %v2749 = vunpack.c.l.b16 %v1873
    %v2750 = vunpack.c.h.b16 %v1873
    %v2751 = vunpack.c.l.b16 %v1874
    %v2752 = vunpack.c.h.b16 %v1874
    %v2753 = vunpack.c.l.b16 %v1875
    %v2754 = vunpack.c.h.b16 %v1875
    %v2755 = vunpack.c.l.b16 %v1876
    %v2756 = vunpack.c.h.b16 %v1876
    %v2757 = vunpack.c.l.b16 %v1877
    %v2758 = vunpack.c.h.b16 %v1877
    %v2759 = vunpack.c.l.b16 %v1878
    %v2760 = vunpack.c.h.b16 %v1878
    %v2761 = vunpack.c.l.b16 %v1879
    %v2762 = vunpack.c.h.b16 %v1879
    %v2763 = vunpack.c.l.b16 %v1880
    %v2764 = vunpack.c.h.b16 %v1880
    %v2765 = vunpack.c.l.b16 %v1881
    %v2766 = vunpack.c.h.b16 %v1881
    %v2767 = vunpack.c.l.b16 %v1882
    %v2768 = vunpack.c.h.b16 %v1882
    %v2769 = vunpack.c.l.b16 %v1883
    %v2770 = vunpack.c.h.b16 %v1883
    %v2771 = vunpack.c.l.b16 %v1884
    %v2772 = vunpack.c.h.b16 %v1884
    %v2773 = vunpack.c.l.b16 %v1885
    %v2774 = vunpack.c.h.b16 %v1885
    %v2775 = vunpack.c.l.b16 %v1886
    %v2776 = vunpack.c.h.b16 %v1886
    %v2777 = vunpack.c.l.b16 %v1887
    %v2778 = vunpack.c.h.b16 %v1887
    %v2779 = vunpack.c.l.b16 %v1888
    %v2780 = vunpack.c.h.b16 %v1888
    %v2781 = vunpack.c.l.b16 %v1889
    %v2782 = vunpack.c.h.b16 %v1889
    %v2783 = vunpack.c.l.b16 %v1890
    %v2784 = vunpack.c.h.b16 %v1890
    %v2785 = vunpack.c.l.b16 %v1891
    %v2786 = vunpack.c.h.b16 %v1891
    %v2787 = vunpack.c.l.b16 %v1892
    %v2788 = vunpack.c.h.b16 %v1892
    %v2789 = vunpack.c.l.b16 %v1893
    %v2790 = vunpack.c.h.b16 %v1893
    %v2791 = vunpack.c.l.b16 %v1894
    %v2792 = vunpack.c.h.b16 %v1894
    %v2793 = vunpack.c.l.b16 %v1895
    %v2794 = vunpack.c.h.b16 %v1895
    %v2795 = vunpack.c.l.b16 %v1896
    %v2796 = vunpack.c.h.b16 %v1896
    %v2797 = vunpack.c.l.b16 %v1897
    %v2798 = vunpack.c.h.b16 %v1897
    %v2799 = vunpack.c.l.b16 %v1898
    %v2800 = vunpack.c.h.b16 %v1898
    %v2801 = vunpack.c.l.b16 %v1899
    %v2802 = vunpack.c.h.b16 %v1899
    %v2803 = vunpack.c.l.b16 %v1900
    %v2804 = vunpack.c.h.b16 %v1900
    %v2805 = vunpack.c.l.b16 %v1901
    %v2806 = vunpack.c.h.b16 %v1901
    %v2807 = vunpack.c.l.b16 %v1902
    %v2808 = vunpack.c.h.b16 %v1902
    %v2809 = vunpack.c.l.b16 %v1903
    %v2810 = vunpack.c.h.b16 %v1903
    %v2811 = vunpack.c.l.b16 %v1904
    %v2812 = vunpack.c.h.b16 %v1904
    %v2813 = vunpack.c.l.b16 %v1905
    %v2814 = vunpack.c.h.b16 %v1905
    %v2815 = vunpack.c.l.b16 %v1906
    %v2816 = vunpack.c.h.b16 %v1906
    %v2817 = vunpack.c.l.b16 %v1907
    %v2818 = vunpack.c.h.b16 %v1907
    %v2819 = vunpack.c.l.b16 %v1908
    %v2820 = vunpack.c.h.b16 %v1908
    %v2821 = vunpack.c.l.b16 %v1909
    %v2822 = vunpack.c.h.b16 %v1909
    %v2823 = vunpack.c.l.b16 %v1910
    %v2824 = vunpack.c.h.b16 %v1910
    %v2825 = vunpack.c.l.b16 %v1911
    %v2826 = vunpack.c.h.b16 %v1911
    %v2827 = vunpack.c.l.b16 %v1912
    %v2828 = vunpack.c.h.b16 %v1912
    %v2829 = vunpack.c.l.b16 %v1913
    %v2830 = vunpack.c.h.b16 %v1913
    %v2831 = vunpack.c.l.b16 %v1914
    %v2832 = vunpack.c.h.b16 %v1914
    %v2833 = vunpack.c.l.b16 %v1915
    %v2834 = vunpack.c.h.b16 %v1915
    %v2835 = vunpack.c.l.b16 %v1916
    %v2836 = vunpack.c.h.b16 %v1916
    %v2837 = vunpack.c.l.b16 %v1917
    %v2838 = vunpack.c.h.b16 %v1917
    %v2839 = vunpack.c.l.b16 %v1918
    %v2840 = vunpack.c.h.b16 %v1918
    %v2841 = vunpack.c.l.b16 %v1919
    %v2842 = vunpack.c.h.b16 %v1919
    %v2843 = vunpack.c.l.b16 %v1920
    %v2844 = vunpack.c.h.b16 %v1920
    %v2845 = vunpack.c.l.b16 %v1921
    %v2846 = vunpack.c.h.b16 %v1921
    %v2847 = vunpack.c.l.b16 %v1922
    %v2848 = vunpack.c.h.b16 %v1922
    %v2849 = vunpack.c.l.b16 %v1923
    %v2850 = vunpack.c.h.b16 %v1923
    %v2851 = vunpack.c.l.b16 %v1924
    %v2852 = vunpack.c.h.b16 %v1924
    %v2853 = vunpack.c.l.b16 %v1925
    %v2854 = vunpack.c.h.b16 %v1925
    %v2855 = vunpack.c.l.b16 %v1926
    %v2856 = vunpack.c.h.b16 %v1926
    %v2857 = vunpack.c.l.b16 %v1927
    %v2858 = vunpack.c.h.b16 %v1927
    %v2859 = vunpack.c.l.b16 %v1928
    %v2860 = vunpack.c.h.b16 %v1928
    %v2861 = vunpack.c.l.b16 %v1929
    %v2862 = vunpack.c.h.b16 %v1929
    %v2863 = vunpack.c.l.b16 %v1930
    %v2864 = vunpack.c.h.b16 %v1930
    %v2865 = vunpack.c.l.b16 %v1931
    %v2866 = vunpack.c.h.b16 %v1931
    %v2867 = vunpack.c.l.b16 %v1932
    %v2868 = vunpack.c.h.b16 %v1932
    %v2869 = vunpack.c.l.b16 %v1933
    %v2870 = vunpack.c.h.b16 %v1933
    %v2871 = vunpack.c.l.b16 %v1934
    %v2872 = vunpack.c.h.b16 %v1934
    %v2873 = vunpack.c.l.b16 %v1935
    %v2874 = vunpack.c.h.b16 %v1935
    %v2875 = vunpack.c.l.b16 %v1936
    %v2876 = vunpack.c.h.b16 %v1936
    %v2877 = vunpack.c.l.b16 %v1937
    %v2878 = vunpack.c.h.b16 %v1937
    %v2879 = vunpack.c.l.b16 %v1938
    %v2880 = vunpack.c.h.b16 %v1938
    %v2881 = vunpack.c.l.b16 %v1939
    %v2882 = vunpack.c.h.b16 %v1939
    %v2883 = vunpack.c.l.b16 %v1940
    %v2884 = vunpack.c.h.b16 %v1940
    %v2885 = vunpack.c.l.b16 %v1941
    %v2886 = vunpack.c.h.b16 %v1941
    %v2887 = vunpack.c.l.b16 %v1942
    %v2888 = vunpack.c.h.b16 %v1942
    %v2889 = vunpack.c.l.b16 %v1943
    %v2890 = vunpack.c.h.b16 %v1943
    %v2891 = vunpack.c.l.b16 %v1944
    %v2892 = vunpack.c.h.b16 %v1944
    %v2893 = vunpack.c.l.b16 %v1945
    %v2894 = vunpack.c.h.b16 %v1945
    %v2895 = vunpack.c.l.b16 %v1946
    %v2896 = vunpack.c.h.b16 %v1946
    %v2897 = vunpack.c.l.b16 %v1947
    %v2898 = vunpack.c.h.b16 %v1947
    %v2899 = vunpack.c.l.b16 %v1948
    %v2900 = vunpack.c.h.b16 %v1948
    %v2901 = vunpack.c.l.b16 %v1949
    %v2902 = vunpack.c.h.b16 %v1949
    %v2903 = vunpack.c.l.b16 %v1950
    %v2904 = vunpack.c.h.b16 %v1950
    %v2905 = vunpack.c.l.b16 %v1951
    %v2906 = vunpack.c.h.b16 %v1951
    %v2907 = vunpack.c.l.b16 %v1952
    %v2908 = vunpack.c.h.b16 %v1952
    %v2909 = vunpack.c.l.b16 %v1953
    %v2910 = vunpack.c.h.b16 %v1953
    %v2911 = vunpack.c.l.b16 %v1954
    %v2912 = vunpack.c.h.b16 %v1954
    %v2913 = vunpack.c.l.b16 %v1955
    %v2914 = vunpack.c.h.b16 %v1955
    %v2915 = vunpack.c.l.b16 %v1956
    %v2916 = vunpack.c.h.b16 %v1956
    %v2917 = vunpack.c.l.b16 %v1957
    %v2918 = vunpack.c.h.b16 %v1957
    %v2919 = vunpack.c.l.b16 %v1958
    %v2920 = vunpack.c.h.b16 %v1958
    %v2921 = vunpack.c.l.b16 %v1959
    %v2922 = vunpack.c.h.b16 %v1959
    %v2923 = vunpack.c.l.b16 %v1960
    %v2924 = vunpack.c.h.b16 %v1960
    %v2925 = vunpack.c.l.b16 %v1961
    %v2926 = vunpack.c.h.b16 %v1961
    %v2927 = vunpack.c.l.b16 %v1962
    %v2928 = vunpack.c.h.b16 %v1962
    %v2929 = vunpack.c.l.b16 %v1963
    %v2930 = vunpack.c.h.b16 %v1963
    %v2931 = vunpack.c.l.b16 %v1964
    %v2932 = vunpack.c.h.b16 %v1964
    %v2933 = vunpack.c.l.b16 %v1965
    %v2934 = vunpack.c.h.b16 %v1965
    %v2935 = vunpack.c.l.b16 %v1966
    %v2936 = vunpack.c.h.b16 %v1966
    %v2937 = vunpack.c.l.b16 %v1967
    %v2938 = vunpack.c.h.b16 %v1967
    %v2939 = vunpack.c.l.b16 %v1968
    %v2940 = vunpack.c.h.b16 %v1968
    %v2941 = vunpack.c.l.b16 %v1969
    %v2942 = vunpack.c.h.b16 %v1969
    %v2943 = vunpack.c.l.b16 %v1970
    %v2944 = vunpack.c.h.b16 %v1970
    %v2945 = vunpack.c.l.b16 %v1971
    %v2946 = vunpack.c.h.b16 %v1971
    %v2947 = vunpack.c.l.b16 %v1972
    %v2948 = vunpack.c.h.b16 %v1972
    %v2949 = vunpack.c.l.b16 %v1973
    %v2950 = vunpack.c.h.b16 %v1973
    %v2951 = vunpack.c.l.b16 %v1974
    %v2952 = vunpack.c.h.b16 %v1974
    %v2953 = vunpack.c.l.b16 %v1975
    %v2954 = vunpack.c.h.b16 %v1975
    %v2955 = vunpack.c.l.b16 %v1976
    %v2956 = vunpack.c.h.b16 %v1976
    %v2957 = vunpack.c.l.b16 %v1977
    %v2958 = vunpack.c.h.b16 %v1977
    %v2959 = vunpack.c.l.b16 %v1978
    %v2960 = vunpack.c.h.b16 %v1978
    %v2961 = vunpack.c.l.b16 %v1979
    %v2962 = vunpack.c.h.b16 %v1979
    %v2963 = vunpack.c.l.b16 %v1980
    %v2964 = vunpack.c.h.b16 %v1980
    %v2965 = vunpack.c.l.b16 %v1981
    %v2966 = vunpack.c.h.b16 %v1981
    %v2967 = vunpack.c.l.b16 %v1982
    %v2968 = vunpack.c.h.b16 %v1982
    %v2969 = vunpack.c.l.b16 %v1983
    %v2970 = vunpack.c.h.b16 %v1983
    %v2971 = vunpack.c.l.b16 %v1984
    %v2972 = vunpack.c.h.b16 %v1984
    %v2973 = vunpack.c.l.b16 %v1985
    %v2974 = vunpack.c.h.b16 %v1985
    %v2975 = vunpack.c.l.b16 %v1986
    %v2976 = vunpack.c.h.b16 %v1986
    %v2977 = vunpack.c.l.b16 %v1987
    %v2978 = vunpack.c.h.b16 %v1987
    %v2979 = vunpack.c.l.b16 %v1988
    %v2980 = vunpack.c.h.b16 %v1988
    %v2981 = vunpack.c.l.b16 %v1989
    %v2982 = vunpack.c.h.b16 %v1989
    %v2983 = vunpack.c.l.b16 %v1990
    %v2984 = vunpack.c.h.b16 %v1990
    %v2985 = vunpack.c.l.b16 %v1991
    %v2986 = vunpack.c.h.b16 %v1991
    %v2987 = vunpack.c.l.b16 %v1992
    %v2988 = vunpack.c.h.b16 %v1992
    %v2989 = vunpack.c.l.b16 %v1993
    %v2990 = vunpack.c.h.b16 %v1993
    %v2991 = vunpack.c.l.b16 %v1994
    %v2992 = vunpack.c.h.b16 %v1994
    %v2993 = vunpack.c.l.b16 %v1995
    %v2994 = vunpack.c.h.b16 %v1995
    %v2995 = vunpack.c.l.b16 %v1996
    %v2996 = vunpack.c.h.b16 %v1996
    %v2997 = vunpack.c.l.b16 %v1997
    %v2998 = vunpack.c.h.b16 %v1997
    %v2999 = vunpack.c.l.b16 %v1998
    %v3000 = vunpack.c.h.b16 %v1998
    %v3001 = vunpack.c.l.b16 %v1999
    %v3002 = vunpack.c.h.b16 %v1999
    %v3003 = vunpack.c.l.b16 %v2000
    %v3004 = vunpack.c.h.b16 %v2000
    %v3005 = vunpack.c.l.b16 %v2001
    %v3006 = vunpack.c.h.b16 %v2001
    %v3007 = vunpack.c.l.b16 %v2002
    %v3008 = vunpack.c.h.b16 %v2002
    %v3009 = vunpack.c.l.b16 %v2003
    %v3010 = vunpack.c.h.b16 %v2003
    %v3011 = vunpack.c.l.b16 %v2004
    %v3012 = vunpack.c.h.b16 %v2004
    %v3013 = vunpack.c.l.b16 %v2005
    %v3014 = vunpack.c.h.b16 %v2005
    %v3015 = vunpack.c.l.b16 %v2006
    %v3016 = vunpack.c.h.b16 %v2006
    %v3017 = vunpack.c.l.b16 %v2007
    %v3018 = vunpack.c.h.b16 %v2007
    %v3019 = vunpack.c.l.b16 %v2008
    %v3020 = vunpack.c.h.b16 %v2008
    %v3021 = vunpack.c.l.b16 %v2009
    %v3022 = vunpack.c.h.b16 %v2009
    %v3023 = vunpack.c.l.b16 %v2010
    %v3024 = vunpack.c.h.b16 %v2010
    %v3025 = vunpack.c.l.b16 %v2011
    %v3026 = vunpack.c.h.b16 %v2011
    %v3027 = vunpack.c.l.b16 %v2012
    %v3028 = vunpack.c.h.b16 %v2012
    %v3029 = vunpack.c.l.b16 %v2013
    %v3030 = vunpack.c.h.b16 %v2013
    %v3031 = vunpack.c.l.b16 %v2014
    %v3032 = vunpack.c.h.b16 %v2014
    %v3033 = vunpack.c.l.b16 %v2015
    %v3034 = vunpack.c.h.b16 %v2015
    %v3035 = vunpack.c.l.b16 %v2016
    %v3036 = vunpack.c.h.b16 %v2016
    %v3037 = vunpack.c.l.b16 %v2017
    %v3038 = vunpack.c.h.b16 %v2017
    %v3039 = vunpack.c.l.b16 %v2018
    %v3040 = vunpack.c.h.b16 %v2018
    %v3041 = vunpack.c.l.b16 %v2019
    %v3042 = vunpack.c.h.b16 %v2019
    %v3043 = vunpack.c.l.b16 %v2020
    %v3044 = vunpack.c.h.b16 %v2020
    %v3045 = vunpack.c.l.b16 %v2021
    %v3046 = vunpack.c.h.b16 %v2021
    %v3047 = vunpack.c.l.b16 %v2022
    %v3048 = vunpack.c.h.b16 %v2022
    %v3049 = vunpack.c.l.b16 %v2023
    %v3050 = vunpack.c.h.b16 %v2023
    %v3051 = vunpack.c.l.b16 %v2024
    %v3052 = vunpack.c.h.b16 %v2024
    %v3053 = vunpack.c.l.b16 %v2025
    %v3054 = vunpack.c.h.b16 %v2025
    %v3055 = vunpack.c.l.b16 %v2026
    %v3056 = vunpack.c.h.b16 %v2026
    %v3057 = vunpack.c.l.b16 %v2027
    %v3058 = vunpack.c.h.b16 %v2027
    %v3059 = vunpack.c.l.b16 %v2028
    %v3060 = vunpack.c.h.b16 %v2028
    %v3061 = vunpack.c.l.b16 %v2029
    %v3062 = vunpack.c.h.b16 %v2029
    %v3063 = vunpack.c.l.b16 %v2030
    %v3064 = vunpack.c.h.b16 %v2030
    %v3065 = vunpack.c.l.b16 %v2031
    %v3066 = vunpack.c.h.b16 %v2031
    %v3067 = vunpack.c.l.b16 %v2032
    %v3068 = vunpack.c.h.b16 %v2032
    %v3069 = vunpack.c.l.b16 %v2033
    %v3070 = vunpack.c.h.b16 %v2033
    %v3071 = vunpack.c.l.b16 %v2034
    %v3072 = vunpack.c.h.b16 %v2034
    %v3073 = vunpack.c.l.b16 %v2035
    %v3074 = vunpack.c.h.b16 %v2035
    %v3075 = vunpack.c.l.b16 %v2036
    %v3076 = vunpack.c.h.b16 %v2036
    %v3077 = vunpack.c.l.b16 %v2037
    %v3078 = vunpack.c.h.b16 %v2037
    %v3079 = vunpack.c.l.b16 %v2038
    %v3080 = vunpack.c.h.b16 %v2038
    %v3081 = vunpack.c.l.b16 %v2039
    %v3082 = vunpack.c.h.b16 %v2039
    %v3083 = vunpack.c.l.b16 %v2040
    %v3084 = vunpack.c.h.b16 %v2040
    %v3085 = vpack.c.b16 %v2511, %v2509
    %v3086 = vpack.c.b16 %v2512, %v2510
    %v3087 = vpack.c.b16 %v2515, %v2513
    %v3088 = vpack.c.b16 %v2516, %v2514
    %v3089 = vpack.c.b16 %v2519, %v2517
    %v3090 = vpack.c.b16 %v2520, %v2518
    %v3091 = vpack.c.b16 %v2523, %v2521
    %v3092 = vpack.c.b16 %v2524, %v2522
    %v3093 = vpack.c.b16 %v2527, %v2525
    %v3094 = vpack.c.b16 %v2528, %v2526
    %v3095 = vpack.c.b16 %v2531, %v2529
    %v3096 = vpack.c.b16 %v2532, %v2530
    %v3097 = vpack.c.b16 %v2535, %v2533
    %v3098 = vpack.c.b16 %v2536, %v2534
    %v3099 = vpack.c.b16 %v2539, %v2537
    %v3100 = vpack.c.b16 %v2540, %v2538
    %v3101 = vpack.c.b16 %v2543, %v2541
    %v3102 = vpack.c.b16 %v2544, %v2542
    %v3103 = vpack.c.b16 %v2547, %v2545
    %v3104 = vpack.c.b16 %v2548, %v2546
    %v3105 = vpack.c.b16 %v2551, %v2549
    %v3106 = vpack.c.b16 %v2552, %v2550
    %v3107 = vpack.c.b16 %v2555, %v2553
    %v3108 = vpack.c.b16 %v2556, %v2554
    %v3109 = vpack.c.b16 %v2559, %v2557
    %v3110 = vpack.c.b16 %v2560, %v2558
    %v3111 = vpack.c.b16 %v2563, %v2561
    %v3112 = vpack.c.b16 %v2564, %v2562
    %v3113 = vpack.c.b16 %v2567, %v2565
    %v3114 = vpack.c.b16 %v2568, %v2566
    %v3115 = vpack.c.b16 %v2571, %v2569
    %v3116 = vpack.c.b16 %v2572, %v2570
    %v3117 = vpack.c.b16 %v2575, %v2573
    %v3118 = vpack.c.b16 %v2576, %v2574
    %v3119 = vpack.c.b16 %v2579, %v2577
    %v3120 = vpack.c.b16 %v2580, %v2578
    %v3121 = vpack.c.b16 %v2583, %v2581
    %v3122 = vpack.c.b16 %v2584, %v2582
    %v3123 = vpack.c.b16 %v2587, %v2585
    %v3124 = vpack.c.b16 %v2588, %v2586
    %v3125 = vpack.c.b16 %v2591, %v2589
    %v3126 = vpack.c.b16 %v2592, %v2590
    %v3127 = vpack.c.b16 %v2595, %v2593
    %v3128 = vpack.c.b16 %v2596, %v2594
    %v3129 = vpack.c.b16 %v2599, %v2597
    %v3130 = vpack.c.b16 %v2600, %v2598
    %v3131 = vpack.c.b16 %v2603, %v2601
    %v3132 = vpack.c.b16 %v2604, %v2602
    %v3133 = vpack.c.b16 %v2607, %v2605
    %v3134 = vpack.c.b16 %v2608, %v2606
    %v3135 = vpack.c.b16 %v2611, %v2609
    %v3136 = vpack.c.b16 %v2612, %v2610
    %v3137 = vpack.c.b16 %v2615, %v2613
    %v3138 = vpack.c.b16 %v2616, %v2614
    %v3139 = vpack.c.b16 %v2619, %v2617
    %v3140 = vpack.c.b16 %v2620, %v2618
    %v3141 = vpack.c.b16 %v2623, %v2621
    %v3142 = vpack.c.b16 %v2624, %v2622
    %v3143 = vpack.c.b16 %v2627, %v2625
    %v3144 = vpack.c.b16 %v2628, %v2626
    %v3145 = vpack.c.b16 %v2631, %v2629
    %v3146 = vpack.c.b16 %v2632, %v2630
    %v3147 = vpack.c.b16 %v2635, %v2633
    %v3148 = vpack.c.b16 %v2636, %v2634
    %v3149 = vpack.c.b16 %v2639, %v2637
    %v3150 = vpack.c.b16 %v2640, %v2638
    %v3151 = vpack.c.b16 %v2643, %v2641
    %v3152 = vpack.c.b16 %v2644, %v2642
    %v3153 = vpack.c.b16 %v2647, %v2645
    %v3154 = vpack.c.b16 %v2648, %v2646
    %v3155 = vpack.c.b16 %v2651, %v2649
    %v3156 = vpack.c.b16 %v2652, %v2650
    %v3157 = vpack.c.b16 %v2655, %v2653
    %v3158 = vpack.c.b16 %v2656, %v2654
    %v3159 = vpack.c.b16 %v2659, %v2657
    %v3160 = vpack.c.b16 %v2660, %v2658
    %v3161 = vpack.c.b16 %v2663, %v2661
    %v3162 = vpack.c.b16 %v2664, %v2662
    %v3163 = vpack.c.b16 %v2667, %v2665
    %v3164 = vpack.c.b16 %v2668, %v2666
    %v3165 = vpack.c.b16 %v2671, %v2669
    %v3166 = vpack.c.b16 %v2672, %v2670
    %v3167 = vpack.c.b16 %v2675, %v2673
    %v3168 = vpack.c.b16 %v2676, %v2674
    %v3169 = vpack.c.b16 %v2679, %v2677
    %v3170 = vpack.c.b16 %v2680, %v2678
    %v3171 = vpack.c.b16 %v2683, %v2681
    %v3172 = vpack.c.b16 %v2684, %v2682
    %v3173 = vpack.c.b16 %v2687, %v2685
    %v3174 = vpack.c.b16 %v2688, %v2686
    %v3175 = vpack.c.b16 %v2691, %v2689
    %v3176 = vpack.c.b16 %v2692, %v2690
    %v3177 = vpack.c.b16 %v2695, %v2693
    %v3178 = vpack.c.b16 %v2696, %v2694
    %v3179 = vpack.c.b16 %v2699, %v2697
    %v3180 = vpack.c.b16 %v2700, %v2698
    %v3181 = vpack.c.b16 %v2703, %v2701
    %v3182 = vpack.c.b16 %v2704, %v2702
    %v3183 = vpack.c.b16 %v2707, %v2705
    %v3184 = vpack.c.b16 %v2708, %v2706
    %v3185 = vpack.c.b16 %v2711, %v2709
    %v3186 = vpack.c.b16 %v2712, %v2710
    %v3187 = vpack.c.b16 %v2715, %v2713
    %v3188 = vpack.c.b16 %v2716, %v2714
    %v3189 = vpack.c.b16 %v2719, %v2717
    %v3190 = vpack.c.b16 %v2720, %v2718
    %v3191 = vpack.c.b16 %v2723, %v2721
    %v3192 = vpack.c.b16 %v2724, %v2722
    %v3193 = vpack.c.b16 %v2727, %v2725
    %v3194 = vpack.c.b16 %v2728, %v2726
    %v3195 = vpack.c.b16 %v2731, %v2729
    %v3196 = vpack.c.b16 %v2732, %v2730
    %v3197 = vpack.c.b16 %v2735, %v2733
    %v3198 = vpack.c.b16 %v2736, %v2734
    %v3199 = vpack.c.b16 %v2739, %v2737
    %v3200 = vpack.c.b16 %v2740, %v2738
    %v3201 = vpack.c.b16 %v2743, %v2741
    %v3202 = vpack.c.b16 %v2744, %v2742
    %v3203 = vpack.c.b16 %v2747, %v2745
    %v3204 = vpack.c.b16 %v2748, %v2746
    %v3205 = vpack.c.b16 %v2751, %v2749
    %v3206 = vpack.c.b16 %v2752, %v2750
    %v3207 = vpack.c.b16 %v2755, %v2753
    %v3208 = vpack.c.b16 %v2756, %v2754
    %v3209 = vpack.c.b16 %v2759, %v2757
    %v3210 = vpack.c.b16 %v2760, %v2758
    %v3211 = vpack.c.b16 %v2763, %v2761
    %v3212 = vpack.c.b16 %v2764, %v2762
    %v3213 = vpack.c.b16 %v2767, %v2765
    %v3214 = vpack.c.b16 %v2768, %v2766
    %v3215 = vpack.c.b16 %v2771, %v2769
    %v3216 = vpack.c.b16 %v2772, %v2770
    %v3217 = vpack.c.b16 %v2775, %v2773
    %v3218 = vpack.c.b16 %v2776, %v2774
    %v3219 = vpack.c.b16 %v2779, %v2777
    %v3220 = vpack.c.b16 %v2780, %v2778
    %v3221 = vpack.c.b16 %v2783, %v2781
    %v3222 = vpack.c.b16 %v2784, %v2782
    %v3223 = vpack.c.b16 %v2787, %v2785
    %v3224 = vpack.c.b16 %v2788, %v2786
    %v3225 = vpack.c.b16 %v2791, %v2789
    %v3226 = vpack.c.b16 %v2792, %v2790
    %v3227 = vpack.c.b16 %v2795, %v2793
    %v3228 = vpack.c.b16 %v2796, %v2794
    %v3229 = vpack.c.b16 %v2799, %v2797
    %v3230 = vpack.c.b16 %v2800, %v2798
    %v3231 = vpack.c.b16 %v2803, %v2801
    %v3232 = vpack.c.b16 %v2804, %v2802
    %v3233 = vpack.c.b16 %v2807, %v2805
    %v3234 = vpack.c.b16 %v2808, %v2806
    %v3235 = vpack.c.b16 %v2811, %v2809
    %v3236 = vpack.c.b16 %v2812, %v2810
    %v3237 = vpack.c.b16 %v2815, %v2813
    %v3238 = vpack.c.b16 %v2816, %v2814
    %v3239 = vpack.c.b16 %v2819, %v2817
    %v3240 = vpack.c.b16 %v2820, %v2818
    %v3241 = vpack.c.b16 %v2823, %v2821
    %v3242 = vpack.c.b16 %v2824, %v2822
    %v3243 = vpack.c.b16 %v2827, %v2825
    %v3244 = vpack.c.b16 %v2828, %v2826
    %v3245 = vpack.c.b16 %v2831, %v2829
    %v3246 = vpack.c.b16 %v2832, %v2830
    %v3247 = vpack.c.b16 %v2835, %v2833
    %v3248 = vpack.c.b16 %v2836, %v2834
    %v3249 = vpack.c.b16 %v2839, %v2837
    %v3250 = vpack.c.b16 %v2840, %v2838
    %v3251 = vpack.c.b16 %v2843, %v2841
    %v3252 = vpack.c.b16 %v2844, %v2842
    %v3253 = vpack.c.b16 %v2847, %v2845
    %v3254 = vpack.c.b16 %v2848, %v2846
    %v3255 = vpack.c.b16 %v2851, %v2849
    %v3256 = vpack.c.b16 %v2852, %v2850
    %v3257 = vpack.c.b16 %v2855, %v2853
    %v3258 = vpack.c.b16 %v2856, %v2854
    %v3259 = vpack.c.b16 %v2859, %v2857
    %v3260 = vpack.c.b16 %v2860, %v2858
    %v3261 = vpack.c.b16 %v2863, %v2861
    %v3262 = vpack.c.b16 %v2864, %v2862
    %v3263 = vpack.c.b16 %v2867, %v2865
    %v3264 = vpack.c.b16 %v2868, %v2866
    %v3265 = vpack.c.b16 %v2871, %v2869
    %v3266 = vpack.c.b16 %v2872, %v2870
    %v3267 = vpack.c.b16 %v2875, %v2873
    %v3268 = vpack.c.b16 %v2876, %v2874
    %v3269 = vpack.c.b16 %v2879, %v2877
    %v3270 = vpack.c.b16 %v2880, %v2878
    %v3271 = vpack.c.b16 %v2883, %v2881
    %v3272 = vpack.c.b16 %v2884, %v2882
    %v3273 = vpack.c.b16 %v2887, %v2885
    %v3274 = vpack.c.b16 %v2888, %v2886
    %v3275 = vpack.c.b16 %v2891, %v2889
    %v3276 = vpack.c.b16 %v2892, %v2890
    %v3277 = vpack.c.b16 %v2895, %v2893
    %v3278 = vpack.c.b16 %v2896, %v2894
    %v3279 = vpack.c.b16 %v2899, %v2897
    %v3280 = vpack.c.b16 %v2900, %v2898
    %v3281 = vpack.c.b16 %v2903, %v2901
    %v3282 = vpack.c.b16 %v2904, %v2902
    %v3283 = vpack.c.b16 %v2907, %v2905
    %v3284 = vpack.c.b16 %v2908, %v2906
    %v3285 = vpack.c.b16 %v2911, %v2909
    %v3286 = vpack.c.b16 %v2912, %v2910
    %v3287 = vpack.c.b16 %v2915, %v2913
    %v3288 = vpack.c.b16 %v2916, %v2914
    %v3289 = vpack.c.b16 %v2919, %v2917
    %v3290 = vpack.c.b16 %v2920, %v2918
    %v3291 = vpack.c.b16 %v2923, %v2921
    %v3292 = vpack.c.b16 %v2924, %v2922
    %v3293 = vpack.c.b16 %v2927, %v2925
    %v3294 = vpack.c.b16 %v2928, %v2926
    %v3295 = vpack.c.b16 %v2931, %v2929
    %v3296 = vpack.c.b16 %v2932, %v2930
    %v3297 = vpack.c.b16 %v2935, %v2933
    %v3298 = vpack.c.b16 %v2936, %v2934
    %v3299 = vpack.c.b16 %v2939, %v2937
    %v3300 = vpack.c.b16 %v2940, %v2938
    %v3301 = vpack.c.b16 %v2943, %v2941
    %v3302 = vpack.c.b16 %v2944, %v2942
    %v3303 = vpack.c.b16 %v2947, %v2945
    %v3304 = vpack.c.b16 %v2948, %v2946
    %v3305 = vpack.c.b16 %v2951, %v2949
    %v3306 = vpack.c.b16 %v2952, %v2950
    %v3307 = vpack.c.b16 %v2955, %v2953
    %v3308 = vpack.c.b16 %v2956, %v2954
    %v3309 = vpack.c.b16 %v2959, %v2957
    %v3310 = vpack.c.b16 %v2960, %v2958
    %v3311 = vpack.c.b16 %v2963, %v2961
    %v3312 = vpack.c.b16 %v2964, %v2962
    %v3313 = vpack.c.b16 %v2967, %v2965
    %v3314 = vpack.c.b16 %v2968, %v2966
    %v3315 = vpack.c.b16 %v2971, %v2969
    %v3316 = vpack.c.b16 %v2972, %v2970
    %v3317 = vpack.c.b16 %v2975, %v2973
    %v3318 = vpack.c.b16 %v2976, %v2974
    %v3319 = vpack.c.b16 %v2979, %v2977
    %v3320 = vpack.c.b16 %v2980, %v2978
    %v3321 = vpack.c.b16 %v2983, %v2981
    %v3322 = vpack.c.b16 %v2984, %v2982
    %v3323 = vpack.c.b16 %v2987, %v2985
    %v3324 = vpack.c.b16 %v2988, %v2986
    %v3325 = vpack.c.b16 %v2991, %v2989
    %v3326 = vpack.c.b16 %v2992, %v2990
    %v3327 = vpack.c.b16 %v2995, %v2993
    %v3328 = vpack.c.b16 %v2996, %v2994
    %v3329 = vpack.c.b16 %v2999, %v2997
    %v3330 = vpack.c.b16 %v3000, %v2998
    %v3331 = vpack.c.b16 %v3003, %v3001
    %v3332 = vpack.c.b16 %v3004, %v3002
    %v3333 = vpack.c.b16 %v3007, %v3005
    %v3334 = vpack.c.b16 %v3008, %v3006
    %v3335 = vpack.c.b16 %v3011, %v3009
    %v3336 = vpack.c.b16 %v3012, %v3010
    %v3337 = vpack.c.b16 %v3015, %v3013
    %v3338 = vpack.c.b16 %v3016, %v3014
    %v3339 = vpack.c.b16 %v3019, %v3017
    %v3340 = vpack.c.b16 %v3020, %v3018
    %v3341 = vpack.c.b16 %v3023, %v3021
    %v3342 = vpack.c.b16 %v3024, %v3022
    %v3343 = vpack.c.b16 %v3027, %v3025
    %v3344 = vpack.c.b16 %v3028, %v3026
    %v3345 = vpack.c.b16 %v3031, %v3029
    %v3346 = vpack.c.b16 %v3032, %v3030
    %v3347 = vpack.c.b16 %v3035, %v3033
    %v3348 = vpack.c.b16 %v3036, %v3034
    %v3349 = vpack.c.b16 %v3039, %v3037
    %v3350 = vpack.c.b16 %v3040, %v3038
    %v3351 = vpack.c.b16 %v3043, %v3041
    %v3352 = vpack.c.b16 %v3044, %v3042
    %v3353 = vpack.c.b16 %v3047, %v3045
    %v3354 = vpack.c.b16 %v3048, %v3046
    %v3355 = vpack.c.b16 %v3051, %v3049
    %v3356 = vpack.c.b16 %v3052, %v3050
    %v3357 = vpack.c.b16 %v3055, %v3053
    %v3358 = vpack.c.b16 %v3056, %v3054
    %v3359 = vpack.c.b16 %v3059, %v3057
    %v3360 = vpack.c.b16 %v3060, %v3058
    %v3361 = vpack.c.b16 %v3063, %v3061
    %v3362 = vpack.c.b16 %v3064, %v3062
    %v3363 = vpack.c.b16 %v3067, %v3065
    %v3364 = vpack.c.b16 %v3068, %v3066
    %v3365 = vpack.c.b16 %v3071, %v3069
    %v3366 = vpack.c.b16 %v3072, %v3070
    %v3367 = vpack.c.b16 %v3075, %v3073
    %v3368 = vpack.c.b16 %v3076, %v3074
    %v3369 = vpack.c.b16 %v3079, %v3077
    %v3370 = vpack.c.b16 %v3080, %v3078
    %v3371 = vpack.c.b16 %v3083, %v3081
    %v3372 = vpack.c.b16 %v3084, %v3082
    %3661 = vmatpush.bf16.msra.mxu0 %v3099
    %3662 = vmatpush.bf16.msra.mxu0 %v3097
    %3663 = vmatpush.bf16.msra.mxu0 %v3095
    %3664 = vmatpush.bf16.msra.mxu0 %v3093
    %3665 = vmatpush.bf16.msra.mxu0 %v3091
    %3666 = vmatpush.bf16.msra.mxu0 %v3089
    %3667 = vmatpush.bf16.msra.mxu0 %v3087
    %3668 = vmatpush.bf16.msra.mxu0 %v3085
    %3669 = vmatmul.bf16.gmra.mxu0 %v2149
    %v3670 = vpop.f32.mrf.mxu0
    %v3671 = vadd.f32 0.0, %v3670
    %v3672 = vpop.f32.mrf.mxu0
    %v3673 = vadd.f32 0.0, %v3672
    %3674 = vmatmul.bf16.gmra.mxu0 %v2167
    %v3675 = vpop.f32.mrf.mxu0
    %v3676 = vadd.f32 0.0, %v3675
    %v3677 = vpop.f32.mrf.mxu0
    %v3678 = vadd.f32 0.0, %v3677
    %3679 = vdwg.mxu0
    %3680 = vmatpush.bf16.msra.mxu0 %v3115
    %3681 = vmatpush.bf16.msra.mxu0 %v3113
    %3682 = vmatpush.bf16.msra.mxu0 %v3111
    %3683 = vmatpush.bf16.msra.mxu0 %v3109
    %3684 = vmatpush.bf16.msra.mxu0 %v3107
    %3685 = vmatpush.bf16.msra.mxu0 %v3105
    %3686 = vmatpush.bf16.msra.mxu0 %v3103
    %3687 = vmatpush.bf16.msra.mxu0 %v3101
    %3688 = vmatmul.bf16.gmra.mxu0 %v2150
    %v3689 = vpop.f32.mrf.mxu0
    %v3690 = vadd.f32 %v3671, %v3689
    %v3691 = vpop.f32.mrf.mxu0
    %v3692 = vadd.f32 %v3673, %v3691
    %3693 = vmatmul.bf16.gmra.mxu0 %v2168
    %v3694 = vpop.f32.mrf.mxu0
    %v3695 = vadd.f32 %v3676, %v3694
    %v3696 = vpop.f32.mrf.mxu0
    %v3697 = vadd.f32 %v3678, %v3696
    %3698 = vdwg.mxu0
    %3699 = vmatpush.bf16.msra.mxu0 %v3131
    %3700 = vmatpush.bf16.msra.mxu0 %v3129
    %3701 = vmatpush.bf16.msra.mxu0 %v3127
    %3702 = vmatpush.bf16.msra.mxu0 %v3125
    %3703 = vmatpush.bf16.msra.mxu0 %v3123
    %3704 = vmatpush.bf16.msra.mxu0 %v3121
    %3705 = vmatpush.bf16.msra.mxu0 %v3119
    %3706 = vmatpush.bf16.msra.mxu0 %v3117
    %3707 = vmatmul.bf16.gmra.mxu0 %v2151
    %v3708 = vpop.f32.mrf.mxu0
    %v3709 = vadd.f32 %v3690, %v3708
    %v3710 = vpop.f32.mrf.mxu0
    %v3711 = vadd.f32 %v3692, %v3710
    %3712 = vmatmul.bf16.gmra.mxu0 %v2169
    %v3713 = vpop.f32.mrf.mxu0
    %v3714 = vadd.f32 %v3695, %v3713
    %v3715 = vpop.f32.mrf.mxu0
    %v3716 = vadd.f32 %v3697, %v3715
    %3717 = vdwg.mxu0
    %3718 = vmatpush.bf16.msra.mxu0 %v3147
    %3719 = vmatpush.bf16.msra.mxu0 %v3145
    %3720 = vmatpush.bf16.msra.mxu0 %v3143
    %3721 = vmatpush.bf16.msra.mxu0 %v3141
    %3722 = vmatpush.bf16.msra.mxu0 %v3139
    %3723 = vmatpush.bf16.msra.mxu0 %v3137
    %3724 = vmatpush.bf16.msra.mxu0 %v3135
    %3725 = vmatpush.bf16.msra.mxu0 %v3133
    %3726 = vmatmul.bf16.gmra.mxu0 %v2152
    %v3727 = vpop.f32.mrf.mxu0
    %v3728 = vadd.f32 %v3709, %v3727
    %v3729 = vpop.f32.mrf.mxu0
    %v3730 = vadd.f32 %v3711, %v3729
    %3731 = vmatmul.bf16.gmra.mxu0 %v2170
    %v3732 = vpop.f32.mrf.mxu0
    %v3733 = vadd.f32 %v3714, %v3732
    %v3734 = vpop.f32.mrf.mxu0
    %v3735 = vadd.f32 %v3716, %v3734
    %3736 = vdwg.mxu0
    %3737 = vmatpush.bf16.msra.mxu0 %v3163
    %3738 = vmatpush.bf16.msra.mxu0 %v3161
    %3739 = vmatpush.bf16.msra.mxu0 %v3159
    %3740 = vmatpush.bf16.msra.mxu0 %v3157
    %3741 = vmatpush.bf16.msra.mxu0 %v3155
    %3742 = vmatpush.bf16.msra.mxu0 %v3153
    %3743 = vmatpush.bf16.msra.mxu0 %v3151
    %3744 = vmatpush.bf16.msra.mxu0 %v3149
    %3745 = vmatmul.bf16.gmra.mxu0 %v2153
    %v3746 = vpop.f32.mrf.mxu0
    %v3747 = vadd.f32 %v3728, %v3746
    %v3748 = vpop.f32.mrf.mxu0
    %v3749 = vadd.f32 %v3730, %v3748
    %3750 = vmatmul.bf16.gmra.mxu0 %v2171
    %v3751 = vpop.f32.mrf.mxu0
    %v3752 = vadd.f32 %v3733, %v3751
    %v3753 = vpop.f32.mrf.mxu0
    %v3754 = vadd.f32 %v3735, %v3753
    %3755 = vdwg.mxu0
    %3756 = vmatpush.bf16.msra.mxu0 %v3179
    %3757 = vmatpush.bf16.msra.mxu0 %v3177
    %3758 = vmatpush.bf16.msra.mxu0 %v3175
    %3759 = vmatpush.bf16.msra.mxu0 %v3173
    %3760 = vmatpush.bf16.msra.mxu0 %v3171
    %3761 = vmatpush.bf16.msra.mxu0 %v3169
    %3762 = vmatpush.bf16.msra.mxu0 %v3167
    %3763 = vmatpush.bf16.msra.mxu0 %v3165
    %3764 = vmatmul.bf16.gmra.mxu0 %v2154
    %v3765 = vpop.f32.mrf.mxu0
    %v3766 = vadd.f32 %v3747, %v3765
    %v3767 = vpop.f32.mrf.mxu0
    %v3768 = vadd.f32 %v3749, %v3767
    %3769 = vmatmul.bf16.gmra.mxu0 %v2172
    %v3770 = vpop.f32.mrf.mxu0
    %v3771 = vadd.f32 %v3752, %v3770
    %v3772 = vpop.f32.mrf.mxu0
    %v3773 = vadd.f32 %v3754, %v3772
    %3774 = vdwg.mxu0
    %3775 = vmatpush.bf16.msra.mxu0 %v3195
    %3776 = vmatpush.bf16.msra.mxu0 %v3193
    %3777 = vmatpush.bf16.msra.mxu0 %v3191
    %3778 = vmatpush.bf16.msra.mxu0 %v3189
    %3779 = vmatpush.bf16.msra.mxu0 %v3187
    %3780 = vmatpush.bf16.msra.mxu0 %v3185
    %3781 = vmatpush.bf16.msra.mxu0 %v3183
    %3782 = vmatpush.bf16.msra.mxu0 %v3181
    %3783 = vmatmul.bf16.gmra.mxu0 %v2155
    %v3784 = vpop.f32.mrf.mxu0
    %v3785 = vadd.f32 %v3766, %v3784
    %v3786 = vpop.f32.mrf.mxu0
    %v3787 = vadd.f32 %v3768, %v3786
    %3788 = vmatmul.bf16.gmra.mxu0 %v2173
    %v3789 = vpop.f32.mrf.mxu0
    %v3790 = vadd.f32 %v3771, %v3789
    %v3791 = vpop.f32.mrf.mxu0
    %v3792 = vadd.f32 %v3773, %v3791
    %3793 = vdwg.mxu0
    %3794 = vmatpush.bf16.msra.mxu0 %v3211
    %3795 = vmatpush.bf16.msra.mxu0 %v3209
    %3796 = vmatpush.bf16.msra.mxu0 %v3207
    %3797 = vmatpush.bf16.msra.mxu0 %v3205
    %3798 = vmatpush.bf16.msra.mxu0 %v3203
    %3799 = vmatpush.bf16.msra.mxu0 %v3201
    %3800 = vmatpush.bf16.msra.mxu0 %v3199
    %3801 = vmatpush.bf16.msra.mxu0 %v3197
    %3802 = vmatmul.bf16.gmra.mxu0 %v2156
    %v3803 = vpop.f32.mrf.mxu0
    %v3804 = vadd.f32 %v3785, %v3803
    %v3805 = vpop.f32.mrf.mxu0
    %v3806 = vadd.f32 %v3787, %v3805
    %3807 = vmatmul.bf16.gmra.mxu0 %v2174
    %v3808 = vpop.f32.mrf.mxu0
    %v3809 = vadd.f32 %v3790, %v3808
    %v3810 = vpop.f32.mrf.mxu0
    %v3811 = vadd.f32 %v3792, %v3810
    %3812 = vdwg.mxu0
    %3813 = vmatpush.bf16.msra.mxu0 %v3227
    %3814 = vmatpush.bf16.msra.mxu0 %v3225
    %3815 = vmatpush.bf16.msra.mxu0 %v3223
    %3816 = vmatpush.bf16.msra.mxu0 %v3221
    %3817 = vmatpush.bf16.msra.mxu0 %v3219
    %3818 = vmatpush.bf16.msra.mxu0 %v3217
    %3819 = vmatpush.bf16.msra.mxu0 %v3215
    %3820 = vmatpush.bf16.msra.mxu0 %v3213
    %3821 = vmatmul.bf16.gmra.mxu0 %v2157
    %v3822 = vpop.f32.mrf.mxu0
    %v3823 = vadd.f32 %v3804, %v3822
    %v3824 = vpop.f32.mrf.mxu0
    %v3825 = vadd.f32 %v3806, %v3824
    %3826 = vmatmul.bf16.gmra.mxu0 %v2175
    %v3827 = vpop.f32.mrf.mxu0
    %v3828 = vadd.f32 %v3809, %v3827
    %v3829 = vpop.f32.mrf.mxu0
    %v3830 = vadd.f32 %v3811, %v3829
    %3831 = vdwg.mxu0
    %3832 = vmatpush.bf16.msra.mxu0 %v3243
    %3833 = vmatpush.bf16.msra.mxu0 %v3241
    %3834 = vmatpush.bf16.msra.mxu0 %v3239
    %3835 = vmatpush.bf16.msra.mxu0 %v3237
    %3836 = vmatpush.bf16.msra.mxu0 %v3235
    %3837 = vmatpush.bf16.msra.mxu0 %v3233
    %3838 = vmatpush.bf16.msra.mxu0 %v3231
    %3839 = vmatpush.bf16.msra.mxu0 %v3229
    %3840 = vmatmul.bf16.gmra.mxu0 %v2158
    %v3841 = vpop.f32.mrf.mxu0
    %v3842 = vadd.f32 %v3823, %v3841
    %v3843 = vpop.f32.mrf.mxu0
    %v3844 = vadd.f32 %v3825, %v3843
    %3845 = vmatmul.bf16.gmra.mxu0 %v2176
    %v3846 = vpop.f32.mrf.mxu0
    %v3847 = vadd.f32 %v3828, %v3846
    %v3848 = vpop.f32.mrf.mxu0
    %v3849 = vadd.f32 %v3830, %v3848
    %3850 = vdwg.mxu0
    %3851 = vmatpush.bf16.msra.mxu0 %v3259
    %3852 = vmatpush.bf16.msra.mxu0 %v3257
    %3853 = vmatpush.bf16.msra.mxu0 %v3255
    %3854 = vmatpush.bf16.msra.mxu0 %v3253
    %3855 = vmatpush.bf16.msra.mxu0 %v3251
    %3856 = vmatpush.bf16.msra.mxu0 %v3249
    %3857 = vmatpush.bf16.msra.mxu0 %v3247
    %3858 = vmatpush.bf16.msra.mxu0 %v3245
    %3859 = vmatmul.bf16.gmra.mxu0 %v2159
    %v3860 = vpop.f32.mrf.mxu0
    %v3861 = vadd.f32 %v3842, %v3860
    %v3862 = vpop.f32.mrf.mxu0
    %v3863 = vadd.f32 %v3844, %v3862
    %3864 = vmatmul.bf16.gmra.mxu0 %v2177
    %v3865 = vpop.f32.mrf.mxu0
    %v3866 = vadd.f32 %v3847, %v3865
    %v3867 = vpop.f32.mrf.mxu0
    %v3868 = vadd.f32 %v3849, %v3867
    %3869 = vdwg.mxu0
    %3870 = vmatpush.bf16.msra.mxu0 %v3275
    %3871 = vmatpush.bf16.msra.mxu0 %v3273
    %3872 = vmatpush.bf16.msra.mxu0 %v3271
    %3873 = vmatpush.bf16.msra.mxu0 %v3269
    %3874 = vmatpush.bf16.msra.mxu0 %v3267
    %3875 = vmatpush.bf16.msra.mxu0 %v3265
    %3876 = vmatpush.bf16.msra.mxu0 %v3263
    %3877 = vmatpush.bf16.msra.mxu0 %v3261
    %3878 = vmatmul.bf16.gmra.mxu0 %v2160
    %v3879 = vpop.f32.mrf.mxu0
    %v3880 = vadd.f32 %v3861, %v3879
    %v3881 = vpop.f32.mrf.mxu0
    %v3882 = vadd.f32 %v3863, %v3881
    %3883 = vmatmul.bf16.gmra.mxu0 %v2178
    %v3884 = vpop.f32.mrf.mxu0
    %v3885 = vadd.f32 %v3866, %v3884
    %v3886 = vpop.f32.mrf.mxu0
    %v3887 = vadd.f32 %v3868, %v3886
    %3888 = vdwg.mxu0
    %3889 = vmatpush.bf16.msra.mxu0 %v3291
    %3890 = vmatpush.bf16.msra.mxu0 %v3289
    %3891 = vmatpush.bf16.msra.mxu0 %v3287
    %3892 = vmatpush.bf16.msra.mxu0 %v3285
    %3893 = vmatpush.bf16.msra.mxu0 %v3283
    %3894 = vmatpush.bf16.msra.mxu0 %v3281
    %3895 = vmatpush.bf16.msra.mxu0 %v3279
    %3896 = vmatpush.bf16.msra.mxu0 %v3277
    %3897 = vmatmul.bf16.gmra.mxu0 %v2161
    %v3898 = vpop.f32.mrf.mxu0
    %v3899 = vadd.f32 %v3880, %v3898
    %v3900 = vpop.f32.mrf.mxu0
    %v3901 = vadd.f32 %v3882, %v3900
    %3902 = vmatmul.bf16.gmra.mxu0 %v2179
    %v3903 = vpop.f32.mrf.mxu0
    %v3904 = vadd.f32 %v3885, %v3903
    %v3905 = vpop.f32.mrf.mxu0
    %v3906 = vadd.f32 %v3887, %v3905
    %3907 = vdwg.mxu0
    %3908 = vmatpush.bf16.msra.mxu0 %v3307
    %3909 = vmatpush.bf16.msra.mxu0 %v3305
    %3910 = vmatpush.bf16.msra.mxu0 %v3303
    %3911 = vmatpush.bf16.msra.mxu0 %v3301
    %3912 = vmatpush.bf16.msra.mxu0 %v3299
    %3913 = vmatpush.bf16.msra.mxu0 %v3297
    %3914 = vmatpush.bf16.msra.mxu0 %v3295
    %3915 = vmatpush.bf16.msra.mxu0 %v3293
    %3916 = vmatmul.bf16.gmra.mxu0 %v2162
    %v3917 = vpop.f32.mrf.mxu0
    %v3918 = vadd.f32 %v3899, %v3917
    %v3919 = vpop.f32.mrf.mxu0
    %v3920 = vadd.f32 %v3901, %v3919
    %3921 = vmatmul.bf16.gmra.mxu0 %v2180
    %v3922 = vpop.f32.mrf.mxu0
    %v3923 = vadd.f32 %v3904, %v3922
    %v3924 = vpop.f32.mrf.mxu0
    %v3925 = vadd.f32 %v3906, %v3924
    %3926 = vdwg.mxu0
    %3927 = vmatpush.bf16.msra.mxu0 %v3323
    %3928 = vmatpush.bf16.msra.mxu0 %v3321
    %3929 = vmatpush.bf16.msra.mxu0 %v3319
    %3930 = vmatpush.bf16.msra.mxu0 %v3317
    %3931 = vmatpush.bf16.msra.mxu0 %v3315
    %3932 = vmatpush.bf16.msra.mxu0 %v3313
    %3933 = vmatpush.bf16.msra.mxu0 %v3311
    %3934 = vmatpush.bf16.msra.mxu0 %v3309
    %3935 = vmatmul.bf16.gmra.mxu0 %v2163
    %v3936 = vpop.f32.mrf.mxu0
    %v3937 = vadd.f32 %v3918, %v3936
    %v3938 = vpop.f32.mrf.mxu0
    %v3939 = vadd.f32 %v3920, %v3938
    %3940 = vmatmul.bf16.gmra.mxu0 %v2181
    %v3941 = vpop.f32.mrf.mxu0
    %v3942 = vadd.f32 %v3923, %v3941
    %v3943 = vpop.f32.mrf.mxu0
    %v3944 = vadd.f32 %v3925, %v3943
    %3945 = vdwg.mxu0
    %3946 = vmatpush.bf16.msra.mxu0 %v3339
    %3947 = vmatpush.bf16.msra.mxu0 %v3337
    %3948 = vmatpush.bf16.msra.mxu0 %v3335
    %3949 = vmatpush.bf16.msra.mxu0 %v3333
    %3950 = vmatpush.bf16.msra.mxu0 %v3331
    %3951 = vmatpush.bf16.msra.mxu0 %v3329
    %3952 = vmatpush.bf16.msra.mxu0 %v3327
    %3953 = vmatpush.bf16.msra.mxu0 %v3325
    %3954 = vmatmul.bf16.gmra.mxu0 %v2164
    %v3955 = vpop.f32.mrf.mxu0
    %v3956 = vadd.f32 %v3937, %v3955
    %v3957 = vpop.f32.mrf.mxu0
    %v3958 = vadd.f32 %v3939, %v3957
    %3959 = vmatmul.bf16.gmra.mxu0 %v2182
    %v3960 = vpop.f32.mrf.mxu0
    %v3961 = vadd.f32 %v3942, %v3960
    %v3962 = vpop.f32.mrf.mxu0
    %v3963 = vadd.f32 %v3944, %v3962
    %3964 = vdwg.mxu0
    %3965 = vmatpush.bf16.msra.mxu0 %v3355
    %3966 = vmatpush.bf16.msra.mxu0 %v3353
    %3967 = vmatpush.bf16.msra.mxu0 %v3351
    %3968 = vmatpush.bf16.msra.mxu0 %v3349
    %3969 = vmatpush.bf16.msra.mxu0 %v3347
    %3970 = vmatpush.bf16.msra.mxu0 %v3345
    %3971 = vmatpush.bf16.msra.mxu0 %v3343
    %3972 = vmatpush.bf16.msra.mxu0 %v3341
    %3973 = vmatmul.bf16.gmra.mxu0 %v2165
    %v3974 = vpop.f32.mrf.mxu0
    %v3975 = vadd.f32 %v3956, %v3974
    %v3976 = vpop.f32.mrf.mxu0
    %v3977 = vadd.f32 %v3958, %v3976
    %3978 = vmatmul.bf16.gmra.mxu0 %v2183
    %v3979 = vpop.f32.mrf.mxu0
    %v3980 = vadd.f32 %v3961, %v3979
    %v3981 = vpop.f32.mrf.mxu0
    %v3982 = vadd.f32 %v3963, %v3981
    %3983 = vdwg.mxu0
    %3984 = vmatpush.bf16.msra.mxu0 %v3371
    %3985 = vmatpush.bf16.msra.mxu0 %v3369
    %3986 = vmatpush.bf16.msra.mxu0 %v3367
    %3987 = vmatpush.bf16.msra.mxu0 %v3365
    %3988 = vmatpush.bf16.msra.mxu0 %v3363
    %3989 = vmatpush.bf16.msra.mxu0 %v3361
    %3990 = vmatpush.bf16.msra.mxu0 %v3359
    %3991 = vmatpush.bf16.msra.mxu0 %v3357
    %3992 = vmatmul.bf16.gmra.mxu0 %v2166
    %v3993 = vpop.f32.mrf.mxu0
    %v3994 = vadd.f32 %v3975, %v3993
    %v3995 = vpop.f32.mrf.mxu0
    %v3996 = vadd.f32 %v3977, %v3995
    %3997 = vmatmul.bf16.gmra.mxu0 %v2184
    %v3998 = vpop.f32.mrf.mxu0
    %v3999 = vadd.f32 %v3980, %v3998
    %v4000 = vpop.f32.mrf.mxu0
    %v4001 = vadd.f32 %v3982, %v4000
    %4002 = vdwg.mxu0
    %4003 = vmatpush.bf16.msra.mxu0 %v3100
    %4004 = vmatpush.bf16.msra.mxu0 %v3098
    %4005 = vmatpush.bf16.msra.mxu0 %v3096
    %4006 = vmatpush.bf16.msra.mxu0 %v3094
    %4007 = vmatpush.bf16.msra.mxu0 %v3092
    %4008 = vmatpush.bf16.msra.mxu0 %v3090
    %4009 = vmatpush.bf16.msra.mxu0 %v3088
    %4010 = vmatpush.bf16.msra.mxu0 %v3086
    %4011 = vmatmul.bf16.gmra.mxu0 %v2149
    %v4012 = vpop.f32.mrf.mxu0
    %v4013 = vadd.f32 0.0, %v4012
    %v4014 = vpop.f32.mrf.mxu0
    %v4015 = vadd.f32 0.0, %v4014
    %4016 = vmatmul.bf16.gmra.mxu0 %v2167
    %v4017 = vpop.f32.mrf.mxu0
    %v4018 = vadd.f32 0.0, %v4017
    %v4019 = vpop.f32.mrf.mxu0
    %v4020 = vadd.f32 0.0, %v4019
    %4021 = vdwg.mxu0
    %4022 = vmatpush.bf16.msra.mxu0 %v3116
    %4023 = vmatpush.bf16.msra.mxu0 %v3114
    %4024 = vmatpush.bf16.msra.mxu0 %v3112
    %4025 = vmatpush.bf16.msra.mxu0 %v3110
    %4026 = vmatpush.bf16.msra.mxu0 %v3108
    %4027 = vmatpush.bf16.msra.mxu0 %v3106
    %4028 = vmatpush.bf16.msra.mxu0 %v3104
    %4029 = vmatpush.bf16.msra.mxu0 %v3102
    %4030 = vmatmul.bf16.gmra.mxu0 %v2150
    %v4031 = vpop.f32.mrf.mxu0
    %v4032 = vadd.f32 %v4013, %v4031
    %v4033 = vpop.f32.mrf.mxu0
    %v4034 = vadd.f32 %v4015, %v4033
    %4035 = vmatmul.bf16.gmra.mxu0 %v2168
    %v4036 = vpop.f32.mrf.mxu0
    %v4037 = vadd.f32 %v4018, %v4036
    %v4038 = vpop.f32.mrf.mxu0
    %v4039 = vadd.f32 %v4020, %v4038
    %4040 = vdwg.mxu0
    %4041 = vmatpush.bf16.msra.mxu0 %v3132
    %4042 = vmatpush.bf16.msra.mxu0 %v3130
    %4043 = vmatpush.bf16.msra.mxu0 %v3128
    %4044 = vmatpush.bf16.msra.mxu0 %v3126
    %4045 = vmatpush.bf16.msra.mxu0 %v3124
    %4046 = vmatpush.bf16.msra.mxu0 %v3122
    %4047 = vmatpush.bf16.msra.mxu0 %v3120
    %4048 = vmatpush.bf16.msra.mxu0 %v3118
    %4049 = vmatmul.bf16.gmra.mxu0 %v2151
    %v4050 = vpop.f32.mrf.mxu0
    %v4051 = vadd.f32 %v4032, %v4050
    %v4052 = vpop.f32.mrf.mxu0
    %v4053 = vadd.f32 %v4034, %v4052
    %4054 = vmatmul.bf16.gmra.mxu0 %v2169
    %v4055 = vpop.f32.mrf.mxu0
    %v4056 = vadd.f32 %v4037, %v4055
    %v4057 = vpop.f32.mrf.mxu0
    %v4058 = vadd.f32 %v4039, %v4057
    %4059 = vdwg.mxu0
    %4060 = vmatpush.bf16.msra.mxu0 %v3148
    %4061 = vmatpush.bf16.msra.mxu0 %v3146
    %4062 = vmatpush.bf16.msra.mxu0 %v3144
    %4063 = vmatpush.bf16.msra.mxu0 %v3142
    %4064 = vmatpush.bf16.msra.mxu0 %v3140
    %4065 = vmatpush.bf16.msra.mxu0 %v3138
    %4066 = vmatpush.bf16.msra.mxu0 %v3136
    %4067 = vmatpush.bf16.msra.mxu0 %v3134
    %4068 = vmatmul.bf16.gmra.mxu0 %v2152
    %v4069 = vpop.f32.mrf.mxu0
    %v4070 = vadd.f32 %v4051, %v4069
    %v4071 = vpop.f32.mrf.mxu0
    %v4072 = vadd.f32 %v4053, %v4071
    %4073 = vmatmul.bf16.gmra.mxu0 %v2170
    %v4074 = vpop.f32.mrf.mxu0
    %v4075 = vadd.f32 %v4056, %v4074
    %v4076 = vpop.f32.mrf.mxu0
    %v4077 = vadd.f32 %v4058, %v4076
    %4078 = vdwg.mxu0
    %4079 = vmatpush.bf16.msra.mxu0 %v3164
    %4080 = vmatpush.bf16.msra.mxu0 %v3162
    %4081 = vmatpush.bf16.msra.mxu0 %v3160
    %4082 = vmatpush.bf16.msra.mxu0 %v3158
    %4083 = vmatpush.bf16.msra.mxu0 %v3156
    %4084 = vmatpush.bf16.msra.mxu0 %v3154
    %4085 = vmatpush.bf16.msra.mxu0 %v3152
    %4086 = vmatpush.bf16.msra.mxu0 %v3150
    %4087 = vmatmul.bf16.gmra.mxu0 %v2153
    %v4088 = vpop.f32.mrf.mxu0
    %v4089 = vadd.f32 %v4070, %v4088
    %v4090 = vpop.f32.mrf.mxu0
    %v4091 = vadd.f32 %v4072, %v4090
    %4092 = vmatmul.bf16.gmra.mxu0 %v2171
    %v4093 = vpop.f32.mrf.mxu0
    %v4094 = vadd.f32 %v4075, %v4093
    %v4095 = vpop.f32.mrf.mxu0
    %v4096 = vadd.f32 %v4077, %v4095
    %4097 = vdwg.mxu0
    %4098 = vmatpush.bf16.msra.mxu0 %v3180
    %4099 = vmatpush.bf16.msra.mxu0 %v3178
    %4100 = vmatpush.bf16.msra.mxu0 %v3176
    %4101 = vmatpush.bf16.msra.mxu0 %v3174
    %4102 = vmatpush.bf16.msra.mxu0 %v3172
    %4103 = vmatpush.bf16.msra.mxu0 %v3170
    %4104 = vmatpush.bf16.msra.mxu0 %v3168
    %4105 = vmatpush.bf16.msra.mxu0 %v3166
    %4106 = vmatmul.bf16.gmra.mxu0 %v2154
    %v4107 = vpop.f32.mrf.mxu0
    %v4108 = vadd.f32 %v4089, %v4107
    %v4109 = vpop.f32.mrf.mxu0
    %v4110 = vadd.f32 %v4091, %v4109
    %4111 = vmatmul.bf16.gmra.mxu0 %v2172
    %v4112 = vpop.f32.mrf.mxu0
    %v4113 = vadd.f32 %v4094, %v4112
    %v4114 = vpop.f32.mrf.mxu0
    %v4115 = vadd.f32 %v4096, %v4114
    %4116 = vdwg.mxu0
    %4117 = vmatpush.bf16.msra.mxu0 %v3196
    %4118 = vmatpush.bf16.msra.mxu0 %v3194
    %4119 = vmatpush.bf16.msra.mxu0 %v3192
    %4120 = vmatpush.bf16.msra.mxu0 %v3190
    %4121 = vmatpush.bf16.msra.mxu0 %v3188
    %4122 = vmatpush.bf16.msra.mxu0 %v3186
    %4123 = vmatpush.bf16.msra.mxu0 %v3184
    %4124 = vmatpush.bf16.msra.mxu0 %v3182
    %4125 = vmatmul.bf16.gmra.mxu0 %v2155
    %v4126 = vpop.f32.mrf.mxu0
    %v4127 = vadd.f32 %v4108, %v4126
    %v4128 = vpop.f32.mrf.mxu0
    %v4129 = vadd.f32 %v4110, %v4128
    %4130 = vmatmul.bf16.gmra.mxu0 %v2173
    %v4131 = vpop.f32.mrf.mxu0
    %v4132 = vadd.f32 %v4113, %v4131
    %v4133 = vpop.f32.mrf.mxu0
    %v4134 = vadd.f32 %v4115, %v4133
    %4135 = vdwg.mxu0
    %4136 = vmatpush.bf16.msra.mxu0 %v3212
    %4137 = vmatpush.bf16.msra.mxu0 %v3210
    %4138 = vmatpush.bf16.msra.mxu0 %v3208
    %4139 = vmatpush.bf16.msra.mxu0 %v3206
    %4140 = vmatpush.bf16.msra.mxu0 %v3204
    %4141 = vmatpush.bf16.msra.mxu0 %v3202
    %4142 = vmatpush.bf16.msra.mxu0 %v3200
    %4143 = vmatpush.bf16.msra.mxu0 %v3198
    %4144 = vmatmul.bf16.gmra.mxu0 %v2156
    %v4145 = vpop.f32.mrf.mxu0
    %v4146 = vadd.f32 %v4127, %v4145
    %v4147 = vpop.f32.mrf.mxu0
    %v4148 = vadd.f32 %v4129, %v4147
    %4149 = vmatmul.bf16.gmra.mxu0 %v2174
    %v4150 = vpop.f32.mrf.mxu0
    %v4151 = vadd.f32 %v4132, %v4150
    %v4152 = vpop.f32.mrf.mxu0
    %v4153 = vadd.f32 %v4134, %v4152
    %4154 = vdwg.mxu0
    %4155 = vmatpush.bf16.msra.mxu0 %v3228
    %4156 = vmatpush.bf16.msra.mxu0 %v3226
    %4157 = vmatpush.bf16.msra.mxu0 %v3224
    %4158 = vmatpush.bf16.msra.mxu0 %v3222
    %4159 = vmatpush.bf16.msra.mxu0 %v3220
    %4160 = vmatpush.bf16.msra.mxu0 %v3218
    %4161 = vmatpush.bf16.msra.mxu0 %v3216
    %4162 = vmatpush.bf16.msra.mxu0 %v3214
    %4163 = vmatmul.bf16.gmra.mxu0 %v2157
    %v4164 = vpop.f32.mrf.mxu0
    %v4165 = vadd.f32 %v4146, %v4164
    %v4166 = vpop.f32.mrf.mxu0
    %v4167 = vadd.f32 %v4148, %v4166
    %4168 = vmatmul.bf16.gmra.mxu0 %v2175
    %v4169 = vpop.f32.mrf.mxu0
    %v4170 = vadd.f32 %v4151, %v4169
    %v4171 = vpop.f32.mrf.mxu0
    %v4172 = vadd.f32 %v4153, %v4171
    %4173 = vdwg.mxu0
    %4174 = vmatpush.bf16.msra.mxu0 %v3244
    %4175 = vmatpush.bf16.msra.mxu0 %v3242
    %4176 = vmatpush.bf16.msra.mxu0 %v3240
    %4177 = vmatpush.bf16.msra.mxu0 %v3238
    %4178 = vmatpush.bf16.msra.mxu0 %v3236
    %4179 = vmatpush.bf16.msra.mxu0 %v3234
    %4180 = vmatpush.bf16.msra.mxu0 %v3232
    %4181 = vmatpush.bf16.msra.mxu0 %v3230
    %4182 = vmatmul.bf16.gmra.mxu0 %v2158
    %v4183 = vpop.f32.mrf.mxu0
    %v4184 = vadd.f32 %v4165, %v4183
    %v4185 = vpop.f32.mrf.mxu0
    %v4186 = vadd.f32 %v4167, %v4185
    %4187 = vmatmul.bf16.gmra.mxu0 %v2176
    %v4188 = vpop.f32.mrf.mxu0
    %v4189 = vadd.f32 %v4170, %v4188
    %v4190 = vpop.f32.mrf.mxu0
    %v4191 = vadd.f32 %v4172, %v4190
    %4192 = vdwg.mxu0
    %4193 = vmatpush.bf16.msra.mxu0 %v3260
    %4194 = vmatpush.bf16.msra.mxu0 %v3258
    %4195 = vmatpush.bf16.msra.mxu0 %v3256
    %4196 = vmatpush.bf16.msra.mxu0 %v3254
    %4197 = vmatpush.bf16.msra.mxu0 %v3252
    %4198 = vmatpush.bf16.msra.mxu0 %v3250
    %4199 = vmatpush.bf16.msra.mxu0 %v3248
    %4200 = vmatpush.bf16.msra.mxu0 %v3246
    %4201 = vmatmul.bf16.gmra.mxu0 %v2159
    %v4202 = vpop.f32.mrf.mxu0
    %v4203 = vadd.f32 %v4184, %v4202
    %v4204 = vpop.f32.mrf.mxu0
    %v4205 = vadd.f32 %v4186, %v4204
    %4206 = vmatmul.bf16.gmra.mxu0 %v2177
    %v4207 = vpop.f32.mrf.mxu0
    %v4208 = vadd.f32 %v4189, %v4207
    %v4209 = vpop.f32.mrf.mxu0
    %v4210 = vadd.f32 %v4191, %v4209
    %4211 = vdwg.mxu0
    %4212 = vmatpush.bf16.msra.mxu0 %v3276
    %4213 = vmatpush.bf16.msra.mxu0 %v3274
    %4214 = vmatpush.bf16.msra.mxu0 %v3272
    %4215 = vmatpush.bf16.msra.mxu0 %v3270
    %4216 = vmatpush.bf16.msra.mxu0 %v3268
    %4217 = vmatpush.bf16.msra.mxu0 %v3266
    %4218 = vmatpush.bf16.msra.mxu0 %v3264
    %4219 = vmatpush.bf16.msra.mxu0 %v3262
    %4220 = vmatmul.bf16.gmra.mxu0 %v2160
    %v4221 = vpop.f32.mrf.mxu0
    %v4222 = vadd.f32 %v4203, %v4221
    %v4223 = vpop.f32.mrf.mxu0
    %v4224 = vadd.f32 %v4205, %v4223
    %4225 = vmatmul.bf16.gmra.mxu0 %v2178
    %v4226 = vpop.f32.mrf.mxu0
    %v4227 = vadd.f32 %v4208, %v4226
    %v4228 = vpop.f32.mrf.mxu0
    %v4229 = vadd.f32 %v4210, %v4228
    %4230 = vdwg.mxu0
    %4231 = vmatpush.bf16.msra.mxu0 %v3292
    %4232 = vmatpush.bf16.msra.mxu0 %v3290
    %4233 = vmatpush.bf16.msra.mxu0 %v3288
    %4234 = vmatpush.bf16.msra.mxu0 %v3286
    %4235 = vmatpush.bf16.msra.mxu0 %v3284
    %4236 = vmatpush.bf16.msra.mxu0 %v3282
    %4237 = vmatpush.bf16.msra.mxu0 %v3280
    %4238 = vmatpush.bf16.msra.mxu0 %v3278
    %4239 = vmatmul.bf16.gmra.mxu0 %v2161
    %v4240 = vpop.f32.mrf.mxu0
    %v4241 = vadd.f32 %v4222, %v4240
    %v4242 = vpop.f32.mrf.mxu0
    %v4243 = vadd.f32 %v4224, %v4242
    %4244 = vmatmul.bf16.gmra.mxu0 %v2179
    %v4245 = vpop.f32.mrf.mxu0
    %v4246 = vadd.f32 %v4227, %v4245
    %v4247 = vpop.f32.mrf.mxu0
    %v4248 = vadd.f32 %v4229, %v4247
    %4249 = vdwg.mxu0
    %4250 = vmatpush.bf16.msra.mxu0 %v3308
    %4251 = vmatpush.bf16.msra.mxu0 %v3306
    %4252 = vmatpush.bf16.msra.mxu0 %v3304
    %4253 = vmatpush.bf16.msra.mxu0 %v3302
    %4254 = vmatpush.bf16.msra.mxu0 %v3300
    %4255 = vmatpush.bf16.msra.mxu0 %v3298
    %4256 = vmatpush.bf16.msra.mxu0 %v3296
    %4257 = vmatpush.bf16.msra.mxu0 %v3294
    %4258 = vmatmul.bf16.gmra.mxu0 %v2162
    %v4259 = vpop.f32.mrf.mxu0
    %v4260 = vadd.f32 %v4241, %v4259
    %v4261 = vpop.f32.mrf.mxu0
    %v4262 = vadd.f32 %v4243, %v4261
    %4263 = vmatmul.bf16.gmra.mxu0 %v2180
    %v4264 = vpop.f32.mrf.mxu0
    %v4265 = vadd.f32 %v4246, %v4264
    %v4266 = vpop.f32.mrf.mxu0
    %v4267 = vadd.f32 %v4248, %v4266
    %4268 = vdwg.mxu0
    %4269 = vmatpush.bf16.msra.mxu0 %v3324
    %4270 = vmatpush.bf16.msra.mxu0 %v3322
    %4271 = vmatpush.bf16.msra.mxu0 %v3320
    %4272 = vmatpush.bf16.msra.mxu0 %v3318
    %4273 = vmatpush.bf16.msra.mxu0 %v3316
    %4274 = vmatpush.bf16.msra.mxu0 %v3314
    %4275 = vmatpush.bf16.msra.mxu0 %v3312
    %4276 = vmatpush.bf16.msra.mxu0 %v3310
    %4277 = vmatmul.bf16.gmra.mxu0 %v2163
    %v4278 = vpop.f32.mrf.mxu0
    %v4279 = vadd.f32 %v4260, %v4278
    %v4280 = vpop.f32.mrf.mxu0
    %v4281 = vadd.f32 %v4262, %v4280
    %4282 = vmatmul.bf16.gmra.mxu0 %v2181
    %v4283 = vpop.f32.mrf.mxu0
    %v4284 = vadd.f32 %v4265, %v4283
    %v4285 = vpop.f32.mrf.mxu0
    %v4286 = vadd.f32 %v4267, %v4285
    %4287 = vdwg.mxu0
    %4288 = vmatpush.bf16.msra.mxu0 %v3340
    %4289 = vmatpush.bf16.msra.mxu0 %v3338
    %4290 = vmatpush.bf16.msra.mxu0 %v3336
    %4291 = vmatpush.bf16.msra.mxu0 %v3334
    %4292 = vmatpush.bf16.msra.mxu0 %v3332
    %4293 = vmatpush.bf16.msra.mxu0 %v3330
    %4294 = vmatpush.bf16.msra.mxu0 %v3328
    %4295 = vmatpush.bf16.msra.mxu0 %v3326
    %4296 = vmatmul.bf16.gmra.mxu0 %v2164
    %v4297 = vpop.f32.mrf.mxu0
    %v4298 = vadd.f32 %v4279, %v4297
    %v4299 = vpop.f32.mrf.mxu0
    %v4300 = vadd.f32 %v4281, %v4299
    %4301 = vmatmul.bf16.gmra.mxu0 %v2182
    %v4302 = vpop.f32.mrf.mxu0
    %v4303 = vadd.f32 %v4284, %v4302
    %v4304 = vpop.f32.mrf.mxu0
    %v4305 = vadd.f32 %v4286, %v4304
    %4306 = vdwg.mxu0
    %4307 = vmatpush.bf16.msra.mxu0 %v3356
    %4308 = vmatpush.bf16.msra.mxu0 %v3354
    %4309 = vmatpush.bf16.msra.mxu0 %v3352
    %4310 = vmatpush.bf16.msra.mxu0 %v3350
    %4311 = vmatpush.bf16.msra.mxu0 %v3348
    %4312 = vmatpush.bf16.msra.mxu0 %v3346
    %4313 = vmatpush.bf16.msra.mxu0 %v3344
    %4314 = vmatpush.bf16.msra.mxu0 %v3342
    %4315 = vmatmul.bf16.gmra.mxu0 %v2165
    %v4316 = vpop.f32.mrf.mxu0
    %v4317 = vadd.f32 %v4298, %v4316
    %v4318 = vpop.f32.mrf.mxu0
    %v4319 = vadd.f32 %v4300, %v4318
    %4320 = vmatmul.bf16.gmra.mxu0 %v2183
    %v4321 = vpop.f32.mrf.mxu0
    %v4322 = vadd.f32 %v4303, %v4321
    %v4323 = vpop.f32.mrf.mxu0
    %v4324 = vadd.f32 %v4305, %v4323
    %4325 = vdwg.mxu0
    %4326 = vmatpush.bf16.msra.mxu0 %v3372
    %4327 = vmatpush.bf16.msra.mxu0 %v3370
    %4328 = vmatpush.bf16.msra.mxu0 %v3368
    %4329 = vmatpush.bf16.msra.mxu0 %v3366
    %4330 = vmatpush.bf16.msra.mxu0 %v3364
    %4331 = vmatpush.bf16.msra.mxu0 %v3362
    %4332 = vmatpush.bf16.msra.mxu0 %v3360
    %4333 = vmatpush.bf16.msra.mxu0 %v3358
    %4334 = vmatmul.bf16.gmra.mxu0 %v2166
    %v4335 = vpop.f32.mrf.mxu0
    %v4336 = vadd.f32 %v4317, %v4335
    %v4337 = vpop.f32.mrf.mxu0
    %v4338 = vadd.f32 %v4319, %v4337
    %4339 = vmatmul.bf16.gmra.mxu0 %v2184
    %v4340 = vpop.f32.mrf.mxu0
    %v4341 = vadd.f32 %v4322, %v4340
    %v4342 = vpop.f32.mrf.mxu0
    %v4343 = vadd.f32 %v4324, %v4342
    %4344 = vdwg.mxu0
    %v4346 = vperm.slane %v123, 0
    %v4347 = vperm.slane %v123, 1
    %v4350 = vadd.f32 %v3994, %v4346
    %v4351 = vadd.f32 %v4336, %v4347
    %v4352 = vadd.f32 %v3996, %v4346
    %v4353 = vadd.f32 %v4338, %v4347
    %v4354 = vadd.f32 %v3999, %v4346
    %v4355 = vadd.f32 %v4341, %v4347
    %v4356 = vadd.f32 %v4001, %v4346
    %v4357 = vadd.f32 %v4343, %v4347
    %4358 = vset.pattern.permute.xlu0 1
    %4359 = vperm.xlu0 %4358, %v1125
    %v4360 = vpop.permute.xlu0 %4359
    %4362 = vset.pattern.permute.xlu0 1
    %4363 = vperm.xlu0 %4362, %v1126
    %v4364 = vpop.permute.xlu0 %4363
    %4366 = vset.pattern.permute.xlu0 1
    %4367 = vperm.xlu0 %4366, %v1127
    %v4368 = vpop.permute.xlu0 %4367
    %4370 = vset.pattern.permute.xlu0 1
    %4371 = vperm.xlu0 %4370, %v1128
    %v4372 = vpop.permute.xlu0 %4371
    %v4375 = vperm.slane %v121, 0
    %v4376 = vperm.slane %v121, 1
    %v4379 = vmul.f32 %v4360, %v4375
    %v4380 = vmul.f32 %v4360, %v4376
    %v4381 = vmul.f32 %v4364, %v4375
    %v4382 = vmul.f32 %v4364, %v4376
    %v4383 = vmul.f32 %v4368, %v4375
    %v4384 = vmul.f32 %v4368, %v4376
    %v4385 = vmul.f32 %v4372, %v4375
    %v4386 = vmul.f32 %v4372, %v4376
    %v4387 = vadd.f32 %v4350, %v4379
    %v4388 = vadd.f32 %v4351, %v4380
    %v4389 = vadd.f32 %v4352, %v4381
    %v4390 = vadd.f32 %v4353, %v4382
    %v4391 = vadd.f32 %v4354, %v4383
    %v4392 = vadd.f32 %v4355, %v4384
    %v4393 = vadd.f32 %v4356, %v4385
    %v4394 = vadd.f32 %v4357, %v4386
    %vm4395 = vcmp.ge.f32.partialorder %v4387, 0.0
    %vm4396 = vcmp.ge.f32.partialorder %v4388, 0.0
    %vm4397 = vcmp.ge.f32.partialorder %v4389, 0.0
    %vm4398 = vcmp.ge.f32.partialorder %v4390, 0.0
    %vm4399 = vcmp.ge.f32.partialorder %v4391, 0.0
    %vm4400 = vcmp.ge.f32.partialorder %v4392, 0.0
    %vm4401 = vcmp.ge.f32.partialorder %v4393, 0.0
    %vm4402 = vcmp.ge.f32.partialorder %v4394, 0.0
    %v4403 = vmul.f32 %v4387, 0.2
    %v4404 = vmul.f32 %v4388, 0.2
    %v4405 = vmul.f32 %v4389, 0.2
    %v4406 = vmul.f32 %v4390, 0.2
    %v4407 = vmul.f32 %v4391, 0.2
    %v4408 = vmul.f32 %v4392, 0.2
    %v4409 = vmul.f32 %v4393, 0.2
    %v4410 = vmul.f32 %v4394, 0.2
    %v4411 = vsel %vm4395, %v4387, %v4403
    %v4412 = vsel %vm4396, %v4388, %v4404
    %v4413 = vsel %vm4397, %v4389, %v4405
    %v4414 = vsel %vm4398, %v4390, %v4406
    %v4415 = vsel %vm4399, %v4391, %v4407
    %v4416 = vsel %vm4400, %v4392, %v4408
    %v4417 = vsel %vm4401, %v4393, %v4409
    %v4418 = vsel %vm4402, %v4394, %v4410
    %v4421 = vrot.slane %v1071, 7
    %v4422 = vsel %vm1201, %v1045, %v4421
    %v4423 = vsel %vm1203, %v1045, %v4421
    %v4424 = vrot.slane %v4423, 1
    %v4425 = vadd.f32 %v4411, %v4413
    %v4426 = vrot.slane %v4425, 4
    %v4427 = vadd.f32 %v4425, %v4426
    %v4428 = vrot.slane %v4427, 2
    %v4429 = vadd.f32 %v4427, %v4428
    %v4430 = vrot.slane %v4429, 1
    %v4431 = vadd.f32 %v4429, %v4430
    %v4432 = vadd.f32 %v4412, %v4414
    %v4433 = vrot.slane %v4432, 4
    %v4434 = vadd.f32 %v4432, %v4433
    %v4435 = vrot.slane %v4434, 2
    %v4436 = vadd.f32 %v4434, %v4435
    %v4437 = vrot.slane %v4436, 1
    %v4438 = vadd.f32 %v4436, %v4437
    %v4439 = vadd.f32 %v4415, %v4417
    %v4440 = vrot.slane %v4439, 4
    %v4441 = vadd.f32 %v4439, %v4440
    %v4442 = vrot.slane %v4441, 2
    %v4443 = vadd.f32 %v4441, %v4442
    %v4444 = vrot.slane %v4443, 1
    %v4445 = vadd.f32 %v4443, %v4444
    %v4446 = vadd.f32 %v4416, %v4418
    %v4447 = vrot.slane %v4446, 4
    %v4448 = vadd.f32 %v4446, %v4447
    %v4449 = vrot.slane %v4448, 2
    %v4450 = vadd.f32 %v4448, %v4449
    %v4451 = vrot.slane %v4450, 1
    %v4452 = vadd.f32 %v4450, %v4451
    %v4453 = vmul.f32 %v4431, %v1240
    %v4454 = vmul.f32 %v4438, %v1240
    %v4455 = vmul.f32 %v4445, %v1240
    %v4456 = vmul.f32 %v4452, %v1240
    %v4457 = vsub.f32 %v4411, %v4453
    %v4458 = vsub.f32 %v4412, %v4454
    %v4459 = vsub.f32 %v4413, %v4453
    %v4460 = vsub.f32 %v4414, %v4454
    %v4461 = vsub.f32 %v4415, %v4455
    %v4462 = vsub.f32 %v4416, %v4456
    %v4463 = vsub.f32 %v4417, %v4455
    %v4464 = vsub.f32 %v4418, %v4456
    %v4465 = vmul.f32 %v4457, %v4457
    %v4466 = vmul.f32 %v4458, %v4458
    %v4467 = vmul.f32 %v4459, %v4459
    %v4468 = vmul.f32 %v4460, %v4460
    %v4469 = vmul.f32 %v4461, %v4461
    %v4470 = vmul.f32 %v4462, %v4462
    %v4471 = vmul.f32 %v4463, %v4463
    %v4472 = vmul.f32 %v4464, %v4464
    %v4473 = vadd.f32 %v4465, %v4467
    %v4474 = vrot.slane %v4473, 4
    %v4475 = vadd.f32 %v4473, %v4474
    %v4476 = vrot.slane %v4475, 2
    %v4477 = vadd.f32 %v4475, %v4476
    %v4478 = vrot.slane %v4477, 1
    %v4479 = vadd.f32 %v4477, %v4478
    %v4480 = vadd.f32 %v4466, %v4468
    %v4481 = vrot.slane %v4480, 4
    %v4482 = vadd.f32 %v4480, %v4481
    %v4483 = vrot.slane %v4482, 2
    %v4484 = vadd.f32 %v4482, %v4483
    %v4485 = vrot.slane %v4484, 1
    %v4486 = vadd.f32 %v4484, %v4485
    %v4487 = vadd.f32 %v4469, %v4471
    %v4488 = vrot.slane %v4487, 4
    %v4489 = vadd.f32 %v4487, %v4488
    %v4490 = vrot.slane %v4489, 2
    %v4491 = vadd.f32 %v4489, %v4490
    %v4492 = vrot.slane %v4491, 1
    %v4493 = vadd.f32 %v4491, %v4492
    %v4494 = vadd.f32 %v4470, %v4472
    %v4495 = vrot.slane %v4494, 4
    %v4496 = vadd.f32 %v4494, %v4495
    %v4497 = vrot.slane %v4496, 2
    %v4498 = vadd.f32 %v4496, %v4497
    %v4499 = vrot.slane %v4498, 1
    %v4500 = vadd.f32 %v4498, %v4499
    %v4501 = vmul.f32 %v4479, %v1240
    %v4502 = vmul.f32 %v4486, %v1240
    %v4503 = vmul.f32 %v4493, %v1240
    %v4504 = vmul.f32 %v4500, %v1240
    %v4505 = vadd.f32 %v4501, 1e-08
    %v4506 = vadd.f32 %v4502, 1e-08
    %v4507 = vadd.f32 %v4503, 1e-08
    %v4508 = vadd.f32 %v4504, 1e-08
    %v4509 = vrsqrt.pop %v4505
    %v4510 = vmul.f32 %v4509, %v4505
    %v4511 = vmul.f32 %v4510, %v4509
    %v4512 = vmul.f32 0.5, %v4511
    %v4513 = vsub.f32 1.5, %v4512
    %v4514 = vmul.f32 %v4509, %v4513
    %vm4515 = vweird.f32 %v4505
    %vm4516 = vweird.f32 %v4509
    %vm4517 = vmor %vm4515, %vm4516
    %v4518 = vsel %vm4517, %v4509, %v4514
    %v4519 = vrsqrt.pop %v4506
    %v4520 = vmul.f32 %v4519, %v4506
    %v4521 = vmul.f32 %v4520, %v4519
    %v4522 = vmul.f32 0.5, %v4521
    %v4523 = vsub.f32 1.5, %v4522
    %v4524 = vmul.f32 %v4519, %v4523
    %vm4525 = vweird.f32 %v4506
    %vm4526 = vweird.f32 %v4519
    %vm4527 = vmor %vm4525, %vm4526
    %v4528 = vsel %vm4527, %v4519, %v4524
    %v4529 = vrsqrt.pop %v4507
    %v4530 = vmul.f32 %v4529, %v4507
    %v4531 = vmul.f32 %v4530, %v4529
    %v4532 = vmul.f32 0.5, %v4531
    %v4533 = vsub.f32 1.5, %v4532
    %v4534 = vmul.f32 %v4529, %v4533
    %vm4535 = vweird.f32 %v4507
    %vm4536 = vweird.f32 %v4529
    %vm4537 = vmor %vm4535, %vm4536
    %v4538 = vsel %vm4537, %v4529, %v4534
    %v4539 = vrsqrt.pop %v4508
    %v4540 = vmul.f32 %v4539, %v4508
    %v4541 = vmul.f32 %v4540, %v4539
    %v4542 = vmul.f32 0.5, %v4541
    %v4543 = vsub.f32 1.5, %v4542
    %v4544 = vmul.f32 %v4539, %v4543
    %vm4545 = vweird.f32 %v4508
    %vm4546 = vweird.f32 %v4539
    %vm4547 = vmor %vm4545, %vm4546
    %v4548 = vsel %vm4547, %v4539, %v4544
    %v4549 = vmul.f32 %v4457, %v4518
    %v4550 = vmul.f32 %v4458, %v4528
    %v4551 = vmul.f32 %v4459, %v4518
    %v4552 = vmul.f32 %v4460, %v4528
    %v4553 = vmul.f32 %v4461, %v4538
    %v4554 = vmul.f32 %v4462, %v4548
    %v4555 = vmul.f32 %v4463, %v4538
    %v4556 = vmul.f32 %v4464, %v4548
    %v4557 = vperm.slane %v4422, 0
    %v4558 = vperm.slane %v4422, 1
    %v4559 = vperm.slane %v4424, 0
    %v4560 = vperm.slane %v4424, 1
    %v4565 = vmul.f32 %v4557, %v4549
    %v4566 = vmul.f32 %v4558, %v4550
    %v4567 = vmul.f32 %v4557, %v4551
    %v4568 = vmul.f32 %v4558, %v4552
    %v4569 = vmul.f32 %v4559, %v4553
    %v4570 = vmul.f32 %v4560, %v4554
    %v4571 = vmul.f32 %v4559, %v4555
    %v4572 = vmul.f32 %v4560, %v4556
    %v4575 = vrot.slane %v1123, 7
    %v4576 = vsel %vm1201, %v1097, %v4575
    %v4577 = vsel %vm1203, %v1097, %v4575
    %v4578 = vrot.slane %v4577, 1
    %v4579 = vperm.slane %v4576, 0
    %v4580 = vperm.slane %v4576, 1
    %v4581 = vperm.slane %v4578, 0
    %v4582 = vperm.slane %v4578, 1
    %v4587 = vadd.f32 %v4565, %v4579
    %v4588 = vadd.f32 %v4566, %v4580
    %v4589 = vadd.f32 %v4567, %v4579
    %v4590 = vadd.f32 %v4568, %v4580
    %v4591 = vadd.f32 %v4569, %v4581
    %v4592 = vadd.f32 %v4570, %v4582
    %v4593 = vadd.f32 %v4571, %v4581
    %v4594 = vadd.f32 %v4572, %v4582
    %v4595 = vpack.c.bf16 %v4589, %v4587
    %v4596 = vpack.c.bf16 %v4590, %v4588
    %v4597 = vpack.c.bf16 %v4593, %v4591
    %v4598 = vpack.c.bf16 %v4594, %v4592
    %v4599 = vld [vmem:[#allocation10] sm:$0xf]
    %v4600 = vld [vmem:[#allocation10 + $0x4] sm:$0xf]
    %v4601 = vld [vmem:[#allocation10 + $0x8] sm:$0xf]
    %v4602 = vld [vmem:[#allocation10 + $0xc] sm:$0xf]
    %v4603 = vld [vmem:[#allocation10 + $0x10] sm:$0xf]
    %v4604 = vld [vmem:[#allocation10 + $0x14] sm:$0xf]
    %v4605 = vld [vmem:[#allocation10 + $0x18] sm:$0xf]
    %v4606 = vld [vmem:[#allocation10 + $0x1c] sm:$0xf]
    %v4607 = vld [vmem:[#allocation10 + $0x20] sm:$0xf]
    %v4608 = vld [vmem:[#allocation10 + $0x24] sm:$0xf]
    %v4609 = vld [vmem:[#allocation10 + $0x28] sm:$0xf]
    %v4610 = vld [vmem:[#allocation10 + $0x2c] sm:$0xf]
    %v4611 = vld [vmem:[#allocation10 + $0x30] sm:$0xf]
    %v4612 = vld [vmem:[#allocation10 + $0x34] sm:$0xf]
    %v4613 = vld [vmem:[#allocation10 + $0x38] sm:$0xf]
    %v4614 = vld [vmem:[#allocation10 + $0x3c] sm:$0xf]
    %v4615 = vld [vmem:[#allocation10 + $0x40] sm:$0xf]
    %v4616 = vld [vmem:[#allocation10 + $0x44] sm:$0xf]
    %v4617 = vld [vmem:[#allocation10 + $0x48] sm:$0xf]
    %v4618 = vld [vmem:[#allocation10 + $0x4c] sm:$0xf]
    %v4619 = vld [vmem:[#allocation10 + $0x50] sm:$0xf]
    %v4620 = vld [vmem:[#allocation10 + $0x54] sm:$0xf]
    %v4621 = vld [vmem:[#allocation10 + $0x58] sm:$0xf]
    %v4622 = vld [vmem:[#allocation10 + $0x5c] sm:$0xf]
    %v4623 = vld [vmem:[#allocation10 + $0x60] sm:$0xf]
    %v4624 = vld [vmem:[#allocation10 + $0x64] sm:$0xf]
    %v4625 = vld [vmem:[#allocation10 + $0x68] sm:$0xf]
    %v4626 = vld [vmem:[#allocation10 + $0x6c] sm:$0xf]
    %v4627 = vld [vmem:[#allocation10 + $0x70] sm:$0xf]
    %v4628 = vld [vmem:[#allocation10 + $0x74] sm:$0xf]
    %v4629 = vld [vmem:[#allocation10 + $0x78] sm:$0xf]
    %v4630 = vld [vmem:[#allocation10 + $0x7c] sm:$0xf]
    %v4631 = vperm.slane %v124, 0
    %v4664 = vunpack.c.l.b16 %v4599
    %v4665 = vunpack.c.l.b16 %v4600
    %v4666 = vunpack.c.l.b16 %v4601
    %v4667 = vunpack.c.l.b16 %v4602
    %v4668 = vunpack.c.l.b16 %v4603
    %v4669 = vunpack.c.l.b16 %v4604
    %v4670 = vunpack.c.l.b16 %v4605
    %v4671 = vunpack.c.l.b16 %v4606
    %v4672 = vunpack.c.l.b16 %v4607
    %v4673 = vunpack.c.l.b16 %v4608
    %v4674 = vunpack.c.l.b16 %v4609
    %v4675 = vunpack.c.l.b16 %v4610
    %v4676 = vunpack.c.l.b16 %v4611
    %v4677 = vunpack.c.l.b16 %v4612
    %v4678 = vunpack.c.l.b16 %v4613
    %v4679 = vunpack.c.l.b16 %v4614
    %v4680 = vunpack.c.l.b16 %v4615
    %v4681 = vunpack.c.l.b16 %v4616
    %v4682 = vunpack.c.l.b16 %v4617
    %v4683 = vunpack.c.l.b16 %v4618
    %v4684 = vunpack.c.l.b16 %v4619
    %v4685 = vunpack.c.l.b16 %v4620
    %v4686 = vunpack.c.l.b16 %v4621
    %v4687 = vunpack.c.l.b16 %v4622
    %v4688 = vunpack.c.l.b16 %v4623
    %v4689 = vunpack.c.l.b16 %v4624
    %v4690 = vunpack.c.l.b16 %v4625
    %v4691 = vunpack.c.l.b16 %v4626
    %v4692 = vunpack.c.l.b16 %v4627
    %v4693 = vunpack.c.l.b16 %v4628
    %v4694 = vunpack.c.l.b16 %v4629
    %v4695 = vunpack.c.l.b16 %v4630
    %v4696 = vpack.c.b16 %v4665, %v4664
    %v4697 = vpack.c.b16 %v4667, %v4666
    %v4698 = vpack.c.b16 %v4669, %v4668
    %v4699 = vpack.c.b16 %v4671, %v4670
    %v4700 = vpack.c.b16 %v4673, %v4672
    %v4701 = vpack.c.b16 %v4675, %v4674
    %v4702 = vpack.c.b16 %v4677, %v4676
    %v4703 = vpack.c.b16 %v4679, %v4678
    %v4704 = vpack.c.b16 %v4681, %v4680
    %v4705 = vpack.c.b16 %v4683, %v4682
    %v4706 = vpack.c.b16 %v4685, %v4684
    %v4707 = vpack.c.b16 %v4687, %v4686
    %v4708 = vpack.c.b16 %v4689, %v4688
    %v4709 = vpack.c.b16 %v4691, %v4690
    %v4710 = vpack.c.b16 %v4693, %v4692
    %v4711 = vpack.c.b16 %v4695, %v4694
    %4728 = vmatpush.bf16.msra.mxu0 %v4703
    %4729 = vmatpush.bf16.msra.mxu0 %v4702
    %4730 = vmatpush.bf16.msra.mxu0 %v4701
    %4731 = vmatpush.bf16.msra.mxu0 %v4700
    %4732 = vmatpush.bf16.msra.mxu0 %v4699
    %4733 = vmatpush.bf16.msra.mxu0 %v4698
    %4734 = vmatpush.bf16.msra.mxu0 %v4697
    %4735 = vmatpush.bf16.msra.mxu0 %v4696
    %4736 = vmatmul.bf16.gmra.mxu0 %v4595
    %v4737 = vpop.f32.mrf.mxu0
    %v4738 = vadd.f32 %v4631, %v4737
    %v4739 = vpop.f32.mrf.mxu0
    %v4740 = vadd.f32 %v4631, %v4739
    %4741 = vmatmul.bf16.gmra.mxu0 %v4597
    %v4742 = vpop.f32.mrf.mxu0
    %v4743 = vadd.f32 %v4631, %v4742
    %v4744 = vpop.f32.mrf.mxu0
    %v4745 = vadd.f32 %v4631, %v4744
    %4746 = vdwg.mxu0
    %4747 = vmatpush.bf16.msra.mxu0 %v4711
    %4748 = vmatpush.bf16.msra.mxu0 %v4710
    %4749 = vmatpush.bf16.msra.mxu0 %v4709
    %4750 = vmatpush.bf16.msra.mxu0 %v4708
    %4751 = vmatpush.bf16.msra.mxu0 %v4707
    %4752 = vmatpush.bf16.msra.mxu0 %v4706
    %4753 = vmatpush.bf16.msra.mxu0 %v4705
    %4754 = vmatpush.bf16.msra.mxu0 %v4704
    %4755 = vmatmul.bf16.gmra.mxu0 %v4596
    %v4756 = vpop.f32.mrf.mxu0
    %v4757 = vadd.f32 %v4738, %v4756
    %v4758 = vpop.f32.mrf.mxu0
    %v4759 = vadd.f32 %v4740, %v4758
    %4760 = vmatmul.bf16.gmra.mxu0 %v4598
    %v4761 = vpop.f32.mrf.mxu0
    %v4762 = vadd.f32 %v4743, %v4761
    %v4763 = vpop.f32.mrf.mxu0
    %v4764 = vadd.f32 %v4745, %v4763
    %4765 = vdwg.mxu0
    %4766 = vst [vmem:[%s8] sm:$0xff] %v4757
    %4767 = vst [vmem:[%s8 + $0x8] sm:$0xff] %v4759
    %4768 = vst [vmem:[%s8 + $0x10] sm:$0xff] %v4762
    %4769 = vst [vmem:[%s8 + $0x18] sm:$0xff] %v4764
    // Predicated region
    $region58: #{synthesis_forward.1} parent=1 // pred_check
      _
    $region59: #{synthesis_forward.1} parent=1 // pred_check_branch
      %4771 = sbr.rel (0) target = $region61
    $region60: #{synthesis_forward.1} parent=1 // pred_region
      _
    $region61: #{synthesis_forward.1} parent=1 // pred_fallthru
      _
    // Predicated region
    $region62: #{synthesis_forward.1} parent=1 // pred_check
      _
    $region63: #{synthesis_forward.1} parent=1 // pred_check_branch
      %4773 = sbr.rel (0) target = $region65
    $region64: #{synthesis_forward.1} parent=1 // pred_region
      _
    $region65: #{synthesis_forward.1} parent=1 // pred_fallthru
      _
    %4774 = vsyncpa [#allocation4], 1
    %4775 = vsyncpa [#allocation6], 1
    %4776 = vsyncpa [#allocation9], 1
    %4777 = vsyncpa [#allocation12], 1

</llo_original>
